<compile_context>
chip_gen: v7x
topology: tpu7x:2x2x1
jax: 0.10.0
libtpu: 0.0.40
codegen_flags: <defaults>
</compile_context>

<pallas_src>
import jax
import jax.numpy as jnp
import numpy as np
from jax.experimental import pallas as pl
from jax.experimental.pallas import tpu as pltpu

INPUT_SIZE = 16
EMB_SIZE = 32
HIDDEN_SIZE = 64
N_LAYERS = 2
BATCH = 2
SEQ = 8


def encoder_kernel(x_ref, w_emb_ref, w_ih0_rz_ref, w_ih0_n_ref,
                   w_hh0_rz_ref, w_hh0_n_ref, w1_rz_ref, w1_n_ref, bias_ref,
                   hidden_out_ref, base_rz_ref, base_n_ref):
    f32 = jnp.float32
    bf16 = jnp.bfloat16
    _, B, H = hidden_out_ref.shape
    H2 = 2 * H
    E = w_emb_ref.shape[1]
    T = x_ref.shape[0] // B

    # ---- packed biases: one small f32 slab, sliced once outside the time loop ----
    bias = bias_ref[...]                              # (8, 2H) f32
    b_emb = bias[0:1, 0:E]                            # embedding bias
    b0_rz = bias[1:2, 0:H2]                           # b_ih0_rz + b_hh0_rz (folded)
    b0_in = bias[2:3, 0:H]                            # b_ih0_n
    # in-loop biases: hoist the tiny (B, .) broadcasts once (JAX does not CSE broadcasts)
    b_hh0_n = jnp.broadcast_to(bias[2:3, H:H2], (B, H))   # stays inside r*(...)
    b1_rz = jnp.broadcast_to(bias[3:4, 0:H2], (B, H2))    # b_ih1_rz + b_hh1_rz (folded)
    b1_in = jnp.broadcast_to(bias[4:5, 0:H], (B, H))      # b_ih1_n
    b_hh1_n = jnp.broadcast_to(bias[4:5, H:H2], (B, H))   # stays inside r*(...)

    # ---- non-recurrent work for ALL timesteps (hoisted off the serial path) ----
    # embedding: Linear + ReLU (Dropout = identity in eval mode)
    emb = jnp.dot(x_ref[...], w_emb_ref[...], preferred_element_type=f32) + b_emb
    emb = jnp.maximum(emb, 0.0).astype(bf16)          # (T*B, E)

    # layer-0 input projections for all timesteps; r/z biases folded (symmetric sum),
    # n keeps only b_ih (b_hh_n must stay inside the reset-gate product).
    # Written to VMEM scratch so the per-step reads are plain aligned-ish vlds, not
    # sublane shuffles of a live vreg value.
    base_rz_ref[...] = (jnp.dot(emb, w_ih0_rz_ref[...], preferred_element_type=f32)
                        + b0_rz)                      # (T*B, 2H)
    base_n_ref[...] = (jnp.dot(emb, w_ih0_n_ref[...], preferred_element_type=f32)
                       + b0_in)                       # (T*B, H)

    # ---- recurrence: fully unrolled static loop, 4 MXU ops per step ----
    h0 = jnp.zeros((B, H), f32)
    h1 = jnp.zeros((B, H), f32)

    for t in range(T):
        h0b = h0.astype(bf16)

        # ----- layer 0: fused r/z hidden matmul (N=2H) + separate n matmul -----
        rz0 = jax.nn.sigmoid(
            base_rz_ref[pl.ds(t * B, B), :]
            + jnp.dot(h0b, w_hh0_rz_ref[...], preferred_element_type=f32))
        gh0_n = jnp.dot(h0b, w_hh0_n_ref[...], preferred_element_type=f32)
        r0 = rz0[:, 0:H]
        z0 = rz0[:, H:H2]
        n0 = jnp.tanh(base_n_ref[pl.ds(t * B, B), :] + r0 * (gh0_n + b_hh0_n))
        h0 = (1.0 - z0) * n0 + z0 * h0

        # inter-layer dropout = identity (eval mode)

        # ----- layer 1: fused LHS [h0 | h1]; 2 matmuls (stacked rz, block-diag n) -----
        hcat = jnp.concatenate([h0, h1], axis=1).astype(bf16)            # (B, 2H)
        rz1 = jax.nn.sigmoid(
            jnp.dot(hcat, w1_rz_ref[...], preferred_element_type=f32) + b1_rz)
        gn1 = jnp.dot(hcat, w1_n_ref[...], preferred_element_type=f32)   # [gi_n | gh_n]
        r1 = rz1[:, 0:H]
        z1 = rz1[:, H:H2]
        n1 = jnp.tanh(gn1[:, 0:H] + b1_in + r1 * (gn1[:, H:H2] + b_hh1_n))
        h1 = (1.0 - z1) * n1 + z1 * h1

    hidden_out_ref[0, :, :] = h0.astype(hidden_out_ref.dtype)
    hidden_out_ref[1, :, :] = h1.astype(hidden_out_ref.dtype)


def pack_params(params):
    """One-time (init-time) weight fusion / packing into 8 device arrays.

    Weight slabs are bf16 (MXU inputs); biases are packed into a single (8, 2H) f32 slab.
    """
    H, E = HIDDEN_SIZE, EMB_SIZE
    H2 = 2 * H
    bf16 = jnp.bfloat16

    def split3(a):
        return a[..., 0:H], a[..., H:2 * H], a[..., 2 * H:3 * H]

    w_ih0_r, w_ih0_z, w_ih0_n = split3(params["w_ih0"])
    w_hh0_r, w_hh0_z, w_hh0_n = split3(params["w_hh0"])
    b_ih0_r, b_ih0_z, b_ih0_n = split3(params["b_ih0"])
    b_hh0_r, b_hh0_z, b_hh0_n = split3(params["b_hh0"])
    w_ih1_r, w_ih1_z, w_ih1_n = split3(params["w_ih1"])
    w_hh1_r, w_hh1_z, w_hh1_n = split3(params["w_hh1"])
    b_ih1_r, b_ih1_z, b_ih1_n = split3(params["b_ih1"])
    b_hh1_r, b_hh1_z, b_hh1_n = split3(params["b_hh1"])

    zeros_hh = jnp.zeros((H, H), jnp.float32)

    # packed bias slab (8 rows for sublane alignment, 2H lanes)
    bias = jnp.zeros((8, H2), jnp.float32)
    bias = bias.at[0, 0:E].set(params["b_emb"][0])
    bias = bias.at[1, 0:H].set((b_ih0_r + b_hh0_r)[0])
    bias = bias.at[1, H:H2].set((b_ih0_z + b_hh0_z)[0])
    bias = bias.at[2, 0:H].set(b_ih0_n[0])
    bias = bias.at[2, H:H2].set(b_hh0_n[0])
    bias = bias.at[3, 0:H].set((b_ih1_r + b_hh1_r)[0])
    bias = bias.at[3, H:H2].set((b_ih1_z + b_hh1_z)[0])
    bias = bias.at[4, 0:H].set(b_ih1_n[0])
    bias = bias.at[4, H:H2].set(b_hh1_n[0])

    packed = {
        "w_emb": params["w_emb"].astype(bf16),                                    # (I, E)
        "w_ih0_rz": jnp.concatenate([w_ih0_r, w_ih0_z], axis=1).astype(bf16),     # (E, 2H)
        "w_ih0_n": w_ih0_n.astype(bf16),                                          # (E, H)
        "w_hh0_rz": jnp.concatenate([w_hh0_r, w_hh0_z], axis=1).astype(bf16),     # (H, 2H)
        "w_hh0_n": w_hh0_n.astype(bf16),                                          # (H, H)
        # layer 1: vertically stacked rz weights so [h0|h1] @ w1_rz = gi_rz + gh_rz
        "w1_rz": jnp.concatenate(
            [jnp.concatenate([w_ih1_r, w_ih1_z], axis=1),
             jnp.concatenate([w_hh1_r, w_hh1_z], axis=1)], axis=0).astype(bf16),  # (2H, 2H)
        # layer 1 n-gate: block-diagonal so one matmul yields [gi_n | gh_n] side by side
        "w1_n": jnp.concatenate(
            [jnp.concatenate([w_ih1_n, zeros_hh], axis=1),
             jnp.concatenate([zeros_hh, w_hh1_n], axis=1)], axis=0).astype(bf16), # (2H, 2H)
        "bias": bias,                                                             # (8, 2H)
    }
    return packed


@jax.jit
def encoder_forward(x, packed):
    """x: (batch, seq, input_size) -> hidden: (n_layers, batch, hidden_size)."""
    B, T, I = x.shape
    H = HIDDEN_SIZE

    # x.permute(1, 0, 2) then flatten time into rows (row = t*B + b); bf16 MXU input.
    x2d = jnp.transpose(x, (1, 0, 2)).reshape(T * B, I).astype(jnp.bfloat16)

    vmem = pl.BlockSpec(memory_space=pltpu.MemorySpace.VMEM)

    return pl.pallas_call(
        encoder_kernel,
        out_shape=jax.ShapeDtypeStruct((N_LAYERS, B, H), jnp.float32),
        in_specs=[vmem] * 9,
        out_specs=vmem,
        scratch_shapes=[pltpu.VMEM((T * B, 2 * H), jnp.float32),   # hoisted rz projections
                        pltpu.VMEM((T * B, H), jnp.float32)],      # hoisted n projections
    )(x2d, packed["w_emb"], packed["w_ih0_rz"], packed["w_ih0_n"],
      packed["w_hh0_rz"], packed["w_hh0_n"], packed["w1_rz"], packed["w1_n"],
      packed["bias"])


def reference_encoder(x, params):
    """Pure-JAX f32 reference matching PyTorch eval-mode semantics (fused-gate layout)."""
    x = jnp.transpose(x, (1, 0, 2))                           # (T, B, I)
    emb = jax.nn.relu(x @ params["w_emb"] + params["b_emb"])  # (T, B, E)
    H = params["w_hh0"].shape[0]

    def cell(h, inp, w_ih, w_hh, b_ih, b_hh):
        gi = inp @ w_ih + b_ih
        gh = h @ w_hh + b_hh
        r = jax.nn.sigmoid(gi[:, :H] + gh[:, :H])
        z = jax.nn.sigmoid(gi[:, H:2 * H] + gh[:, H:2 * H])
        n = jnp.tanh(gi[:, 2 * H:] + r * gh[:, 2 * H:])
        return (1.0 - z) * n + z * h

    def layer(seq_in, w_ih, w_hh, b_ih, b_hh):
        def step(h, xt):
            h_new = cell(h, xt, w_ih, w_hh, b_ih, b_hh)
            return h_new, h_new
        h0 = jnp.zeros((seq_in.shape[1], H), jnp.float32)
        h_last, outs = jax.lax.scan(step, h0, seq_in)
        return h_last, outs

    h_l0, out_l0 = layer(emb, params["w_ih0"], params["w_hh0"], params["b_ih0"], params["b_hh0"])
    h_l1, _ = layer(out_l0, params["w_ih1"], params["w_hh1"], params["b_ih1"], params["b_hh1"])
    return jnp.stack([h_l0, h_l1], axis=0)


def init_params(key):
    ks = jax.random.split(key, 11)
    u = lambda k, shape: jax.random.uniform(k, shape, jnp.float32, -0.1, 0.1)
    # Weights stored pre-transposed (in_dim, out_dim) so compute is x @ W; gate order r,z,n.
    return {
        "w_emb": u(ks[0], (INPUT_SIZE, EMB_SIZE)),
        "b_emb": u(ks[1], (1, EMB_SIZE)),
        "w_ih0": u(ks[2], (EMB_SIZE, 3 * HIDDEN_SIZE)),
        "w_hh0": u(ks[3], (HIDDEN_SIZE, 3 * HIDDEN_SIZE)),
        "b_ih0": u(ks[4], (1, 3 * HIDDEN_SIZE)),
        "b_hh0": u(ks[5], (1, 3 * HIDDEN_SIZE)),
        "w_ih1": u(ks[6], (HIDDEN_SIZE, 3 * HIDDEN_SIZE)),
        "w_hh1": u(ks[7], (HIDDEN_SIZE, 3 * HIDDEN_SIZE)),
        "b_ih1": u(ks[8], (1, 3 * HIDDEN_SIZE)),
        "b_hh1": u(ks[9], (1, 3 * HIDDEN_SIZE)),
    }


if __name__ == "__main__":
    key = jax.random.PRNGKey(0)
    pkey, xkey = jax.random.split(key)
    params = init_params(pkey)
    packed = pack_params(params)   # one-time weight packing, outside the jitted forward
    x = jax.random.normal(xkey, (BATCH, SEQ, INPUT_SIZE), jnp.float32)

    hidden = jax.block_until_ready(encoder_forward(x, packed))

    hidden_ref = jax.block_until_ready(reference_encoder(x, params))
    # bf16 MXU inputs (f32 accumulation) -> tolerance loosened vs the pure-f32 version.
    np.testing.assert_allclose(np.asarray(hidden), np.asarray(hidden_ref),
                               rtol=2e-2, atol=5e-3)
    assert hidden.shape == (N_LAYERS, BATCH, HIDDEN_SIZE)
    print("KERNEL_OK")
</pallas_src>

<mosaic_0001>
module attributes {stable_mosaic.version = 11 : i64} {
  func.func @encoder_kernel(%arg0: memref<16x16xbf16, #tpu.memory_space<vmem>>, %arg1: memref<16x32xbf16, #tpu.memory_space<vmem>>, %arg2: memref<32x128xbf16, #tpu.memory_space<vmem>>, %arg3: memref<32x64xbf16, #tpu.memory_space<vmem>>, %arg4: memref<64x128xbf16, #tpu.memory_space<vmem>>, %arg5: memref<64x64xbf16, #tpu.memory_space<vmem>>, %arg6: memref<128x128xbf16, #tpu.memory_space<vmem>>, %arg7: memref<128x128xbf16, #tpu.memory_space<vmem>>, %arg8: memref<8x128xf32, #tpu.memory_space<vmem>>, %arg9: memref<2x2x64xf32, #tpu.memory_space<vmem>>, %arg10: memref<16x128xf32, #tpu.memory_space<vmem>>, %arg11: memref<16x64xf32, #tpu.memory_space<vmem>>) attributes {dimension_semantics = [], scalar_prefetch = 0 : i64, scratch_operands = 2 : i64, tpu.core_type = #tpu.core_type<tc>} {
    %c0 = arith.constant 0 : index
    %c0_0 = arith.constant 0 : index
    %0 = vector.load %arg8[%c0, %c0_0] : memref<8x128xf32, #tpu.memory_space<vmem>>, vector<8x128xf32>
    %1 = vector.extract_strided_slice %0 {offsets = [0, 0], sizes = [1, 32], strides = [1, 1]} : vector<8x128xf32> to vector<1x32xf32>
    %2 = vector.extract_strided_slice %0 {offsets = [1, 0], sizes = [1, 128], strides = [1, 1]} : vector<8x128xf32> to vector<1x128xf32>
    %3 = vector.extract_strided_slice %0 {offsets = [2, 0], sizes = [1, 64], strides = [1, 1]} : vector<8x128xf32> to vector<1x64xf32>
    %4 = vector.extract_strided_slice %0 {offsets = [2, 64], sizes = [1, 64], strides = [1, 1]} : vector<8x128xf32> to vector<1x64xf32>
    %5 = vector.shape_cast %4 : vector<1x64xf32> to vector<1x64xf32>
    %6 = vector.broadcast %5 : vector<1x64xf32> to vector<2x64xf32>
    %7 = vector.extract_strided_slice %0 {offsets = [3, 0], sizes = [1, 128], strides = [1, 1]} : vector<8x128xf32> to vector<1x128xf32>
    %8 = vector.shape_cast %7 : vector<1x128xf32> to vector<1x128xf32>
    %9 = vector.broadcast %8 : vector<1x128xf32> to vector<2x128xf32>
    %10 = vector.extract_strided_slice %0 {offsets = [4, 0], sizes = [1, 64], strides = [1, 1]} : vector<8x128xf32> to vector<1x64xf32>
    %11 = vector.shape_cast %10 : vector<1x64xf32> to vector<1x64xf32>
    %12 = vector.broadcast %11 : vector<1x64xf32> to vector<2x64xf32>
    %13 = vector.extract_strided_slice %0 {offsets = [4, 64], sizes = [1, 64], strides = [1, 1]} : vector<8x128xf32> to vector<1x64xf32>
    %14 = vector.shape_cast %13 : vector<1x64xf32> to vector<1x64xf32>
    %15 = vector.broadcast %14 : vector<1x64xf32> to vector<2x64xf32>
    %c0_1 = arith.constant 0 : index
    %c0_2 = arith.constant 0 : index
    %16 = vector.load %arg0[%c0_1, %c0_2] : memref<16x16xbf16, #tpu.memory_space<vmem>>, vector<16x16xbf16>
    %c0_3 = arith.constant 0 : index
    %c0_4 = arith.constant 0 : index
    %17 = vector.load %arg1[%c0_3, %c0_4] : memref<16x32xbf16, #tpu.memory_space<vmem>>, vector<16x32xbf16>
    %cst = arith.constant dense<0.000000e+00> : vector<16x32xf32>
    %18 = tpu.matmul %16, %17, %cst {dimension_numbers = #tpu.dot_dimension_numbers<[1], [0], [0], [1], [0, 0, 1, 1], [], []>} : vector<16x16xbf16>, vector<16x32xbf16>, vector<16x32xf32> -> vector<16x32xf32>
    %19 = vector.broadcast %1 : vector<1x32xf32> to vector<16x32xf32>
    %20 = arith.addf %18, %19 : vector<16x32xf32>
    %cst_5 = arith.constant 0.000000e+00 : f32
    %21 = vector.broadcast %cst_5 : f32 to vector<16x32xf32>
    %22 = arith.maximumf %20, %21 : vector<16x32xf32>
    %23 = arith.truncf %22 : vector<16x32xf32> to vector<16x32xbf16>
    %c0_6 = arith.constant 0 : index
    %c0_7 = arith.constant 0 : index
    %24 = vector.load %arg2[%c0_6, %c0_7] : memref<32x128xbf16, #tpu.memory_space<vmem>>, vector<32x128xbf16>
    %cst_8 = arith.constant dense<0.000000e+00> : vector<16x128xf32>
    %25 = tpu.matmul %23, %24, %cst_8 {dimension_numbers = #tpu.dot_dimension_numbers<[1], [0], [0], [1], [0, 0, 1, 1], [], []>} : vector<16x32xbf16>, vector<32x128xbf16>, vector<16x128xf32> -> vector<16x128xf32>
    %26 = vector.broadcast %2 : vector<1x128xf32> to vector<16x128xf32>
    %27 = arith.addf %25, %26 : vector<16x128xf32>
    %c0_9 = arith.constant 0 : index
    %c0_10 = arith.constant 0 : index
    %28 = vector.load %arg10[%c0_9, %c0_10] : memref<16x128xf32, #tpu.memory_space<vmem>>, vector<16x128xf32>
    tpu.vector_store %arg10[%c0_9, %c0_10], %27 {strides = array<i32>} : memref<16x128xf32, #tpu.memory_space<vmem>>, vector<16x128xf32>,
    %c0_11 = arith.constant 0 : index
    %c0_12 = arith.constant 0 : index
    %29 = vector.load %arg3[%c0_11, %c0_12] : memref<32x64xbf16, #tpu.memory_space<vmem>>, vector<32x64xbf16>
    %cst_13 = arith.constant dense<0.000000e+00> : vector<16x64xf32>
    %30 = tpu.matmul %23, %29, %cst_13 {dimension_numbers = #tpu.dot_dimension_numbers<[1], [0], [0], [1], [0, 0, 1, 1], [], []>} : vector<16x32xbf16>, vector<32x64xbf16>, vector<16x64xf32> -> vector<16x64xf32>
    %31 = vector.broadcast %3 : vector<1x64xf32> to vector<16x64xf32>
    %32 = arith.addf %30, %31 : vector<16x64xf32>
    %c0_14 = arith.constant 0 : index
    %c0_15 = arith.constant 0 : index
    %33 = vector.load %arg11[%c0_14, %c0_15] : memref<16x64xf32, #tpu.memory_space<vmem>>, vector<16x64xf32>
    tpu.vector_store %arg11[%c0_14, %c0_15], %32 {strides = array<i32>} : memref<16x64xf32, #tpu.memory_space<vmem>>, vector<16x64xf32>,
    %cst_16 = arith.constant 0.000000e+00 : f32
    %34 = vector.broadcast %cst_16 : f32 to vector<2x64xf32>
    %cst_17 = arith.constant 0.000000e+00 : f32
    %35 = vector.broadcast %cst_17 : f32 to vector<2x64xf32>
    %36 = arith.truncf %34 : vector<2x64xf32> to vector<2x64xbf16>
    %c0_18 = arith.constant 0 : index
    %c0_19 = arith.constant 0 : index
    %37 = vector.load %arg10[%c0_18, %c0_19] : memref<16x128xf32, #tpu.memory_space<vmem>>, vector<2x128xf32>
    %c0_20 = arith.constant 0 : index
    %c0_21 = arith.constant 0 : index
    %38 = vector.load %arg4[%c0_20, %c0_21] : memref<64x128xbf16, #tpu.memory_space<vmem>>, vector<64x128xbf16>
    %cst_22 = arith.constant dense<0.000000e+00> : vector<2x128xf32>
    %39 = tpu.matmul %36, %38, %cst_22 {dimension_numbers = #tpu.dot_dimension_numbers<[1], [0], [0], [1], [0, 0, 1, 1], [], []>} : vector<2x64xbf16>, vector<64x128xbf16>, vector<2x128xf32> -> vector<2x128xf32>
    %40 = arith.addf %37, %39 : vector<2x128xf32>
    %41 = arith.negf %40 : vector<2x128xf32>
    %42 = math.exp %41 : vector<2x128xf32>
    %cst_23 = arith.constant 1.000000e+00 : f32
    %43 = vector.broadcast %cst_23 : f32 to vector<2x128xf32>
    %44 = arith.addf %43, %42 : vector<2x128xf32>
    %45 = arith.divf %43, %44 : vector<2x128xf32>
    %c0_24 = arith.constant 0 : index
    %c0_25 = arith.constant 0 : index
    %46 = vector.load %arg5[%c0_24, %c0_25] : memref<64x64xbf16, #tpu.memory_space<vmem>>, vector<64x64xbf16>
    %cst_26 = arith.constant dense<0.000000e+00> : vector<2x64xf32>
    %47 = tpu.matmul %36, %46, %cst_26 {dimension_numbers = #tpu.dot_dimension_numbers<[1], [0], [0], [1], [0, 0, 1, 1], [], []>} : vector<2x64xbf16>, vector<64x64xbf16>, vector<2x64xf32> -> vector<2x64xf32>
    %48 = vector.extract_strided_slice %45 {offsets = [0, 0], sizes = [2, 64], strides = [1, 1]} : vector<2x128xf32> to vector<2x64xf32>
    %49 = vector.extract_strided_slice %45 {offsets = [0, 64], sizes = [2, 64], strides = [1, 1]} : vector<2x128xf32> to vector<2x64xf32>
    %c0_27 = arith.constant 0 : index
    %c0_28 = arith.constant 0 : index
    %50 = vector.load %arg11[%c0_27, %c0_28] : memref<16x64xf32, #tpu.memory_space<vmem>>, vector<2x64xf32>
    %51 = arith.addf %47, %6 : vector<2x64xf32>
    %52 = arith.mulf %48, %51 : vector<2x64xf32>
    %53 = arith.addf %50, %52 : vector<2x64xf32>
    %54 = math.tanh %53 : vector<2x64xf32>
    %cst_29 = arith.constant 1.000000e+00 : f32
    %55 = vector.broadcast %cst_29 : f32 to vector<2x64xf32>
    %56 = arith.subf %55, %49 : vector<2x64xf32>
    %57 = arith.mulf %56, %54 : vector<2x64xf32>
    %58 = arith.mulf %49, %34 : vector<2x64xf32>
    %59 = arith.addf %57, %58 : vector<2x64xf32>
    %60 = tpu.concatenate %59, %35 in 1 : vector<2x64xf32>, vector<2x64xf32> -> vector<2x128xf32>
    %61 = arith.truncf %60 : vector<2x128xf32> to vector<2x128xbf16>
    %c0_30 = arith.constant 0 : index
    %c0_31 = arith.constant 0 : index
    %62 = vector.load %arg6[%c0_30, %c0_31] : memref<128x128xbf16, #tpu.memory_space<vmem>>, vector<128x128xbf16>
    %cst_32 = arith.constant dense<0.000000e+00> : vector<2x128xf32>
    %63 = tpu.matmul %61, %62, %cst_32 {dimension_numbers = #tpu.dot_dimension_numbers<[1], [0], [0], [1], [0, 0, 1, 1], [], []>} : vector<2x128xbf16>, vector<128x128xbf16>, vector<2x128xf32> -> vector<2x128xf32>
    %64 = arith.addf %63, %9 : vector<2x128xf32>
    %65 = arith.negf %64 : vector<2x128xf32>
    %66 = math.exp %65 : vector<2x128xf32>
    %cst_33 = arith.constant 1.000000e+00 : f32
    %67 = vector.broadcast %cst_33 : f32 to vector<2x128xf32>
    %68 = arith.addf %67, %66 : vector<2x128xf32>
    %69 = arith.divf %67, %68 : vector<2x128xf32>
    %c0_34 = arith.constant 0 : index
    %c0_35 = arith.constant 0 : index
    %70 = vector.load %arg7[%c0_34, %c0_35] : memref<128x128xbf16, #tpu.memory_space<vmem>>, vector<128x128xbf16>
    %cst_36 = arith.constant dense<0.000000e+00> : vector<2x128xf32>
    %71 = tpu.matmul %61, %70, %cst_36 {dimension_numbers = #tpu.dot_dimension_numbers<[1], [0], [0], [1], [0, 0, 1, 1], [], []>} : vector<2x128xbf16>, vector<128x128xbf16>, vector<2x128xf32> -> vector<2x128xf32>
    %72 = vector.extract_strided_slice %69 {offsets = [0, 0], sizes = [2, 64], strides = [1, 1]} : vector<2x128xf32> to vector<2x64xf32>
    %73 = vector.extract_strided_slice %69 {offsets = [0, 64], sizes = [2, 64], strides = [1, 1]} : vector<2x128xf32> to vector<2x64xf32>
    %74 = vector.extract_strided_slice %71 {offsets = [0, 0], sizes = [2, 64], strides = [1, 1]} : vector<2x128xf32> to vector<2x64xf32>
    %75 = arith.addf %74, %12 : vector<2x64xf32>
    %76 = vector.extract_strided_slice %71 {offsets = [0, 64], sizes = [2, 64], strides = [1, 1]} : vector<2x128xf32> to vector<2x64xf32>
    %77 = arith.addf %76, %15 : vector<2x64xf32>
    %78 = arith.mulf %72, %77 : vector<2x64xf32>
    %79 = arith.addf %75, %78 : vector<2x64xf32>
    %80 = math.tanh %79 : vector<2x64xf32>
    %cst_37 = arith.constant 1.000000e+00 : f32
    %81 = vector.broadcast %cst_37 : f32 to vector<2x64xf32>
    %82 = arith.subf %81, %73 : vector<2x64xf32>
    %83 = arith.mulf %82, %80 : vector<2x64xf32>
    %84 = arith.mulf %73, %35 : vector<2x64xf32>
    %85 = arith.addf %83, %84 : vector<2x64xf32>
    %86 = arith.truncf %59 : vector<2x64xf32> to vector<2x64xbf16>
    %c2 = arith.constant 2 : index
    %c0_38 = arith.constant 0 : index
    %87 = vector.load %arg10[%c2, %c0_38] : memref<16x128xf32, #tpu.memory_space<vmem>>, vector<2x128xf32>
    %c0_39 = arith.constant 0 : index
    %c0_40 = arith.constant 0 : index
    %88 = vector.load %arg4[%c0_39, %c0_40] : memref<64x128xbf16, #tpu.memory_space<vmem>>, vector<64x128xbf16>
    %cst_41 = arith.constant dense<0.000000e+00> : vector<2x128xf32>
    %89 = tpu.matmul %86, %88, %cst_41 {dimension_numbers = #tpu.dot_dimension_numbers<[1], [0], [0], [1], [0, 0, 1, 1], [], []>} : vector<2x64xbf16>, vector<64x128xbf16>, vector<2x128xf32> -> vector<2x128xf32>
    %90 = arith.addf %87, %89 : vector<2x128xf32>
    %91 = arith.negf %90 : vector<2x128xf32>
    %92 = math.exp %91 : vector<2x128xf32>
    %cst_42 = arith.constant 1.000000e+00 : f32
    %93 = vector.broadcast %cst_42 : f32 to vector<2x128xf32>
    %94 = arith.addf %93, %92 : vector<2x128xf32>
    %95 = arith.divf %93, %94 : vector<2x128xf32>
    %c0_43 = arith.constant 0 : index
    %c0_44 = arith.constant 0 : index
    %96 = vector.load %arg5[%c0_43, %c0_44] : memref<64x64xbf16, #tpu.memory_space<vmem>>, vector<64x64xbf16>
    %cst_45 = arith.constant dense<0.000000e+00> : vector<2x64xf32>
    %97 = tpu.matmul %86, %96, %cst_45 {dimension_numbers = #tpu.dot_dimension_numbers<[1], [0], [0], [1], [0, 0, 1, 1], [], []>} : vector<2x64xbf16>, vector<64x64xbf16>, vector<2x64xf32> -> vector<2x64xf32>
    %98 = vector.extract_strided_slice %95 {offsets = [0, 0], sizes = [2, 64], strides = [1, 1]} : vector<2x128xf32> to vector<2x64xf32>
    %99 = vector.extract_strided_slice %95 {offsets = [0, 64], sizes = [2, 64], strides = [1, 1]} : vector<2x128xf32> to vector<2x64xf32>
    %c2_46 = arith.constant 2 : index
    %c0_47 = arith.constant 0 : index
    %100 = vector.load %arg11[%c2_46, %c0_47] : memref<16x64xf32, #tpu.memory_space<vmem>>, vector<2x64xf32>
    %101 = arith.addf %97, %6 : vector<2x64xf32>
    %102 = arith.mulf %98, %101 : vector<2x64xf32>
    %103 = arith.addf %100, %102 : vector<2x64xf32>
    %104 = math.tanh %103 : vector<2x64xf32>
    %cst_48 = arith.constant 1.000000e+00 : f32
    %105 = vector.broadcast %cst_48 : f32 to vector<2x64xf32>
    %106 = arith.subf %105, %99 : vector<2x64xf32>
    %107 = arith.mulf %106, %104 : vector<2x64xf32>
    %108 = arith.mulf %99, %59 : vector<2x64xf32>
    %109 = arith.addf %107, %108 : vector<2x64xf32>
    %110 = tpu.concatenate %109, %85 in 1 : vector<2x64xf32>, vector<2x64xf32> -> vector<2x128xf32>
    %111 = arith.truncf %110 : vector<2x128xf32> to vector<2x128xbf16>
    %c0_49 = arith.constant 0 : index
    %c0_50 = arith.constant 0 : index
    %112 = vector.load %arg6[%c0_49, %c0_50] : memref<128x128xbf16, #tpu.memory_space<vmem>>, vector<128x128xbf16>
    %cst_51 = arith.constant dense<0.000000e+00> : vector<2x128xf32>
    %113 = tpu.matmul %111, %112, %cst_51 {dimension_numbers = #tpu.dot_dimension_numbers<[1], [0], [0], [1], [0, 0, 1, 1], [], []>} : vector<2x128xbf16>, vector<128x128xbf16>, vector<2x128xf32> -> vector<2x128xf32>
    %114 = arith.addf %113, %9 : vector<2x128xf32>
    %115 = arith.negf %114 : vector<2x128xf32>
    %116 = math.exp %115 : vector<2x128xf32>
    %cst_52 = arith.constant 1.000000e+00 : f32
    %117 = vector.broadcast %cst_52 : f32 to vector<2x128xf32>
    %118 = arith.addf %117, %116 : vector<2x128xf32>
    %119 = arith.divf %117, %118 : vector<2x128xf32>
    %c0_53 = arith.constant 0 : index
    %c0_54 = arith.constant 0 : index
    %120 = vector.load %arg7[%c0_53, %c0_54] : memref<128x128xbf16, #tpu.memory_space<vmem>>, vector<128x128xbf16>
    %cst_55 = arith.constant dense<0.000000e+00> : vector<2x128xf32>
    %121 = tpu.matmul %111, %120, %cst_55 {dimension_numbers = #tpu.dot_dimension_numbers<[1], [0], [0], [1], [0, 0, 1, 1], [], []>} : vector<2x128xbf16>, vector<128x128xbf16>, vector<2x128xf32> -> vector<2x128xf32>
    %122 = vector.extract_strided_slice %119 {offsets = [0, 0], sizes = [2, 64], strides = [1, 1]} : vector<2x128xf32> to vector<2x64xf32>
    %123 = vector.extract_strided_slice %119 {offsets = [0, 64], sizes = [2, 64], strides = [1, 1]} : vector<2x128xf32> to vector<2x64xf32>
    %124 = vector.extract_strided_slice %121 {offsets = [0, 0], sizes = [2, 64], strides = [1, 1]} : vector<2x128xf32> to vector<2x64xf32>
    %125 = arith.addf %124, %12 : vector<2x64xf32>
    %126 = vector.extract_strided_slice %121 {offsets = [0, 64], sizes = [2, 64], strides = [1, 1]} : vector<2x128xf32> to vector<2x64xf32>
    %127 = arith.addf %126, %15 : vector<2x64xf32>
    %128 = arith.mulf %122, %127 : vector<2x64xf32>
    %129 = arith.addf %125, %128 : vector<2x64xf32>
    %130 = math.tanh %129 : vector<2x64xf32>
    %cst_56 = arith.constant 1.000000e+00 : f32
    %131 = vector.broadcast %cst_56 : f32 to vector<2x64xf32>
    %132 = arith.subf %131, %123 : vector<2x64xf32>
    %133 = arith.mulf %132, %130 : vector<2x64xf32>
    %134 = arith.mulf %123, %85 : vector<2x64xf32>
    %135 = arith.addf %133, %134 : vector<2x64xf32>
    %136 = arith.truncf %109 : vector<2x64xf32> to vector<2x64xbf16>
    %c4 = arith.constant 4 : index
    %c0_57 = arith.constant 0 : index
    %137 = vector.load %arg10[%c4, %c0_57] : memref<16x128xf32, #tpu.memory_space<vmem>>, vector<2x128xf32>
    %c0_58 = arith.constant 0 : index
    %c0_59 = arith.constant 0 : index
    %138 = vector.load %arg4[%c0_58, %c0_59] : memref<64x128xbf16, #tpu.memory_space<vmem>>, vector<64x128xbf16>
    %cst_60 = arith.constant dense<0.000000e+00> : vector<2x128xf32>
    %139 = tpu.matmul %136, %138, %cst_60 {dimension_numbers = #tpu.dot_dimension_numbers<[1], [0], [0], [1], [0, 0, 1, 1], [], []>} : vector<2x64xbf16>, vector<64x128xbf16>, vector<2x128xf32> -> vector<2x128xf32>
    %140 = arith.addf %137, %139 : vector<2x128xf32>
    %141 = arith.negf %140 : vector<2x128xf32>
    %142 = math.exp %141 : vector<2x128xf32>
    %cst_61 = arith.constant 1.000000e+00 : f32
    %143 = vector.broadcast %cst_61 : f32 to vector<2x128xf32>
    %144 = arith.addf %143, %142 : vector<2x128xf32>
    %145 = arith.divf %143, %144 : vector<2x128xf32>
    %c0_62 = arith.constant 0 : index
    %c0_63 = arith.constant 0 : index
    %146 = vector.load %arg5[%c0_62, %c0_63] : memref<64x64xbf16, #tpu.memory_space<vmem>>, vector<64x64xbf16>
    %cst_64 = arith.constant dense<0.000000e+00> : vector<2x64xf32>
    %147 = tpu.matmul %136, %146, %cst_64 {dimension_numbers = #tpu.dot_dimension_numbers<[1], [0], [0], [1], [0, 0, 1, 1], [], []>} : vector<2x64xbf16>, vector<64x64xbf16>, vector<2x64xf32> -> vector<2x64xf32>
    %148 = vector.extract_strided_slice %145 {offsets = [0, 0], sizes = [2, 64], strides = [1, 1]} : vector<2x128xf32> to vector<2x64xf32>
    %149 = vector.extract_strided_slice %145 {offsets = [0, 64], sizes = [2, 64], strides = [1, 1]} : vector<2x128xf32> to vector<2x64xf32>
    %c4_65 = arith.constant 4 : index
    %c0_66 = arith.constant 0 : index
    %150 = vector.load %arg11[%c4_65, %c0_66] : memref<16x64xf32, #tpu.memory_space<vmem>>, vector<2x64xf32>
    %151 = arith.addf %147, %6 : vector<2x64xf32>
    %152 = arith.mulf %148, %151 : vector<2x64xf32>
    %153 = arith.addf %150, %152 : vector<2x64xf32>
    %154 = math.tanh %153 : vector<2x64xf32>
    %cst_67 = arith.constant 1.000000e+00 : f32
    %155 = vector.broadcast %cst_67 : f32 to vector<2x64xf32>
    %156 = arith.subf %155, %149 : vector<2x64xf32>
    %157 = arith.mulf %156, %154 : vector<2x64xf32>
    %158 = arith.mulf %149, %109 : vector<2x64xf32>
    %159 = arith.addf %157, %158 : vector<2x64xf32>
    %160 = tpu.concatenate %159, %135 in 1 : vector<2x64xf32>, vector<2x64xf32> -> vector<2x128xf32>
    %161 = arith.truncf %160 : vector<2x128xf32> to vector<2x128xbf16>
    %c0_68 = arith.constant 0 : index
    %c0_69 = arith.constant 0 : index
    %162 = vector.load %arg6[%c0_68, %c0_69] : memref<128x128xbf16, #tpu.memory_space<vmem>>, vector<128x128xbf16>
    %cst_70 = arith.constant dense<0.000000e+00> : vector<2x128xf32>
    %163 = tpu.matmul %161, %162, %cst_70 {dimension_numbers = #tpu.dot_dimension_numbers<[1], [0], [0], [1], [0, 0, 1, 1], [], []>} : vector<2x128xbf16>, vector<128x128xbf16>, vector<2x128xf32> -> vector<2x128xf32>
    %164 = arith.addf %163, %9 : vector<2x128xf32>
    %165 = arith.negf %164 : vector<2x128xf32>
    %166 = math.exp %165 : vector<2x128xf32>
    %cst_71 = arith.constant 1.000000e+00 : f32
    %167 = vector.broadcast %cst_71 : f32 to vector<2x128xf32>
    %168 = arith.addf %167, %166 : vector<2x128xf32>
    %169 = arith.divf %167, %168 : vector<2x128xf32>
    %c0_72 = arith.constant 0 : index
    %c0_73 = arith.constant 0 : index
    %170 = vector.load %arg7[%c0_72, %c0_73] : memref<128x128xbf16, #tpu.memory_space<vmem>>, vector<128x128xbf16>
    %cst_74 = arith.constant dense<0.000000e+00> : vector<2x128xf32>
    %171 = tpu.matmul %161, %170, %cst_74 {dimension_numbers = #tpu.dot_dimension_numbers<[1], [0], [0], [1], [0, 0, 1, 1], [], []>} : vector<2x128xbf16>, vector<128x128xbf16>, vector<2x128xf32> -> vector<2x128xf32>
    %172 = vector.extract_strided_slice %169 {offsets = [0, 0], sizes = [2, 64], strides = [1, 1]} : vector<2x128xf32> to vector<2x64xf32>
    %173 = vector.extract_strided_slice %169 {offsets = [0, 64], sizes = [2, 64], strides = [1, 1]} : vector<2x128xf32> to vector<2x64xf32>
    %174 = vector.extract_strided_slice %171 {offsets = [0, 0], sizes = [2, 64], strides = [1, 1]} : vector<2x128xf32> to vector<2x64xf32>
    %175 = arith.addf %174, %12 : vector<2x64xf32>
    %176 = vector.extract_strided_slice %171 {offsets = [0, 64], sizes = [2, 64], strides = [1, 1]} : vector<2x128xf32> to vector<2x64xf32>
    %177 = arith.addf %176, %15 : vector<2x64xf32>
    %178 = arith.mulf %172, %177 : vector<2x64xf32>
    %179 = arith.addf %175, %178 : vector<2x64xf32>
    %180 = math.tanh %179 : vector<2x64xf32>
    %cst_75 = arith.constant 1.000000e+00 : f32
    %181 = vector.broadcast %cst_75 : f32 to vector<2x64xf32>
    %182 = arith.subf %181, %173 : vector<2x64xf32>
    %183 = arith.mulf %182, %180 : vector<2x64xf32>
    %184 = arith.mulf %173, %135 : vector<2x64xf32>
    %185 = arith.addf %183, %184 : vector<2x64xf32>
    %186 = arith.truncf %159 : vector<2x64xf32> to vector<2x64xbf16>
    %c6 = arith.constant 6 : index
    %c0_76 = arith.constant 0 : index
    %187 = vector.load %arg10[%c6, %c0_76] : memref<16x128xf32, #tpu.memory_space<vmem>>, vector<2x128xf32>
    %c0_77 = arith.constant 0 : index
    %c0_78 = arith.constant 0 : index
    %188 = vector.load %arg4[%c0_77, %c0_78] : memref<64x128xbf16, #tpu.memory_space<vmem>>, vector<64x128xbf16>
    %cst_79 = arith.constant dense<0.000000e+00> : vector<2x128xf32>
    %189 = tpu.matmul %186, %188, %cst_79 {dimension_numbers = #tpu.dot_dimension_numbers<[1], [0], [0], [1], [0, 0, 1, 1], [], []>} : vector<2x64xbf16>, vector<64x128xbf16>, vector<2x128xf32> -> vector<2x128xf32>
    %190 = arith.addf %187, %189 : vector<2x128xf32>
    %191 = arith.negf %190 : vector<2x128xf32>
    %192 = math.exp %191 : vector<2x128xf32>
    %cst_80 = arith.constant 1.000000e+00 : f32
    %193 = vector.broadcast %cst_80 : f32 to vector<2x128xf32>
    %194 = arith.addf %193, %192 : vector<2x128xf32>
    %195 = arith.divf %193, %194 : vector<2x128xf32>
    %c0_81 = arith.constant 0 : index
    %c0_82 = arith.constant 0 : index
    %196 = vector.load %arg5[%c0_81, %c0_82] : memref<64x64xbf16, #tpu.memory_space<vmem>>, vector<64x64xbf16>
    %cst_83 = arith.constant dense<0.000000e+00> : vector<2x64xf32>
    %197 = tpu.matmul %186, %196, %cst_83 {dimension_numbers = #tpu.dot_dimension_numbers<[1], [0], [0], [1], [0, 0, 1, 1], [], []>} : vector<2x64xbf16>, vector<64x64xbf16>, vector<2x64xf32> -> vector<2x64xf32>
    %198 = vector.extract_strided_slice %195 {offsets = [0, 0], sizes = [2, 64], strides = [1, 1]} : vector<2x128xf32> to vector<2x64xf32>
    %199 = vector.extract_strided_slice %195 {offsets = [0, 64], sizes = [2, 64], strides = [1, 1]} : vector<2x128xf32> to vector<2x64xf32>
    %c6_84 = arith.constant 6 : index
    %c0_85 = arith.constant 0 : index
    %200 = vector.load %arg11[%c6_84, %c0_85] : memref<16x64xf32, #tpu.memory_space<vmem>>, vector<2x64xf32>
    %201 = arith.addf %197, %6 : vector<2x64xf32>
    %202 = arith.mulf %198, %201 : vector<2x64xf32>
    %203 = arith.addf %200, %202 : vector<2x64xf32>
    %204 = math.tanh %203 : vector<2x64xf32>
    %cst_86 = arith.constant 1.000000e+00 : f32
    %205 = vector.broadcast %cst_86 : f32 to vector<2x64xf32>
    %206 = arith.subf %205, %199 : vector<2x64xf32>
    %207 = arith.mulf %206, %204 : vector<2x64xf32>
    %208 = arith.mulf %199, %159 : vector<2x64xf32>
    %209 = arith.addf %207, %208 : vector<2x64xf32>
    %210 = tpu.concatenate %209, %185 in 1 : vector<2x64xf32>, vector<2x64xf32> -> vector<2x128xf32>
    %211 = arith.truncf %210 : vector<2x128xf32> to vector<2x128xbf16>
    %c0_87 = arith.constant 0 : index
    %c0_88 = arith.constant 0 : index
    %212 = vector.load %arg6[%c0_87, %c0_88] : memref<128x128xbf16, #tpu.memory_space<vmem>>, vector<128x128xbf16>
    %cst_89 = arith.constant dense<0.000000e+00> : vector<2x128xf32>
    %213 = tpu.matmul %211, %212, %cst_89 {dimension_numbers = #tpu.dot_dimension_numbers<[1], [0], [0], [1], [0, 0, 1, 1], [], []>} : vector<2x128xbf16>, vector<128x128xbf16>, vector<2x128xf32> -> vector<2x128xf32>
    %214 = arith.addf %213, %9 : vector<2x128xf32>
    %215 = arith.negf %214 : vector<2x128xf32>
    %216 = math.exp %215 : vector<2x128xf32>
    %cst_90 = arith.constant 1.000000e+00 : f32
    %217 = vector.broadcast %cst_90 : f32 to vector<2x128xf32>
    %218 = arith.addf %217, %216 : vector<2x128xf32>
    %219 = arith.divf %217, %218 : vector<2x128xf32>
    %c0_91 = arith.constant 0 : index
    %c0_92 = arith.constant 0 : index
    %220 = vector.load %arg7[%c0_91, %c0_92] : memref<128x128xbf16, #tpu.memory_space<vmem>>, vector<128x128xbf16>
    %cst_93 = arith.constant dense<0.000000e+00> : vector<2x128xf32>
    %221 = tpu.matmul %211, %220, %cst_93 {dimension_numbers = #tpu.dot_dimension_numbers<[1], [0], [0], [1], [0, 0, 1, 1], [], []>} : vector<2x128xbf16>, vector<128x128xbf16>, vector<2x128xf32> -> vector<2x128xf32>
    %222 = vector.extract_strided_slice %219 {offsets = [0, 0], sizes = [2, 64], strides = [1, 1]} : vector<2x128xf32> to vector<2x64xf32>
    %223 = vector.extract_strided_slice %219 {offsets = [0, 64], sizes = [2, 64], strides = [1, 1]} : vector<2x128xf32> to vector<2x64xf32>
    %224 = vector.extract_strided_slice %221 {offsets = [0, 0], sizes = [2, 64], strides = [1, 1]} : vector<2x128xf32> to vector<2x64xf32>
    %225 = arith.addf %224, %12 : vector<2x64xf32>
    %226 = vector.extract_strided_slice %221 {offsets = [0, 64], sizes = [2, 64], strides = [1, 1]} : vector<2x128xf32> to vector<2x64xf32>
    %227 = arith.addf %226, %15 : vector<2x64xf32>
    %228 = arith.mulf %222, %227 : vector<2x64xf32>
    %229 = arith.addf %225, %228 : vector<2x64xf32>
    %230 = math.tanh %229 : vector<2x64xf32>
    %cst_94 = arith.constant 1.000000e+00 : f32
    %231 = vector.broadcast %cst_94 : f32 to vector<2x64xf32>
    %232 = arith.subf %231, %223 : vector<2x64xf32>
    %233 = arith.mulf %232, %230 : vector<2x64xf32>
    %234 = arith.mulf %223, %185 : vector<2x64xf32>
    %235 = arith.addf %233, %234 : vector<2x64xf32>
    %236 = arith.truncf %209 : vector<2x64xf32> to vector<2x64xbf16>
    %c8 = arith.constant 8 : index
    %c0_95 = arith.constant 0 : index
    %237 = vector.load %arg10[%c8, %c0_95] : memref<16x128xf32, #tpu.memory_space<vmem>>, vector<2x128xf32>
    %c0_96 = arith.constant 0 : index
    %c0_97 = arith.constant 0 : index
    %238 = vector.load %arg4[%c0_96, %c0_97] : memref<64x128xbf16, #tpu.memory_space<vmem>>, vector<64x128xbf16>
    %cst_98 = arith.constant dense<0.000000e+00> : vector<2x128xf32>
    %239 = tpu.matmul %236, %238, %cst_98 {dimension_numbers = #tpu.dot_dimension_numbers<[1], [0], [0], [1], [0, 0, 1, 1], [], []>} : vector<2x64xbf16>, vector<64x128xbf16>, vector<2x128xf32> -> vector<2x128xf32>
    %240 = arith.addf %237, %239 : vector<2x128xf32>
    %241 = arith.negf %240 : vector<2x128xf32>
    %242 = math.exp %241 : vector<2x128xf32>
    %cst_99 = arith.constant 1.000000e+00 : f32
    %243 = vector.broadcast %cst_99 : f32 to vector<2x128xf32>
    %244 = arith.addf %243, %242 : vector<2x128xf32>
    %245 = arith.divf %243, %244 : vector<2x128xf32>
    %c0_100 = arith.constant 0 : index
    %c0_101 = arith.constant 0 : index
    %246 = vector.load %arg5[%c0_100, %c0_101] : memref<64x64xbf16, #tpu.memory_space<vmem>>, vector<64x64xbf16>
    %cst_102 = arith.constant dense<0.000000e+00> : vector<2x64xf32>
    %247 = tpu.matmul %236, %246, %cst_102 {dimension_numbers = #tpu.dot_dimension_numbers<[1], [0], [0], [1], [0, 0, 1, 1], [], []>} : vector<2x64xbf16>, vector<64x64xbf16>, vector<2x64xf32> -> vector<2x64xf32>
    %248 = vector.extract_strided_slice %245 {offsets = [0, 0], sizes = [2, 64], strides = [1, 1]} : vector<2x128xf32> to vector<2x64xf32>
    %249 = vector.extract_strided_slice %245 {offsets = [0, 64], sizes = [2, 64], strides = [1, 1]} : vector<2x128xf32> to vector<2x64xf32>
    %c8_103 = arith.constant 8 : index
    %c0_104 = arith.constant 0 : index
    %250 = vector.load %arg11[%c8_103, %c0_104] : memref<16x64xf32, #tpu.memory_space<vmem>>, vector<2x64xf32>
    %251 = arith.addf %247, %6 : vector<2x64xf32>
    %252 = arith.mulf %248, %251 : vector<2x64xf32>
    %253 = arith.addf %250, %252 : vector<2x64xf32>
    %254 = math.tanh %253 : vector<2x64xf32>
    %cst_105 = arith.constant 1.000000e+00 : f32
    %255 = vector.broadcast %cst_105 : f32 to vector<2x64xf32>
    %256 = arith.subf %255, %249 : vector<2x64xf32>
    %257 = arith.mulf %256, %254 : vector<2x64xf32>
    %258 = arith.mulf %249, %209 : vector<2x64xf32>
    %259 = arith.addf %257, %258 : vector<2x64xf32>
    %260 = tpu.concatenate %259, %235 in 1 : vector<2x64xf32>, vector<2x64xf32> -> vector<2x128xf32>
    %261 = arith.truncf %260 : vector<2x128xf32> to vector<2x128xbf16>
    %c0_106 = arith.constant 0 : index
    %c0_107 = arith.constant 0 : index
    %262 = vector.load %arg6[%c0_106, %c0_107] : memref<128x128xbf16, #tpu.memory_space<vmem>>, vector<128x128xbf16>
    %cst_108 = arith.constant dense<0.000000e+00> : vector<2x128xf32>
    %263 = tpu.matmul %261, %262, %cst_108 {dimension_numbers = #tpu.dot_dimension_numbers<[1], [0], [0], [1], [0, 0, 1, 1], [], []>} : vector<2x128xbf16>, vector<128x128xbf16>, vector<2x128xf32> -> vector<2x128xf32>
    %264 = arith.addf %263, %9 : vector<2x128xf32>
    %265 = arith.negf %264 : vector<2x128xf32>
    %266 = math.exp %265 : vector<2x128xf32>
    %cst_109 = arith.constant 1.000000e+00 : f32
    %267 = vector.broadcast %cst_109 : f32 to vector<2x128xf32>
    %268 = arith.addf %267, %266 : vector<2x128xf32>
    %269 = arith.divf %267, %268 : vector<2x128xf32>
    %c0_110 = arith.constant 0 : index
    %c0_111 = arith.constant 0 : index
    %270 = vector.load %arg7[%c0_110, %c0_111] : memref<128x128xbf16, #tpu.memory_space<vmem>>, vector<128x128xbf16>
    %cst_112 = arith.constant dense<0.000000e+00> : vector<2x128xf32>
    %271 = tpu.matmul %261, %270, %cst_112 {dimension_numbers = #tpu.dot_dimension_numbers<[1], [0], [0], [1], [0, 0, 1, 1], [], []>} : vector<2x128xbf16>, vector<128x128xbf16>, vector<2x128xf32> -> vector<2x128xf32>
    %272 = vector.extract_strided_slice %269 {offsets = [0, 0], sizes = [2, 64], strides = [1, 1]} : vector<2x128xf32> to vector<2x64xf32>
    %273 = vector.extract_strided_slice %269 {offsets = [0, 64], sizes = [2, 64], strides = [1, 1]} : vector<2x128xf32> to vector<2x64xf32>
    %274 = vector.extract_strided_slice %271 {offsets = [0, 0], sizes = [2, 64], strides = [1, 1]} : vector<2x128xf32> to vector<2x64xf32>
    %275 = arith.addf %274, %12 : vector<2x64xf32>
    %276 = vector.extract_strided_slice %271 {offsets = [0, 64], sizes = [2, 64], strides = [1, 1]} : vector<2x128xf32> to vector<2x64xf32>
    %277 = arith.addf %276, %15 : vector<2x64xf32>
    %278 = arith.mulf %272, %277 : vector<2x64xf32>
    %279 = arith.addf %275, %278 : vector<2x64xf32>
    %280 = math.tanh %279 : vector<2x64xf32>
    %cst_113 = arith.constant 1.000000e+00 : f32
    %281 = vector.broadcast %cst_113 : f32 to vector<2x64xf32>
    %282 = arith.subf %281, %273 : vector<2x64xf32>
    %283 = arith.mulf %282, %280 : vector<2x64xf32>
    %284 = arith.mulf %273, %235 : vector<2x64xf32>
    %285 = arith.addf %283, %284 : vector<2x64xf32>
    %286 = arith.truncf %259 : vector<2x64xf32> to vector<2x64xbf16>
    %c10 = arith.constant 10 : index
    %c0_114 = arith.constant 0 : index
    %287 = vector.load %arg10[%c10, %c0_114] : memref<16x128xf32, #tpu.memory_space<vmem>>, vector<2x128xf32>
    %c0_115 = arith.constant 0 : index
    %c0_116 = arith.constant 0 : index
    %288 = vector.load %arg4[%c0_115, %c0_116] : memref<64x128xbf16, #tpu.memory_space<vmem>>, vector<64x128xbf16>
    %cst_117 = arith.constant dense<0.000000e+00> : vector<2x128xf32>
    %289 = tpu.matmul %286, %288, %cst_117 {dimension_numbers = #tpu.dot_dimension_numbers<[1], [0], [0], [1], [0, 0, 1, 1], [], []>} : vector<2x64xbf16>, vector<64x128xbf16>, vector<2x128xf32> -> vector<2x128xf32>
    %290 = arith.addf %287, %289 : vector<2x128xf32>
    %291 = arith.negf %290 : vector<2x128xf32>
    %292 = math.exp %291 : vector<2x128xf32>
    %cst_118 = arith.constant 1.000000e+00 : f32
    %293 = vector.broadcast %cst_118 : f32 to vector<2x128xf32>
    %294 = arith.addf %293, %292 : vector<2x128xf32>
    %295 = arith.divf %293, %294 : vector<2x128xf32>
    %c0_119 = arith.constant 0 : index
    %c0_120 = arith.constant 0 : index
    %296 = vector.load %arg5[%c0_119, %c0_120] : memref<64x64xbf16, #tpu.memory_space<vmem>>, vector<64x64xbf16>
    %cst_121 = arith.constant dense<0.000000e+00> : vector<2x64xf32>
    %297 = tpu.matmul %286, %296, %cst_121 {dimension_numbers = #tpu.dot_dimension_numbers<[1], [0], [0], [1], [0, 0, 1, 1], [], []>} : vector<2x64xbf16>, vector<64x64xbf16>, vector<2x64xf32> -> vector<2x64xf32>
    %298 = vector.extract_strided_slice %295 {offsets = [0, 0], sizes = [2, 64], strides = [1, 1]} : vector<2x128xf32> to vector<2x64xf32>
    %299 = vector.extract_strided_slice %295 {offsets = [0, 64], sizes = [2, 64], strides = [1, 1]} : vector<2x128xf32> to vector<2x64xf32>
    %c10_122 = arith.constant 10 : index
    %c0_123 = arith.constant 0 : index
    %300 = vector.load %arg11[%c10_122, %c0_123] : memref<16x64xf32, #tpu.memory_space<vmem>>, vector<2x64xf32>
    %301 = arith.addf %297, %6 : vector<2x64xf32>
    %302 = arith.mulf %298, %301 : vector<2x64xf32>
    %303 = arith.addf %300, %302 : vector<2x64xf32>
    %304 = math.tanh %303 : vector<2x64xf32>
    %cst_124 = arith.constant 1.000000e+00 : f32
    %305 = vector.broadcast %cst_124 : f32 to vector<2x64xf32>
    %306 = arith.subf %305, %299 : vector<2x64xf32>
    %307 = arith.mulf %306, %304 : vector<2x64xf32>
    %308 = arith.mulf %299, %259 : vector<2x64xf32>
    %309 = arith.addf %307, %308 : vector<2x64xf32>
    %310 = tpu.concatenate %309, %285 in 1 : vector<2x64xf32>, vector<2x64xf32> -> vector<2x128xf32>
    %311 = arith.truncf %310 : vector<2x128xf32> to vector<2x128xbf16>
    %c0_125 = arith.constant 0 : index
    %c0_126 = arith.constant 0 : index
    %312 = vector.load %arg6[%c0_125, %c0_126] : memref<128x128xbf16, #tpu.memory_space<vmem>>, vector<128x128xbf16>
    %cst_127 = arith.constant dense<0.000000e+00> : vector<2x128xf32>
    %313 = tpu.matmul %311, %312, %cst_127 {dimension_numbers = #tpu.dot_dimension_numbers<[1], [0], [0], [1], [0, 0, 1, 1], [], []>} : vector<2x128xbf16>, vector<128x128xbf16>, vector<2x128xf32> -> vector<2x128xf32>
    %314 = arith.addf %313, %9 : vector<2x128xf32>
    %315 = arith.negf %314 : vector<2x128xf32>
    %316 = math.exp %315 : vector<2x128xf32>
    %cst_128 = arith.constant 1.000000e+00 : f32
    %317 = vector.broadcast %cst_128 : f32 to vector<2x128xf32>
    %318 = arith.addf %317, %316 : vector<2x128xf32>
    %319 = arith.divf %317, %318 : vector<2x128xf32>
    %c0_129 = arith.constant 0 : index
    %c0_130 = arith.constant 0 : index
    %320 = vector.load %arg7[%c0_129, %c0_130] : memref<128x128xbf16, #tpu.memory_space<vmem>>, vector<128x128xbf16>
    %cst_131 = arith.constant dense<0.000000e+00> : vector<2x128xf32>
    %321 = tpu.matmul %311, %320, %cst_131 {dimension_numbers = #tpu.dot_dimension_numbers<[1], [0], [0], [1], [0, 0, 1, 1], [], []>} : vector<2x128xbf16>, vector<128x128xbf16>, vector<2x128xf32> -> vector<2x128xf32>
    %322 = vector.extract_strided_slice %319 {offsets = [0, 0], sizes = [2, 64], strides = [1, 1]} : vector<2x128xf32> to vector<2x64xf32>
    %323 = vector.extract_strided_slice %319 {offsets = [0, 64], sizes = [2, 64], strides = [1, 1]} : vector<2x128xf32> to vector<2x64xf32>
    %324 = vector.extract_strided_slice %321 {offsets = [0, 0], sizes = [2, 64], strides = [1, 1]} : vector<2x128xf32> to vector<2x64xf32>
    %325 = arith.addf %324, %12 : vector<2x64xf32>
    %326 = vector.extract_strided_slice %321 {offsets = [0, 64], sizes = [2, 64], strides = [1, 1]} : vector<2x128xf32> to vector<2x64xf32>
    %327 = arith.addf %326, %15 : vector<2x64xf32>
    %328 = arith.mulf %322, %327 : vector<2x64xf32>
    %329 = arith.addf %325, %328 : vector<2x64xf32>
    %330 = math.tanh %329 : vector<2x64xf32>
    %cst_132 = arith.constant 1.000000e+00 : f32
    %331 = vector.broadcast %cst_132 : f32 to vector<2x64xf32>
    %332 = arith.subf %331, %323 : vector<2x64xf32>
    %333 = arith.mulf %332, %330 : vector<2x64xf32>
    %334 = arith.mulf %323, %285 : vector<2x64xf32>
    %335 = arith.addf %333, %334 : vector<2x64xf32>
    %336 = arith.truncf %309 : vector<2x64xf32> to vector<2x64xbf16>
    %c12 = arith.constant 12 : index
    %c0_133 = arith.constant 0 : index
    %337 = vector.load %arg10[%c12, %c0_133] : memref<16x128xf32, #tpu.memory_space<vmem>>, vector<2x128xf32>
    %c0_134 = arith.constant 0 : index
    %c0_135 = arith.constant 0 : index
    %338 = vector.load %arg4[%c0_134, %c0_135] : memref<64x128xbf16, #tpu.memory_space<vmem>>, vector<64x128xbf16>
    %cst_136 = arith.constant dense<0.000000e+00> : vector<2x128xf32>
    %339 = tpu.matmul %336, %338, %cst_136 {dimension_numbers = #tpu.dot_dimension_numbers<[1], [0], [0], [1], [0, 0, 1, 1], [], []>} : vector<2x64xbf16>, vector<64x128xbf16>, vector<2x128xf32> -> vector<2x128xf32>
    %340 = arith.addf %337, %339 : vector<2x128xf32>
    %341 = arith.negf %340 : vector<2x128xf32>
    %342 = math.exp %341 : vector<2x128xf32>
    %cst_137 = arith.constant 1.000000e+00 : f32
    %343 = vector.broadcast %cst_137 : f32 to vector<2x128xf32>
    %344 = arith.addf %343, %342 : vector<2x128xf32>
    %345 = arith.divf %343, %344 : vector<2x128xf32>
    %c0_138 = arith.constant 0 : index
    %c0_139 = arith.constant 0 : index
    %346 = vector.load %arg5[%c0_138, %c0_139] : memref<64x64xbf16, #tpu.memory_space<vmem>>, vector<64x64xbf16>
    %cst_140 = arith.constant dense<0.000000e+00> : vector<2x64xf32>
    %347 = tpu.matmul %336, %346, %cst_140 {dimension_numbers = #tpu.dot_dimension_numbers<[1], [0], [0], [1], [0, 0, 1, 1], [], []>} : vector<2x64xbf16>, vector<64x64xbf16>, vector<2x64xf32> -> vector<2x64xf32>
    %348 = vector.extract_strided_slice %345 {offsets = [0, 0], sizes = [2, 64], strides = [1, 1]} : vector<2x128xf32> to vector<2x64xf32>
    %349 = vector.extract_strided_slice %345 {offsets = [0, 64], sizes = [2, 64], strides = [1, 1]} : vector<2x128xf32> to vector<2x64xf32>
    %c12_141 = arith.constant 12 : index
    %c0_142 = arith.constant 0 : index
    %350 = vector.load %arg11[%c12_141, %c0_142] : memref<16x64xf32, #tpu.memory_space<vmem>>, vector<2x64xf32>
    %351 = arith.addf %347, %6 : vector<2x64xf32>
    %352 = arith.mulf %348, %351 : vector<2x64xf32>
    %353 = arith.addf %350, %352 : vector<2x64xf32>
    %354 = math.tanh %353 : vector<2x64xf32>
    %cst_143 = arith.constant 1.000000e+00 : f32
    %355 = vector.broadcast %cst_143 : f32 to vector<2x64xf32>
    %356 = arith.subf %355, %349 : vector<2x64xf32>
    %357 = arith.mulf %356, %354 : vector<2x64xf32>
    %358 = arith.mulf %349, %309 : vector<2x64xf32>
    %359 = arith.addf %357, %358 : vector<2x64xf32>
    %360 = tpu.concatenate %359, %335 in 1 : vector<2x64xf32>, vector<2x64xf32> -> vector<2x128xf32>
    %361 = arith.truncf %360 : vector<2x128xf32> to vector<2x128xbf16>
    %c0_144 = arith.constant 0 : index
    %c0_145 = arith.constant 0 : index
    %362 = vector.load %arg6[%c0_144, %c0_145] : memref<128x128xbf16, #tpu.memory_space<vmem>>, vector<128x128xbf16>
    %cst_146 = arith.constant dense<0.000000e+00> : vector<2x128xf32>
    %363 = tpu.matmul %361, %362, %cst_146 {dimension_numbers = #tpu.dot_dimension_numbers<[1], [0], [0], [1], [0, 0, 1, 1], [], []>} : vector<2x128xbf16>, vector<128x128xbf16>, vector<2x128xf32> -> vector<2x128xf32>
    %364 = arith.addf %363, %9 : vector<2x128xf32>
    %365 = arith.negf %364 : vector<2x128xf32>
    %366 = math.exp %365 : vector<2x128xf32>
    %cst_147 = arith.constant 1.000000e+00 : f32
    %367 = vector.broadcast %cst_147 : f32 to vector<2x128xf32>
    %368 = arith.addf %367, %366 : vector<2x128xf32>
    %369 = arith.divf %367, %368 : vector<2x128xf32>
    %c0_148 = arith.constant 0 : index
    %c0_149 = arith.constant 0 : index
    %370 = vector.load %arg7[%c0_148, %c0_149] : memref<128x128xbf16, #tpu.memory_space<vmem>>, vector<128x128xbf16>
    %cst_150 = arith.constant dense<0.000000e+00> : vector<2x128xf32>
    %371 = tpu.matmul %361, %370, %cst_150 {dimension_numbers = #tpu.dot_dimension_numbers<[1], [0], [0], [1], [0, 0, 1, 1], [], []>} : vector<2x128xbf16>, vector<128x128xbf16>, vector<2x128xf32> -> vector<2x128xf32>
    %372 = vector.extract_strided_slice %369 {offsets = [0, 0], sizes = [2, 64], strides = [1, 1]} : vector<2x128xf32> to vector<2x64xf32>
    %373 = vector.extract_strided_slice %369 {offsets = [0, 64], sizes = [2, 64], strides = [1, 1]} : vector<2x128xf32> to vector<2x64xf32>
    %374 = vector.extract_strided_slice %371 {offsets = [0, 0], sizes = [2, 64], strides = [1, 1]} : vector<2x128xf32> to vector<2x64xf32>
    %375 = arith.addf %374, %12 : vector<2x64xf32>
    %376 = vector.extract_strided_slice %371 {offsets = [0, 64], sizes = [2, 64], strides = [1, 1]} : vector<2x128xf32> to vector<2x64xf32>
    %377 = arith.addf %376, %15 : vector<2x64xf32>
    %378 = arith.mulf %372, %377 : vector<2x64xf32>
    %379 = arith.addf %375, %378 : vector<2x64xf32>
    %380 = math.tanh %379 : vector<2x64xf32>
    %cst_151 = arith.constant 1.000000e+00 : f32
    %381 = vector.broadcast %cst_151 : f32 to vector<2x64xf32>
    %382 = arith.subf %381, %373 : vector<2x64xf32>
    %383 = arith.mulf %382, %380 : vector<2x64xf32>
    %384 = arith.mulf %373, %335 : vector<2x64xf32>
    %385 = arith.addf %383, %384 : vector<2x64xf32>
    %386 = arith.truncf %359 : vector<2x64xf32> to vector<2x64xbf16>
    %c14 = arith.constant 14 : index
    %c0_152 = arith.constant 0 : index
    %387 = vector.load %arg10[%c14, %c0_152] : memref<16x128xf32, #tpu.memory_space<vmem>>, vector<2x128xf32>
    %c0_153 = arith.constant 0 : index
    %c0_154 = arith.constant 0 : index
    %388 = vector.load %arg4[%c0_153, %c0_154] : memref<64x128xbf16, #tpu.memory_space<vmem>>, vector<64x128xbf16>
    %cst_155 = arith.constant dense<0.000000e+00> : vector<2x128xf32>
    %389 = tpu.matmul %386, %388, %cst_155 {dimension_numbers = #tpu.dot_dimension_numbers<[1], [0], [0], [1], [0, 0, 1, 1], [], []>} : vector<2x64xbf16>, vector<64x128xbf16>, vector<2x128xf32> -> vector<2x128xf32>
    %390 = arith.addf %387, %389 : vector<2x128xf32>
    %391 = arith.negf %390 : vector<2x128xf32>
    %392 = math.exp %391 : vector<2x128xf32>
    %cst_156 = arith.constant 1.000000e+00 : f32
    %393 = vector.broadcast %cst_156 : f32 to vector<2x128xf32>
    %394 = arith.addf %393, %392 : vector<2x128xf32>
    %395 = arith.divf %393, %394 : vector<2x128xf32>
    %c0_157 = arith.constant 0 : index
    %c0_158 = arith.constant 0 : index
    %396 = vector.load %arg5[%c0_157, %c0_158] : memref<64x64xbf16, #tpu.memory_space<vmem>>, vector<64x64xbf16>
    %cst_159 = arith.constant dense<0.000000e+00> : vector<2x64xf32>
    %397 = tpu.matmul %386, %396, %cst_159 {dimension_numbers = #tpu.dot_dimension_numbers<[1], [0], [0], [1], [0, 0, 1, 1], [], []>} : vector<2x64xbf16>, vector<64x64xbf16>, vector<2x64xf32> -> vector<2x64xf32>
    %398 = vector.extract_strided_slice %395 {offsets = [0, 0], sizes = [2, 64], strides = [1, 1]} : vector<2x128xf32> to vector<2x64xf32>
    %399 = vector.extract_strided_slice %395 {offsets = [0, 64], sizes = [2, 64], strides = [1, 1]} : vector<2x128xf32> to vector<2x64xf32>
    %c14_160 = arith.constant 14 : index
    %c0_161 = arith.constant 0 : index
    %400 = vector.load %arg11[%c14_160, %c0_161] : memref<16x64xf32, #tpu.memory_space<vmem>>, vector<2x64xf32>
    %401 = arith.addf %397, %6 : vector<2x64xf32>
    %402 = arith.mulf %398, %401 : vector<2x64xf32>
    %403 = arith.addf %400, %402 : vector<2x64xf32>
    %404 = math.tanh %403 : vector<2x64xf32>
    %cst_162 = arith.constant 1.000000e+00 : f32
    %405 = vector.broadcast %cst_162 : f32 to vector<2x64xf32>
    %406 = arith.subf %405, %399 : vector<2x64xf32>
    %407 = arith.mulf %406, %404 : vector<2x64xf32>
    %408 = arith.mulf %399, %359 : vector<2x64xf32>
    %409 = arith.addf %407, %408 : vector<2x64xf32>
    %410 = tpu.concatenate %409, %385 in 1 : vector<2x64xf32>, vector<2x64xf32> -> vector<2x128xf32>
    %411 = arith.truncf %410 : vector<2x128xf32> to vector<2x128xbf16>
    %c0_163 = arith.constant 0 : index
    %c0_164 = arith.constant 0 : index
    %412 = vector.load %arg6[%c0_163, %c0_164] : memref<128x128xbf16, #tpu.memory_space<vmem>>, vector<128x128xbf16>
    %cst_165 = arith.constant dense<0.000000e+00> : vector<2x128xf32>
    %413 = tpu.matmul %411, %412, %cst_165 {dimension_numbers = #tpu.dot_dimension_numbers<[1], [0], [0], [1], [0, 0, 1, 1], [], []>} : vector<2x128xbf16>, vector<128x128xbf16>, vector<2x128xf32> -> vector<2x128xf32>
    %414 = arith.addf %413, %9 : vector<2x128xf32>
    %415 = arith.negf %414 : vector<2x128xf32>
    %416 = math.exp %415 : vector<2x128xf32>
    %cst_166 = arith.constant 1.000000e+00 : f32
    %417 = vector.broadcast %cst_166 : f32 to vector<2x128xf32>
    %418 = arith.addf %417, %416 : vector<2x128xf32>
    %419 = arith.divf %417, %418 : vector<2x128xf32>
    %c0_167 = arith.constant 0 : index
    %c0_168 = arith.constant 0 : index
    %420 = vector.load %arg7[%c0_167, %c0_168] : memref<128x128xbf16, #tpu.memory_space<vmem>>, vector<128x128xbf16>
    %cst_169 = arith.constant dense<0.000000e+00> : vector<2x128xf32>
    %421 = tpu.matmul %411, %420, %cst_169 {dimension_numbers = #tpu.dot_dimension_numbers<[1], [0], [0], [1], [0, 0, 1, 1], [], []>} : vector<2x128xbf16>, vector<128x128xbf16>, vector<2x128xf32> -> vector<2x128xf32>
    %422 = vector.extract_strided_slice %419 {offsets = [0, 0], sizes = [2, 64], strides = [1, 1]} : vector<2x128xf32> to vector<2x64xf32>
    %423 = vector.extract_strided_slice %419 {offsets = [0, 64], sizes = [2, 64], strides = [1, 1]} : vector<2x128xf32> to vector<2x64xf32>
    %424 = vector.extract_strided_slice %421 {offsets = [0, 0], sizes = [2, 64], strides = [1, 1]} : vector<2x128xf32> to vector<2x64xf32>
    %425 = arith.addf %424, %12 : vector<2x64xf32>
    %426 = vector.extract_strided_slice %421 {offsets = [0, 64], sizes = [2, 64], strides = [1, 1]} : vector<2x128xf32> to vector<2x64xf32>
    %427 = arith.addf %426, %15 : vector<2x64xf32>
    %428 = arith.mulf %422, %427 : vector<2x64xf32>
    %429 = arith.addf %425, %428 : vector<2x64xf32>
    %430 = math.tanh %429 : vector<2x64xf32>
    %cst_170 = arith.constant 1.000000e+00 : f32
    %431 = vector.broadcast %cst_170 : f32 to vector<2x64xf32>
    %432 = arith.subf %431, %423 : vector<2x64xf32>
    %433 = arith.mulf %432, %430 : vector<2x64xf32>
    %434 = arith.mulf %423, %385 : vector<2x64xf32>
    %435 = arith.addf %433, %434 : vector<2x64xf32>
    %c0_171 = arith.constant 0 : index
    %c0_172 = arith.constant 0 : index
    %c0_173 = arith.constant 0 : index
    %436 = vector.load %arg9[%c0_171, %c0_172, %c0_173] : memref<2x2x64xf32, #tpu.memory_space<vmem>>, vector<1x2x64xf32>
    %437 = vector.shape_cast %436 : vector<1x2x64xf32> to vector<2x64xf32>
    %438 = vector.shape_cast %409 : vector<2x64xf32> to vector<1x2x64xf32>
    tpu.vector_store %arg9[%c0_171, %c0_172, %c0_173], %438 {strides = array<i32>} : memref<2x2x64xf32, #tpu.memory_space<vmem>>, vector<1x2x64xf32>,
    %c1 = arith.constant 1 : index
    %c0_174 = arith.constant 0 : index
    %c0_175 = arith.constant 0 : index
    %439 = vector.load %arg9[%c1, %c0_174, %c0_175] : memref<2x2x64xf32, #tpu.memory_space<vmem>>, vector<1x2x64xf32>
    %440 = vector.shape_cast %439 : vector<1x2x64xf32> to vector<2x64xf32>
    %441 = vector.shape_cast %435 : vector<2x64xf32> to vector<1x2x64xf32>
    tpu.vector_store %arg9[%c1, %c0_174, %c0_175], %441 {strides = array<i32>} : memref<2x2x64xf32, #tpu.memory_space<vmem>>, vector<1x2x64xf32>,
    return
  }
}

</mosaic_0001>

<llo_original>
// kernel: encoder_forward.1
$region0: #{encoder_forward.1}
  #allocation0 [shape = 'u32[]', space=smem, size = 0x4, offset = 0x4, fixed_abs, tag = 'smem constant byte address 0x4 - core index']
  #allocation1 [shape = 'u32[144,128]{1,0:T(1,128)}', space=vmem, size = 0x12000, scoped, tag = 'internal scratch']
  #allocation2 [shape = 'f32[16,128]{1,0:T(8,128)}', space=vmem, size = 0x2000, scoped, tag = 'scratch operand']
  #allocation3 [shape = 'f32[16,64]{1,0:T(8,128)}', space=vmem, size = 0x2000, scoped, tag = 'scratch operand']
  %s0 = inlined_call_operand.vmem [shape: bf16[16,16], index: 0, kind: input, shape index: {}]
  %s1 = inlined_call_operand.hbm [shape: bf16[16,32], index: 1, kind: input, shape index: {}]
  %s2 = inlined_call_operand.vmem [shape: bf16[32,128], index: 2, kind: input, shape index: {}]
  %s3 = inlined_call_operand.vmem [shape: bf16[32,64], index: 3, kind: input, shape index: {}]
  %s4 = inlined_call_operand.vmem [shape: bf16[64,128], index: 4, kind: input, shape index: {}]
  %s5 = inlined_call_operand.hbm [shape: bf16[64,64], index: 5, kind: input, shape index: {}]
  %s6 = inlined_call_operand.hbm [shape: bf16[128,128], index: 6, kind: input, shape index: {}]
  %s7 = inlined_call_operand.hbm [shape: bf16[128,128], index: 7, kind: input, shape index: {}]
  %s8 = inlined_call_operand.hbm [shape: f32[8,128], index: 8, kind: input, shape index: {}]
  %s9 = inlined_call_operand.hbm [shape: f32[2,2,64], index: 9, kind: output, shape index: {}]
  %s10 = sld [smem:[#allocation0]]
  $region66: #{encoder_forward.1} parent=0
    _
  %s12 = ssub.s32 1, %s10
  %s13 = scalar_select 0, %s12, %s10
  $region1: #{encoder_forward.1} parent=0
    #allocation4 [shape = 'u8[4096]{0}', space=vmem, size = 0x1000, scoped, tag = 'input window, operand 1, single buffered']
    #allocation5 [shape = 's32[1]{0}', space=sflag, size = 0x4, scoped, tag = 'scoped memory for encoder_forward.1']
    #allocation6 [shape = 's32[1]{0}', space=sflag, size = 0x4, scoped, tag = 'scoped memory for encoder_forward.1']
    #allocation7 [shape = 'u8[16384]{0}', space=vmem, size = 0x4000, scoped, tag = 'input window, operand 5, single buffered']
    #allocation8 [shape = 's32[1]{0}', space=sflag, size = 0x4, scoped, tag = 'scoped memory for encoder_forward.1']
    #allocation9 [shape = 'u8[32768]{0}', space=vmem, size = 0x8000, scoped, tag = 'input window, operand 6, single buffered']
    #allocation10 [shape = 'u8[32768]{0}', space=vmem, size = 0x8000, scoped, tag = 'input window, operand 7, single buffered']
    #allocation11 [shape = 's32[1]{0}', space=sflag, size = 0x4, scoped, tag = 'scoped memory for encoder_forward.1']
    #allocation12 [shape = 'u8[4096]{0}', space=vmem, size = 0x1000, scoped, tag = 'input window, operand 8, single buffered']
    #allocation13 [shape = 'u8[2048]{0}', space=vmem, size = 0x800, scoped, tag = 'output window, operand 0, single buffered']
    %14 = vsyncpa [#allocation5], 0
    %15 = vsyncpa [#allocation8], 0
    %16 = vsyncpa [#allocation11], 0
    %17 = vsyncpa [#allocation6], 0
    // Predicated region
    $region2: #{encoder_forward.1} parent=1 // pred_check
      _
    $region3: #{encoder_forward.1} parent=1 // pred_check_branch
      %19 = sbr.rel (0) target = $region5
    $region4: #{encoder_forward.1} parent=1 // pred_region
      _
    $region5: #{encoder_forward.1} parent=1 // pred_fallthru
      _
    // Predicated region
    $region6: #{encoder_forward.1} parent=1 // pred_check
      _
    $region7: #{encoder_forward.1} parent=1 // pred_check_branch
      %21 = sbr.rel (0) target = $region9
    $region8: #{encoder_forward.1} parent=1 // pred_region
      %s23 = ssub.s32 128, 128
      %24 = vsyncadd [#allocation5], %s23
      %s25 = sshll.u32 [#allocation4], 4
      %s26 = int_to_ptr.vmem [resolvable:$true] %s25
      %31 = dma.hbm_to_vmem [thread:$0]  %s1, 128, %s26, [#allocation5], 64, 64, 4
    $region9: #{encoder_forward.1} parent=1 // pred_fallthru
      _
    // Predicated region
    $region10: #{encoder_forward.1} parent=1 // pred_check
      _
    $region11: #{encoder_forward.1} parent=1 // pred_check_branch
      %33 = sbr.rel (0) target = $region13
    $region12: #{encoder_forward.1} parent=1 // pred_region
      _
    $region13: #{encoder_forward.1} parent=1 // pred_fallthru
      _
    // Predicated region
    $region14: #{encoder_forward.1} parent=1 // pred_check
      _
    $region15: #{encoder_forward.1} parent=1 // pred_check_branch
      %35 = sbr.rel (0) target = $region17
    $region16: #{encoder_forward.1} parent=1 // pred_region
      _
    $region17: #{encoder_forward.1} parent=1 // pred_fallthru
      _
    // Predicated region
    $region18: #{encoder_forward.1} parent=1 // pred_check
      _
    $region19: #{encoder_forward.1} parent=1 // pred_check_branch
      %37 = sbr.rel (0) target = $region21
    $region20: #{encoder_forward.1} parent=1 // pred_region
      _
    $region21: #{encoder_forward.1} parent=1 // pred_fallthru
      _
    // Predicated region
    $region22: #{encoder_forward.1} parent=1 // pred_check
      _
    $region23: #{encoder_forward.1} parent=1 // pred_check_branch
      %39 = sbr.rel (0) target = $region25
    $region24: #{encoder_forward.1} parent=1 // pred_region
      %s41 = ssub.s32 512, 512
      %42 = vsyncadd [#allocation8], %s41
      %s43 = sshll.u32 [#allocation7], 4
      %s44 = int_to_ptr.vmem [resolvable:$true] %s43
      %49 = dma.hbm_to_vmem [thread:$0]  %s5, 512, %s44, [#allocation8], 64, 64, 4
    $region25: #{encoder_forward.1} parent=1 // pred_fallthru
      _
    // Predicated region
    $region26: #{encoder_forward.1} parent=1 // pred_check
      _
    $region27: #{encoder_forward.1} parent=1 // pred_check_branch
      %51 = sbr.rel (0) target = $region29
    $region28: #{encoder_forward.1} parent=1 // pred_region
      %s53 = ssub.s32 1024, 1024
      %54 = vsyncadd [#allocation8], %s53
      %s55 = sshll.u32 [#allocation9], 4
      %s56 = int_to_ptr.vmem [resolvable:$true] %s55
      %61 = dma.hbm_to_vmem [thread:$0]  %s6, 1024, %s56, [#allocation8], 64, 64, 4
    $region29: #{encoder_forward.1} parent=1 // pred_fallthru
      _
    // Predicated region
    $region30: #{encoder_forward.1} parent=1 // pred_check
      _
    $region31: #{encoder_forward.1} parent=1 // pred_check_branch
      %63 = sbr.rel (0) target = $region33
    $region32: #{encoder_forward.1} parent=1 // pred_region
      %s65 = ssub.s32 1024, 1024
      %66 = vsyncadd [#allocation11], %s65
      %s67 = sshll.u32 [#allocation10], 4
      %s68 = int_to_ptr.vmem [resolvable:$true] %s67
      %73 = dma.hbm_to_vmem [thread:$0]  %s7, 1024, %s68, [#allocation11], 64, 64, 4
    $region33: #{encoder_forward.1} parent=1 // pred_fallthru
      _
    // Predicated region
    $region34: #{encoder_forward.1} parent=1 // pred_check
      _
    $region35: #{encoder_forward.1} parent=1 // pred_check_branch
      %75 = sbr.rel (0) target = $region37
    $region36: #{encoder_forward.1} parent=1 // pred_region
      %s77 = ssub.s32 128, 128
      %78 = vsyncadd [#allocation11], %s77
      %s80 = sshll.u32 [#allocation12], 4
      %s81 = int_to_ptr.vmem [resolvable:$true] %s80
      %83 = dma.hbm_to_vmem [thread:$0]  %s8, 128, %s81, [#allocation11]
    $region37: #{encoder_forward.1} parent=1 // pred_fallthru
      _
    // Predicated region
    $region38: #{encoder_forward.1} parent=1 // pred_check
      _
    $region39: #{encoder_forward.1} parent=1 // pred_check_branch
      %85 = sbr.rel (0) target = $region41
    $region40: #{encoder_forward.1} parent=1 // pred_region
      %86 = dma.done [#allocation5], 128
    $region41: #{encoder_forward.1} parent=1 // pred_fallthru
      _
    // Predicated region
    $region42: #{encoder_forward.1} parent=1 // pred_check
      _
    $region43: #{encoder_forward.1} parent=1 // pred_check_branch
      %88 = sbr.rel (0) target = $region45
    $region44: #{encoder_forward.1} parent=1 // pred_region
      %89 = dma.done [#allocation8], 512
    $region45: #{encoder_forward.1} parent=1 // pred_fallthru
      _
    // Predicated region
    $region46: #{encoder_forward.1} parent=1 // pred_check
      _
    $region47: #{encoder_forward.1} parent=1 // pred_check_branch
      %91 = sbr.rel (0) target = $region49
    $region48: #{encoder_forward.1} parent=1 // pred_region
      %92 = dma.done [#allocation8], 1024
    $region49: #{encoder_forward.1} parent=1 // pred_fallthru
      _
    // Predicated region
    $region50: #{encoder_forward.1} parent=1 // pred_check
      _
    $region51: #{encoder_forward.1} parent=1 // pred_check_branch
      %94 = sbr.rel (0) target = $region53
    $region52: #{encoder_forward.1} parent=1 // pred_region
      %95 = dma.done [#allocation11], 1024
    $region53: #{encoder_forward.1} parent=1 // pred_fallthru
      _
    // Predicated region
    $region54: #{encoder_forward.1} parent=1 // pred_check
      _
    $region55: #{encoder_forward.1} parent=1 // pred_check_branch
      %97 = sbr.rel (0) target = $region57
    $region56: #{encoder_forward.1} parent=1 // pred_region
      %98 = dma.done [#allocation11], 128
    $region57: #{encoder_forward.1} parent=1 // pred_fallthru
      _
    %v100 = vld [vmem:[#allocation12] sm:$0xff]
    %v101 = vlaneseq
    %v102 = vshrl.u32 %v101, 7
    %v103 = vsub.s32 2, %v102
    %v104 = vrot.slane %v100, %v103
    %v105 = vlaneseq
    %v106 = vshrl.u32 %v105, 7
    %v107 = vsub.s32 3, %v106
    %v108 = vrot.slane %v100, %v107
    %v109 = vlaneseq
    %v110 = vshrl.u32 %v109, 7
    %v111 = vsub.s32 4, %v110
    %v112 = vrot.slane %v100, %v111
    %v113 = vld [vmem:[%s0] sm:$0xf]
    %v114 = vld [vmem:[%s0 + $0x4] sm:$0xf]
    %v115 = vld [vmem:[#allocation4] sm:$0xf]
    %v116 = vld [vmem:[#allocation4 + $0x4] sm:$0xf]
    %v117 = vlaneseq
    %v118 = vshrl.u32 %v117, 7
    %v119 = vsub.s32 0, %v118
    %v120 = vrot.slane %v100, %v119
    %v123 = vunpack.c.l.b16 %v113
    %v124 = vunpack.c.l.b16 %v114
    %v125 = vpack.c.b16 %v124, %v123
    %v128 = vunpack.c.l.b16 %v115
    %v129 = vunpack.c.l.b16 %v116
    %v130 = vpack.c.b16 %v129, %v128
    %vm132 = vcmask 130048
    %v134 = vsel %vm132, %v125, 0
    %136 = vmatprep.subr.bf16.mxu0 0
    %137 = vmatpush1.bf16.msra.mxu0 %v130
    %138 = vmatprep.subr.bf16.mxu0 0
    %139 = vmatpush1.bf16.msra.mxu0 0
    %140 = vmatprep.subr.bf16.mxu0 0
    %141 = vmatpush1.bf16.msra.mxu0 0
    %142 = vmatprep.subr.bf16.mxu0 0
    %143 = vmatpush1.bf16.msra.mxu0 0
    %144 = vmatprep.subr.bf16.mxu0 0
    %145 = vmatpush1.bf16.msra.mxu0 0
    %146 = vmatprep.subr.bf16.mxu0 0
    %147 = vmatpush1.bf16.msra.mxu0 0
    %148 = vmatprep.subr.bf16.mxu0 0
    %149 = vmatpush1.bf16.msra.mxu0 0
    %150 = vmatprep.subr.bf16.mxu0 0
    %151 = vmatpush1.bf16.msra.mxu0 0
    %152 = vmatprep.subr.bf16.mxu0 0
    %153 = vmatpush1.bf16.msra.mxu0 0
    %154 = vmatprep.subr.bf16.mxu0 0
    %155 = vmatpush1.bf16.msra.mxu0 0
    %156 = vmatprep.subr.bf16.mxu0 0
    %157 = vmatpush1.bf16.msra.mxu0 0
    %158 = vmatprep.subr.bf16.mxu0 0
    %159 = vmatpush1.bf16.msra.mxu0 0
    %160 = vmatprep.subr.bf16.mxu0 0
    %161 = vmatpush1.bf16.msra.mxu0 0
    %162 = vmatprep.subr.bf16.mxu0 0
    %163 = vmatpush1.bf16.msra.mxu0 0
    %164 = vmatprep.subr.bf16.mxu0 0
    %165 = vmatpush1.bf16.msra.mxu0 0
    %166 = vmatprep.subr.bf16.mxu0 0
    %167 = vmatpush1.bf16.msra.mxu0 0
    %168 = vmatprep.mubr.bf16.mxu0 0
    %169 = vmatmul.mubr.bf16.gmra.mrb[0].mxu0 %v134
    %v170 = vpop.f32.mrb[0].mxu0
    %v171 = vadd.f32 %v120, %v170
    %v172 = vpop.f32.mrb[0].mxu0
    %v173 = vpop.f32.mrb[0].mxu0
    %v174 = vadd.f32 %v120, %v173
    %v175 = vpop.f32.mrb[0].mxu0
    %176 = vdwg.mxu0
    %v177 = vmax.f32 %v171, 0.0
    %v178 = vmax.f32 %v174, 0.0
    %v179 = vpack.c.bf16 %v178, %v177
    %v180 = vld [vmem:[%s2] sm:$0xf]
    %v181 = vld [vmem:[%s2 + $0x4] sm:$0xf]
    %v182 = vld [vmem:[%s2 + $0x8] sm:$0xf]
    %v183 = vld [vmem:[%s2 + $0xc] sm:$0xf]
    %v184 = vlaneseq
    %v185 = vshrl.u32 %v184, 7
    %v186 = vsub.s32 1, %v185
    %v187 = vrot.slane %v100, %v186
    %v192 = vunpack.c.l.b16 %v180
    %v193 = vunpack.c.l.b16 %v181
    %v194 = vunpack.c.l.b16 %v182
    %v195 = vunpack.c.l.b16 %v183
    %v196 = vpack.c.b16 %v193, %v192
    %v197 = vpack.c.b16 %v195, %v194
    %vm200 = vcmask 261120
    %v202 = vsel %vm200, %v179, 0
    %204 = vmatprep.subr.bf16.mxu0 0
    %205 = vmatpush1.bf16.msra.mxu0 %v196
    %206 = vmatprep.subr.bf16.mxu0 0
    %207 = vmatpush1.bf16.msra.mxu0 %v197
    %208 = vmatprep.subr.bf16.mxu0 0
    %209 = vmatpush1.bf16.msra.mxu0 0
    %210 = vmatprep.subr.bf16.mxu0 0
    %211 = vmatpush1.bf16.msra.mxu0 0
    %212 = vmatprep.subr.bf16.mxu0 0
    %213 = vmatpush1.bf16.msra.mxu0 0
    %214 = vmatprep.subr.bf16.mxu0 0
    %215 = vmatpush1.bf16.msra.mxu0 0
    %216 = vmatprep.subr.bf16.mxu0 0
    %217 = vmatpush1.bf16.msra.mxu0 0
    %218 = vmatprep.subr.bf16.mxu0 0
    %219 = vmatpush1.bf16.msra.mxu0 0
    %220 = vmatprep.subr.bf16.mxu0 0
    %221 = vmatpush1.bf16.msra.mxu0 0
    %222 = vmatprep.subr.bf16.mxu0 0
    %223 = vmatpush1.bf16.msra.mxu0 0
    %224 = vmatprep.subr.bf16.mxu0 0
    %225 = vmatpush1.bf16.msra.mxu0 0
    %226 = vmatprep.subr.bf16.mxu0 0
    %227 = vmatpush1.bf16.msra.mxu0 0
    %228 = vmatprep.subr.bf16.mxu0 0
    %229 = vmatpush1.bf16.msra.mxu0 0
    %230 = vmatprep.subr.bf16.mxu0 0
    %231 = vmatpush1.bf16.msra.mxu0 0
    %232 = vmatprep.subr.bf16.mxu0 0
    %233 = vmatpush1.bf16.msra.mxu0 0
    %234 = vmatprep.subr.bf16.mxu0 0
    %235 = vmatpush1.bf16.msra.mxu0 0
    %236 = vmatprep.mubr.bf16.mxu0 0
    %237 = vmatmul.mubr.bf16.gmra.mrb[0].mxu0 %v202
    %v238 = vpop.f32.mrb[0].mxu0
    %v239 = vadd.f32 %v187, %v238
    %v240 = vpop.f32.mrb[0].mxu0
    %v241 = vpop.f32.mrb[0].mxu0
    %v242 = vadd.f32 %v187, %v241
    %v243 = vpop.f32.mrb[0].mxu0
    %244 = vdwg.mxu0
    %245 = vst [vmem:[#allocation2] sm:$0xff] %v239
    %246 = vst [vmem:[#allocation2 + $0x8] sm:$0xff] %v242
    %v247 = vld [vmem:[%s3] sm:$0xf]
    %v248 = vld [vmem:[%s3 + $0x4] sm:$0xf]
    %v249 = vld [vmem:[%s3 + $0x8] sm:$0xf]
    %v250 = vld [vmem:[%s3 + $0xc] sm:$0xf]
    %v255 = vunpack.c.l.b16 %v247
    %v256 = vunpack.c.l.b16 %v248
    %v257 = vunpack.c.l.b16 %v249
    %v258 = vunpack.c.l.b16 %v250
    %v259 = vpack.c.b16 %v256, %v255
    %v260 = vpack.c.b16 %v258, %v257
    %263 = vmatprep.subr.bf16.mxu0 0
    %264 = vmatpush1.bf16.msra.mxu0 %v259
    %265 = vmatprep.subr.bf16.mxu0 0
    %266 = vmatpush1.bf16.msra.mxu0 %v260
    %267 = vmatprep.subr.bf16.mxu0 0
    %268 = vmatpush1.bf16.msra.mxu0 0
    %269 = vmatprep.subr.bf16.mxu0 0
    %270 = vmatpush1.bf16.msra.mxu0 0
    %271 = vmatprep.subr.bf16.mxu0 0
    %272 = vmatpush1.bf16.msra.mxu0 0
    %273 = vmatprep.subr.bf16.mxu0 0
    %274 = vmatpush1.bf16.msra.mxu0 0
    %275 = vmatprep.subr.bf16.mxu0 0
    %276 = vmatpush1.bf16.msra.mxu0 0
    %277 = vmatprep.subr.bf16.mxu0 0
    %278 = vmatpush1.bf16.msra.mxu0 0
    %279 = vmatprep.subr.bf16.mxu0 0
    %280 = vmatpush1.bf16.msra.mxu0 0
    %281 = vmatprep.subr.bf16.mxu0 0
    %282 = vmatpush1.bf16.msra.mxu0 0
    %283 = vmatprep.subr.bf16.mxu0 0
    %284 = vmatpush1.bf16.msra.mxu0 0
    %285 = vmatprep.subr.bf16.mxu0 0
    %286 = vmatpush1.bf16.msra.mxu0 0
    %287 = vmatprep.subr.bf16.mxu0 0
    %288 = vmatpush1.bf16.msra.mxu0 0
    %289 = vmatprep.subr.bf16.mxu0 0
    %290 = vmatpush1.bf16.msra.mxu0 0
    %291 = vmatprep.subr.bf16.mxu0 0
    %292 = vmatpush1.bf16.msra.mxu0 0
    %293 = vmatprep.subr.bf16.mxu0 0
    %294 = vmatpush1.bf16.msra.mxu0 0
    %295 = vmatprep.mubr.bf16.mxu0 0
    %296 = vmatmul.mubr.bf16.gmra.mrb[0].mxu0 %v202
    %v297 = vpop.f32.mrb[0].mxu0
    %v298 = vadd.f32 %v104, %v297
    %v299 = vpop.f32.mrb[0].mxu0
    %v300 = vpop.f32.mrb[0].mxu0
    %v301 = vadd.f32 %v104, %v300
    %v302 = vpop.f32.mrb[0].mxu0
    %303 = vdwg.mxu0
    %vm304 = vcmask 523264
    %305 = vst.msk [vmem:[#allocation3] sm:$0xff] %vm304, %v298
    %306 = vst.msk [vmem:[#allocation3 + $0x8] sm:$0xff] %vm304, %v301
    %v307 = vld [vmem:[#allocation2] sm:$0x3]
    %v308 = vld [vmem:[%s4] sm:$0xf]
    %v309 = vld [vmem:[%s4 + $0x4] sm:$0xf]
    %v310 = vld [vmem:[%s4 + $0x8] sm:$0xf]
    %v311 = vld [vmem:[%s4 + $0xc] sm:$0xf]
    %v312 = vld [vmem:[%s4 + $0x10] sm:$0xf]
    %v313 = vld [vmem:[%s4 + $0x14] sm:$0xf]
    %v314 = vld [vmem:[%s4 + $0x18] sm:$0xf]
    %v315 = vld [vmem:[%s4 + $0x1c] sm:$0xf]
    %v324 = vunpack.c.l.b16 %v308
    %v325 = vunpack.c.l.b16 %v309
    %v326 = vunpack.c.l.b16 %v310
    %v327 = vunpack.c.l.b16 %v311
    %v328 = vunpack.c.l.b16 %v312
    %v329 = vunpack.c.l.b16 %v313
    %v330 = vunpack.c.l.b16 %v314
    %v331 = vunpack.c.l.b16 %v315
    %v332 = vpack.c.b16 %v325, %v324
    %v333 = vpack.c.b16 %v327, %v326
    %v334 = vpack.c.b16 %v329, %v328
    %v335 = vpack.c.b16 %v331, %v330
    %v341 = vsel %vm304, 0, 0
    %343 = vmatprep.subr.bf16.mxu0 0
    %344 = vmatpush1.bf16.msra.mxu0 %v332
    %345 = vmatprep.subr.bf16.mxu0 0
    %346 = vmatpush1.bf16.msra.mxu0 %v333
    %347 = vmatprep.subr.bf16.mxu0 0
    %348 = vmatpush1.bf16.msra.mxu0 %v334
    %349 = vmatprep.subr.bf16.mxu0 0
    %350 = vmatpush1.bf16.msra.mxu0 %v335
    %351 = vmatprep.subr.bf16.mxu0 0
    %352 = vmatpush1.bf16.msra.mxu0 0
    %353 = vmatprep.subr.bf16.mxu0 0
    %354 = vmatpush1.bf16.msra.mxu0 0
    %355 = vmatprep.subr.bf16.mxu0 0
    %356 = vmatpush1.bf16.msra.mxu0 0
    %357 = vmatprep.subr.bf16.mxu0 0
    %358 = vmatpush1.bf16.msra.mxu0 0
    %359 = vmatprep.subr.bf16.mxu0 0
    %360 = vmatpush1.bf16.msra.mxu0 0
    %361 = vmatprep.subr.bf16.mxu0 0
    %362 = vmatpush1.bf16.msra.mxu0 0
    %363 = vmatprep.subr.bf16.mxu0 0
    %364 = vmatpush1.bf16.msra.mxu0 0
    %365 = vmatprep.subr.bf16.mxu0 0
    %366 = vmatpush1.bf16.msra.mxu0 0
    %367 = vmatprep.subr.bf16.mxu0 0
    %368 = vmatpush1.bf16.msra.mxu0 0
    %369 = vmatprep.subr.bf16.mxu0 0
    %370 = vmatpush1.bf16.msra.mxu0 0
    %371 = vmatprep.subr.bf16.mxu0 0
    %372 = vmatpush1.bf16.msra.mxu0 0
    %373 = vmatprep.subr.bf16.mxu0 0
    %374 = vmatpush1.bf16.msra.mxu0 0
    %375 = vmatprep.mubr.bf16.mxu0 0
    %376 = vmatmul.mubr.bf16.gmra.mrb[0].mxu0 %v341
    %v377 = vpop.f32.mrb[0].mxu0
    %v378 = vadd.f32 0.0, %v377
    %v379 = vpop.f32.mrb[0].mxu0
    %v380 = vpop.f32.mrb[0].mxu0
    %v381 = vpop.f32.mrb[0].mxu0
    %382 = vdwg.mxu0
    %v383 = vadd.f32 %v307, %v378
    %v384 = vxor.u32 %v383, 2147483648
    %v385 = vmul.f32 %v384, 1.442695
    %v386 = vpow.pop %v385
    %v387 = vadd.f32 %v386, 1.0
    %v388 = vrcp.pop %v387
    %v389 = vmul.f32 1.0, %v388
    %v390 = vld [vmem:[#allocation7] sm:$0xf]
    %v391 = vld [vmem:[#allocation7 + $0x4] sm:$0xf]
    %v392 = vld [vmem:[#allocation7 + $0x8] sm:$0xf]
    %v393 = vld [vmem:[#allocation7 + $0xc] sm:$0xf]
    %v394 = vld [vmem:[#allocation7 + $0x10] sm:$0xf]
    %v395 = vld [vmem:[#allocation7 + $0x14] sm:$0xf]
    %v396 = vld [vmem:[#allocation7 + $0x18] sm:$0xf]
    %v397 = vld [vmem:[#allocation7 + $0x1c] sm:$0xf]
    %v398 = vld [vmem:[#allocation3] sm:$0x3]
    %v407 = vunpack.c.l.b16 %v390
    %v408 = vunpack.c.l.b16 %v391
    %v409 = vunpack.c.l.b16 %v392
    %v410 = vunpack.c.l.b16 %v393
    %v411 = vunpack.c.l.b16 %v394
    %v412 = vunpack.c.l.b16 %v395
    %v413 = vunpack.c.l.b16 %v396
    %v414 = vunpack.c.l.b16 %v397
    %v415 = vpack.c.b16 %v408, %v407
    %v416 = vpack.c.b16 %v410, %v409
    %v417 = vpack.c.b16 %v412, %v411
    %v418 = vpack.c.b16 %v414, %v413
    %424 = vrot.lane.b32.xlu0 %v104, 64
    %v425 = vpop.permute.xlu0 %424
    %427 = vmatprep.subr.bf16.mxu0 0
    %428 = vmatpush1.bf16.msra.mxu0 %v415
    %429 = vmatprep.subr.bf16.mxu0 0
    %430 = vmatpush1.bf16.msra.mxu0 %v416
    %431 = vmatprep.subr.bf16.mxu0 0
    %432 = vmatpush1.bf16.msra.mxu0 %v417
    %433 = vmatprep.subr.bf16.mxu0 0
    %434 = vmatpush1.bf16.msra.mxu0 %v418
    %435 = vmatprep.subr.bf16.mxu0 0
    %436 = vmatpush1.bf16.msra.mxu0 0
    %437 = vmatprep.subr.bf16.mxu0 0
    %438 = vmatpush1.bf16.msra.mxu0 0
    %439 = vmatprep.subr.bf16.mxu0 0
    %440 = vmatpush1.bf16.msra.mxu0 0
    %441 = vmatprep.subr.bf16.mxu0 0
    %442 = vmatpush1.bf16.msra.mxu0 0
    %443 = vmatprep.subr.bf16.mxu0 0
    %444 = vmatpush1.bf16.msra.mxu0 0
    %445 = vmatprep.subr.bf16.mxu0 0
    %446 = vmatpush1.bf16.msra.mxu0 0
    %447 = vmatprep.subr.bf16.mxu0 0
    %448 = vmatpush1.bf16.msra.mxu0 0
    %449 = vmatprep.subr.bf16.mxu0 0
    %450 = vmatpush1.bf16.msra.mxu0 0
    %451 = vmatprep.subr.bf16.mxu0 0
    %452 = vmatpush1.bf16.msra.mxu0 0
    %453 = vmatprep.subr.bf16.mxu0 0
    %454 = vmatpush1.bf16.msra.mxu0 0
    %455 = vmatprep.subr.bf16.mxu0 0
    %456 = vmatpush1.bf16.msra.mxu0 0
    %457 = vmatprep.subr.bf16.mxu0 0
    %458 = vmatpush1.bf16.msra.mxu0 0
    %459 = vmatprep.mubr.bf16.mxu0 0
    %460 = vmatmul.mubr.bf16.gmra.mrb[0].mxu0 %v341
    %v461 = vpop.f32.mrb[0].mxu0
    %v462 = vadd.f32 %v425, %v461
    %v463 = vpop.f32.mrb[0].mxu0
    %v464 = vpop.f32.mrb[0].mxu0
    %v465 = vpop.f32.mrb[0].mxu0
    %466 = vdwg.mxu0
    %v467 = vmul.f32 %v389, %v462
    %v468 = vadd.f32 %v398, %v467
    %v469 = vtanh.pop %v468
    %v470 = vsub.f32 1.0, %v389
    %472 = vrot.lane.b32.xlu0 %v469, 64
    %v473 = vpop.permute.xlu0 %472
    %v475 = vmul.f32 %v470, %v473
    %v476 = vmul.f32 %v389, 0.0
    %v477 = vadd.f32 %v475, %v476
    %479 = vrot.lane.b32.xlu0 %v477, 64
    %v480 = vpop.permute.xlu0 %479
    %v482 = vsel %vm304, %v480, 0.0
    %v483 = vpack.c.bf16 %v482, %v482
    %v484 = vld [vmem:[#allocation9] sm:$0xf]
    %v485 = vld [vmem:[#allocation9 + $0x4] sm:$0xf]
    %v486 = vld [vmem:[#allocation9 + $0x8] sm:$0xf]
    %v487 = vld [vmem:[#allocation9 + $0xc] sm:$0xf]
    %v488 = vld [vmem:[#allocation9 + $0x10] sm:$0xf]
    %v489 = vld [vmem:[#allocation9 + $0x14] sm:$0xf]
    %v490 = vld [vmem:[#allocation9 + $0x18] sm:$0xf]
    %v491 = vld [vmem:[#allocation9 + $0x1c] sm:$0xf]
    %v492 = vld [vmem:[#allocation9 + $0x20] sm:$0xf]
    %v493 = vld [vmem:[#allocation9 + $0x24] sm:$0xf]
    %v494 = vld [vmem:[#allocation9 + $0x28] sm:$0xf]
    %v495 = vld [vmem:[#allocation9 + $0x2c] sm:$0xf]
    %v496 = vld [vmem:[#allocation9 + $0x30] sm:$0xf]
    %v497 = vld [vmem:[#allocation9 + $0x34] sm:$0xf]
    %v498 = vld [vmem:[#allocation9 + $0x38] sm:$0xf]
    %v499 = vld [vmem:[#allocation9 + $0x3c] sm:$0xf]
    %v516 = vunpack.c.l.b16 %v484
    %v517 = vunpack.c.l.b16 %v485
    %v518 = vunpack.c.l.b16 %v486
    %v519 = vunpack.c.l.b16 %v487
    %v520 = vunpack.c.l.b16 %v488
    %v521 = vunpack.c.l.b16 %v489
    %v522 = vunpack.c.l.b16 %v490
    %v523 = vunpack.c.l.b16 %v491
    %v524 = vunpack.c.l.b16 %v492
    %v525 = vunpack.c.l.b16 %v493
    %v526 = vunpack.c.l.b16 %v494
    %v527 = vunpack.c.l.b16 %v495
    %v528 = vunpack.c.l.b16 %v496
    %v529 = vunpack.c.l.b16 %v497
    %v530 = vunpack.c.l.b16 %v498
    %v531 = vunpack.c.l.b16 %v499
    %v532 = vpack.c.b16 %v517, %v516
    %v533 = vpack.c.b16 %v519, %v518
    %v534 = vpack.c.b16 %v521, %v520
    %v535 = vpack.c.b16 %v523, %v522
    %v536 = vpack.c.b16 %v525, %v524
    %v537 = vpack.c.b16 %v527, %v526
    %v538 = vpack.c.b16 %v529, %v528
    %v539 = vpack.c.b16 %v531, %v530
    %548 = vmatprep.subr.bf16.mxu0 0
    %549 = vmatpush1.bf16.msra.mxu0 %v532
    %550 = vmatprep.subr.bf16.mxu0 0
    %551 = vmatpush1.bf16.msra.mxu0 %v533
    %552 = vmatprep.subr.bf16.mxu0 0
    %553 = vmatpush1.bf16.msra.mxu0 %v534
    %554 = vmatprep.subr.bf16.mxu0 0
    %555 = vmatpush1.bf16.msra.mxu0 %v535
    %556 = vmatprep.subr.bf16.mxu0 0
    %557 = vmatpush1.bf16.msra.mxu0 %v536
    %558 = vmatprep.subr.bf16.mxu0 0
    %559 = vmatpush1.bf16.msra.mxu0 %v537
    %560 = vmatprep.subr.bf16.mxu0 0
    %561 = vmatpush1.bf16.msra.mxu0 %v538
    %562 = vmatprep.subr.bf16.mxu0 0
    %563 = vmatpush1.bf16.msra.mxu0 %v539
    %564 = vmatprep.subr.bf16.mxu0 0
    %565 = vmatpush1.bf16.msra.mxu0 0
    %566 = vmatprep.subr.bf16.mxu0 0
    %567 = vmatpush1.bf16.msra.mxu0 0
    %568 = vmatprep.subr.bf16.mxu0 0
    %569 = vmatpush1.bf16.msra.mxu0 0
    %570 = vmatprep.subr.bf16.mxu0 0
    %571 = vmatpush1.bf16.msra.mxu0 0
    %572 = vmatprep.subr.bf16.mxu0 0
    %573 = vmatpush1.bf16.msra.mxu0 0
    %574 = vmatprep.subr.bf16.mxu0 0
    %575 = vmatpush1.bf16.msra.mxu0 0
    %576 = vmatprep.subr.bf16.mxu0 0
    %577 = vmatpush1.bf16.msra.mxu0 0
    %578 = vmatprep.subr.bf16.mxu0 0
    %579 = vmatpush1.bf16.msra.mxu0 0
    %580 = vmatprep.mubr.bf16.mxu0 0
    %581 = vmatmul.mubr.bf16.gmra.mrb[0].mxu0 %v483
    %v582 = vpop.f32.mrb[0].mxu0
    %v583 = vadd.f32 %v108, %v582
    %v584 = vpop.f32.mrb[0].mxu0
    %v585 = vpop.f32.mrb[0].mxu0
    %v586 = vpop.f32.mrb[0].mxu0
    %587 = vdwg.mxu0
    %v588 = vxor.u32 %v583, 2147483648
    %v589 = vmul.f32 %v588, 1.442695
    %v590 = vpow.pop %v589
    %v591 = vadd.f32 %v590, 1.0
    %v592 = vrcp.pop %v591
    %v593 = vmul.f32 1.0, %v592
    %v594 = vld [vmem:[#allocation10] sm:$0xf]
    %v595 = vld [vmem:[#allocation10 + $0x4] sm:$0xf]
    %v596 = vld [vmem:[#allocation10 + $0x8] sm:$0xf]
    %v597 = vld [vmem:[#allocation10 + $0xc] sm:$0xf]
    %v598 = vld [vmem:[#allocation10 + $0x10] sm:$0xf]
    %v599 = vld [vmem:[#allocation10 + $0x14] sm:$0xf]
    %v600 = vld [vmem:[#allocation10 + $0x18] sm:$0xf]
    %v601 = vld [vmem:[#allocation10 + $0x1c] sm:$0xf]
    %v602 = vld [vmem:[#allocation10 + $0x20] sm:$0xf]
    %v603 = vld [vmem:[#allocation10 + $0x24] sm:$0xf]
    %v604 = vld [vmem:[#allocation10 + $0x28] sm:$0xf]
    %v605 = vld [vmem:[#allocation10 + $0x2c] sm:$0xf]
    %v606 = vld [vmem:[#allocation10 + $0x30] sm:$0xf]
    %v607 = vld [vmem:[#allocation10 + $0x34] sm:$0xf]
    %v608 = vld [vmem:[#allocation10 + $0x38] sm:$0xf]
    %v609 = vld [vmem:[#allocation10 + $0x3c] sm:$0xf]
    %v626 = vunpack.c.l.b16 %v594
    %v627 = vunpack.c.l.b16 %v595
    %v628 = vunpack.c.l.b16 %v596
    %v629 = vunpack.c.l.b16 %v597
    %v630 = vunpack.c.l.b16 %v598
    %v631 = vunpack.c.l.b16 %v599
    %v632 = vunpack.c.l.b16 %v600
    %v633 = vunpack.c.l.b16 %v601
    %v634 = vunpack.c.l.b16 %v602
    %v635 = vunpack.c.l.b16 %v603
    %v636 = vunpack.c.l.b16 %v604
    %v637 = vunpack.c.l.b16 %v605
    %v638 = vunpack.c.l.b16 %v606
    %v639 = vunpack.c.l.b16 %v607
    %v640 = vunpack.c.l.b16 %v608
    %v641 = vunpack.c.l.b16 %v609
    %v642 = vpack.c.b16 %v627, %v626
    %v643 = vpack.c.b16 %v629, %v628
    %v644 = vpack.c.b16 %v631, %v630
    %v645 = vpack.c.b16 %v633, %v632
    %v646 = vpack.c.b16 %v635, %v634
    %v647 = vpack.c.b16 %v637, %v636
    %v648 = vpack.c.b16 %v639, %v638
    %v649 = vpack.c.b16 %v641, %v640
    %658 = vmatprep.subr.bf16.mxu0 0
    %659 = vmatpush1.bf16.msra.mxu0 %v642
    %660 = vmatprep.subr.bf16.mxu0 0
    %661 = vmatpush1.bf16.msra.mxu0 %v643
    %662 = vmatprep.subr.bf16.mxu0 0
    %663 = vmatpush1.bf16.msra.mxu0 %v644
    %664 = vmatprep.subr.bf16.mxu0 0
    %665 = vmatpush1.bf16.msra.mxu0 %v645
    %666 = vmatprep.subr.bf16.mxu0 0
    %667 = vmatpush1.bf16.msra.mxu0 %v646
    %668 = vmatprep.subr.bf16.mxu0 0
    %669 = vmatpush1.bf16.msra.mxu0 %v647
    %670 = vmatprep.subr.bf16.mxu0 0
    %671 = vmatpush1.bf16.msra.mxu0 %v648
    %672 = vmatprep.subr.bf16.mxu0 0
    %673 = vmatpush1.bf16.msra.mxu0 %v649
    %674 = vmatprep.subr.bf16.mxu0 0
    %675 = vmatpush1.bf16.msra.mxu0 0
    %676 = vmatprep.subr.bf16.mxu0 0
    %677 = vmatpush1.bf16.msra.mxu0 0
    %678 = vmatprep.subr.bf16.mxu0 0
    %679 = vmatpush1.bf16.msra.mxu0 0
    %680 = vmatprep.subr.bf16.mxu0 0
    %681 = vmatpush1.bf16.msra.mxu0 0
    %682 = vmatprep.subr.bf16.mxu0 0
    %683 = vmatpush1.bf16.msra.mxu0 0
    %684 = vmatprep.subr.bf16.mxu0 0
    %685 = vmatpush1.bf16.msra.mxu0 0
    %686 = vmatprep.subr.bf16.mxu0 0
    %687 = vmatpush1.bf16.msra.mxu0 0
    %688 = vmatprep.subr.bf16.mxu0 0
    %689 = vmatpush1.bf16.msra.mxu0 0
    %690 = vmatprep.mubr.bf16.mxu0 0
    %691 = vmatmul.mubr.bf16.gmra.mrb[0].mxu0 %v483
    %v692 = vpop.f32.mrb[0].mxu0
    %v693 = vadd.f32 0.0, %v692
    %v694 = vpop.f32.mrb[0].mxu0
    %v695 = vpop.f32.mrb[0].mxu0
    %v696 = vpop.f32.mrb[0].mxu0
    %697 = vdwg.mxu0
    %v698 = vadd.f32 %v693, %v112
    %700 = vrot.lane.b32.xlu0 %v698, 64
    %v701 = vpop.permute.xlu0 %700
    %v703 = vmul.f32 %v593, %v701
    %v704 = vadd.f32 %v698, %v703
    %v705 = vtanh.pop %v704
    %v706 = vsub.f32 1.0, %v593
    %708 = vrot.lane.b32.xlu0 %v705, 64
    %v709 = vpop.permute.xlu0 %708
    %v711 = vmul.f32 %v706, %v709
    %v712 = vmul.f32 %v593, 0.0
    %v713 = vadd.f32 %v711, %v712
    %v714 = vpack.c.bf16 %v477, %v477
    %v715 = vld [vmem:[#allocation2 + $0x2] sm:$0x3]
    %717 = vrot.lane.b32.xlu0 %v714, 64
    %v718 = vpop.permute.xlu0 %717
    %v720 = vsel %vm304, %v718, 0
    %722 = vmatprep.subr.bf16.mxu0 0
    %723 = vmatpush1.bf16.msra.mxu0 %v332
    %724 = vmatprep.subr.bf16.mxu0 0
    %725 = vmatpush1.bf16.msra.mxu0 %v333
    %726 = vmatprep.subr.bf16.mxu0 0
    %727 = vmatpush1.bf16.msra.mxu0 %v334
    %728 = vmatprep.subr.bf16.mxu0 0
    %729 = vmatpush1.bf16.msra.mxu0 %v335
    %730 = vmatprep.subr.bf16.mxu0 0
    %731 = vmatpush1.bf16.msra.mxu0 0
    %732 = vmatprep.subr.bf16.mxu0 0
    %733 = vmatpush1.bf16.msra.mxu0 0
    %734 = vmatprep.subr.bf16.mxu0 0
    %735 = vmatpush1.bf16.msra.mxu0 0
    %736 = vmatprep.subr.bf16.mxu0 0
    %737 = vmatpush1.bf16.msra.mxu0 0
    %738 = vmatprep.subr.bf16.mxu0 0
    %739 = vmatpush1.bf16.msra.mxu0 0
    %740 = vmatprep.subr.bf16.mxu0 0
    %741 = vmatpush1.bf16.msra.mxu0 0
    %742 = vmatprep.subr.bf16.mxu0 0
    %743 = vmatpush1.bf16.msra.mxu0 0
    %744 = vmatprep.subr.bf16.mxu0 0
    %745 = vmatpush1.bf16.msra.mxu0 0
    %746 = vmatprep.subr.bf16.mxu0 0
    %747 = vmatpush1.bf16.msra.mxu0 0
    %748 = vmatprep.subr.bf16.mxu0 0
    %749 = vmatpush1.bf16.msra.mxu0 0
    %750 = vmatprep.subr.bf16.mxu0 0
    %751 = vmatpush1.bf16.msra.mxu0 0
    %752 = vmatprep.subr.bf16.mxu0 0
    %753 = vmatpush1.bf16.msra.mxu0 0
    %754 = vmatprep.mubr.bf16.mxu0 0
    %755 = vmatmul.mubr.bf16.gmra.mrb[0].mxu0 %v720
    %v756 = vpop.f32.mrb[0].mxu0
    %v757 = vadd.f32 0.0, %v756
    %v758 = vpop.f32.mrb[0].mxu0
    %v759 = vpop.f32.mrb[0].mxu0
    %v760 = vpop.f32.mrb[0].mxu0
    %761 = vdwg.mxu0
    %v762 = vadd.f32 %v715, %v757
    %v763 = vxor.u32 %v762, 2147483648
    %v764 = vmul.f32 %v763, 1.442695
    %v765 = vpow.pop %v764
    %v766 = vadd.f32 %v765, 1.0
    %v767 = vrcp.pop %v766
    %v768 = vmul.f32 1.0, %v767
    %v769 = vld [vmem:[#allocation3 + $0x2] sm:$0x3]
    %770 = vmatprep.subr.bf16.mxu0 0
    %771 = vmatpush1.bf16.msra.mxu0 %v415
    %772 = vmatprep.subr.bf16.mxu0 0
    %773 = vmatpush1.bf16.msra.mxu0 %v416
    %774 = vmatprep.subr.bf16.mxu0 0
    %775 = vmatpush1.bf16.msra.mxu0 %v417
    %776 = vmatprep.subr.bf16.mxu0 0
    %777 = vmatpush1.bf16.msra.mxu0 %v418
    %778 = vmatprep.subr.bf16.mxu0 0
    %779 = vmatpush1.bf16.msra.mxu0 0
    %780 = vmatprep.subr.bf16.mxu0 0
    %781 = vmatpush1.bf16.msra.mxu0 0
    %782 = vmatprep.subr.bf16.mxu0 0
    %783 = vmatpush1.bf16.msra.mxu0 0
    %784 = vmatprep.subr.bf16.mxu0 0
    %785 = vmatpush1.bf16.msra.mxu0 0
    %786 = vmatprep.subr.bf16.mxu0 0
    %787 = vmatpush1.bf16.msra.mxu0 0
    %788 = vmatprep.subr.bf16.mxu0 0
    %789 = vmatpush1.bf16.msra.mxu0 0
    %790 = vmatprep.subr.bf16.mxu0 0
    %791 = vmatpush1.bf16.msra.mxu0 0
    %792 = vmatprep.subr.bf16.mxu0 0
    %793 = vmatpush1.bf16.msra.mxu0 0
    %794 = vmatprep.subr.bf16.mxu0 0
    %795 = vmatpush1.bf16.msra.mxu0 0
    %796 = vmatprep.subr.bf16.mxu0 0
    %797 = vmatpush1.bf16.msra.mxu0 0
    %798 = vmatprep.subr.bf16.mxu0 0
    %799 = vmatpush1.bf16.msra.mxu0 0
    %800 = vmatprep.subr.bf16.mxu0 0
    %801 = vmatpush1.bf16.msra.mxu0 0
    %802 = vmatprep.mubr.bf16.mxu0 0
    %803 = vmatmul.mubr.bf16.gmra.mrb[0].mxu0 %v720
    %v804 = vpop.f32.mrb[0].mxu0
    %v805 = vadd.f32 %v425, %v804
    %v806 = vpop.f32.mrb[0].mxu0
    %v807 = vpop.f32.mrb[0].mxu0
    %v808 = vpop.f32.mrb[0].mxu0
    %809 = vdwg.mxu0
    %v810 = vmul.f32 %v768, %v805
    %v811 = vadd.f32 %v769, %v810
    %v812 = vtanh.pop %v811
    %v813 = vsub.f32 1.0, %v768
    %815 = vrot.lane.b32.xlu0 %v812, 64
    %v816 = vpop.permute.xlu0 %815
    %v818 = vmul.f32 %v813, %v816
    %v819 = vmul.f32 %v768, %v477
    %v820 = vadd.f32 %v818, %v819
    %822 = vrot.lane.b32.xlu0 %v820, 64
    %v823 = vpop.permute.xlu0 %822
    %v825 = vsel %vm304, %v823, %v713
    %v826 = vpack.c.bf16 %v825, %v825
    %827 = vmatprep.subr.bf16.mxu0 0
    %828 = vmatpush1.bf16.msra.mxu0 %v532
    %829 = vmatprep.subr.bf16.mxu0 0
    %830 = vmatpush1.bf16.msra.mxu0 %v533
    %831 = vmatprep.subr.bf16.mxu0 0
    %832 = vmatpush1.bf16.msra.mxu0 %v534
    %833 = vmatprep.subr.bf16.mxu0 0
    %834 = vmatpush1.bf16.msra.mxu0 %v535
    %835 = vmatprep.subr.bf16.mxu0 0
    %836 = vmatpush1.bf16.msra.mxu0 %v536
    %837 = vmatprep.subr.bf16.mxu0 0
    %838 = vmatpush1.bf16.msra.mxu0 %v537
    %839 = vmatprep.subr.bf16.mxu0 0
    %840 = vmatpush1.bf16.msra.mxu0 %v538
    %841 = vmatprep.subr.bf16.mxu0 0
    %842 = vmatpush1.bf16.msra.mxu0 %v539
    %843 = vmatprep.subr.bf16.mxu0 0
    %844 = vmatpush1.bf16.msra.mxu0 0
    %845 = vmatprep.subr.bf16.mxu0 0
    %846 = vmatpush1.bf16.msra.mxu0 0
    %847 = vmatprep.subr.bf16.mxu0 0
    %848 = vmatpush1.bf16.msra.mxu0 0
    %849 = vmatprep.subr.bf16.mxu0 0
    %850 = vmatpush1.bf16.msra.mxu0 0
    %851 = vmatprep.subr.bf16.mxu0 0
    %852 = vmatpush1.bf16.msra.mxu0 0
    %853 = vmatprep.subr.bf16.mxu0 0
    %854 = vmatpush1.bf16.msra.mxu0 0
    %855 = vmatprep.subr.bf16.mxu0 0
    %856 = vmatpush1.bf16.msra.mxu0 0
    %857 = vmatprep.subr.bf16.mxu0 0
    %858 = vmatpush1.bf16.msra.mxu0 0
    %859 = vmatprep.mubr.bf16.mxu0 0
    %860 = vmatmul.mubr.bf16.gmra.mrb[0].mxu0 %v826
    %v861 = vpop.f32.mrb[0].mxu0
    %v862 = vadd.f32 %v108, %v861
    %v863 = vpop.f32.mrb[0].mxu0
    %v864 = vpop.f32.mrb[0].mxu0
    %v865 = vpop.f32.mrb[0].mxu0
    %866 = vdwg.mxu0
    %v867 = vxor.u32 %v862, 2147483648
    %v868 = vmul.f32 %v867, 1.442695
    %v869 = vpow.pop %v868
    %v870 = vadd.f32 %v869, 1.0
    %v871 = vrcp.pop %v870
    %v872 = vmul.f32 1.0, %v871
    %873 = vmatprep.subr.bf16.mxu0 0
    %874 = vmatpush1.bf16.msra.mxu0 %v642
    %875 = vmatprep.subr.bf16.mxu0 0
    %876 = vmatpush1.bf16.msra.mxu0 %v643
    %877 = vmatprep.subr.bf16.mxu0 0
    %878 = vmatpush1.bf16.msra.mxu0 %v644
    %879 = vmatprep.subr.bf16.mxu0 0
    %880 = vmatpush1.bf16.msra.mxu0 %v645
    %881 = vmatprep.subr.bf16.mxu0 0
    %882 = vmatpush1.bf16.msra.mxu0 %v646
    %883 = vmatprep.subr.bf16.mxu0 0
    %884 = vmatpush1.bf16.msra.mxu0 %v647
    %885 = vmatprep.subr.bf16.mxu0 0
    %886 = vmatpush1.bf16.msra.mxu0 %v648
    %887 = vmatprep.subr.bf16.mxu0 0
    %888 = vmatpush1.bf16.msra.mxu0 %v649
    %889 = vmatprep.subr.bf16.mxu0 0
    %890 = vmatpush1.bf16.msra.mxu0 0
    %891 = vmatprep.subr.bf16.mxu0 0
    %892 = vmatpush1.bf16.msra.mxu0 0
    %893 = vmatprep.subr.bf16.mxu0 0
    %894 = vmatpush1.bf16.msra.mxu0 0
    %895 = vmatprep.subr.bf16.mxu0 0
    %896 = vmatpush1.bf16.msra.mxu0 0
    %897 = vmatprep.subr.bf16.mxu0 0
    %898 = vmatpush1.bf16.msra.mxu0 0
    %899 = vmatprep.subr.bf16.mxu0 0
    %900 = vmatpush1.bf16.msra.mxu0 0
    %901 = vmatprep.subr.bf16.mxu0 0
    %902 = vmatpush1.bf16.msra.mxu0 0
    %903 = vmatprep.subr.bf16.mxu0 0
    %904 = vmatpush1.bf16.msra.mxu0 0
    %905 = vmatprep.mubr.bf16.mxu0 0
    %906 = vmatmul.mubr.bf16.gmra.mrb[0].mxu0 %v826
    %v907 = vpop.f32.mrb[0].mxu0
    %v908 = vadd.f32 0.0, %v907
    %v909 = vpop.f32.mrb[0].mxu0
    %v910 = vpop.f32.mrb[0].mxu0
    %v911 = vpop.f32.mrb[0].mxu0
    %912 = vdwg.mxu0
    %v913 = vadd.f32 %v908, %v112
    %915 = vrot.lane.b32.xlu0 %v913, 64
    %v916 = vpop.permute.xlu0 %915
    %v918 = vmul.f32 %v872, %v916
    %v919 = vadd.f32 %v913, %v918
    %v920 = vtanh.pop %v919
    %v921 = vsub.f32 1.0, %v872
    %923 = vrot.lane.b32.xlu0 %v920, 64
    %v924 = vpop.permute.xlu0 %923
    %v926 = vmul.f32 %v921, %v924
    %v927 = vmul.f32 %v872, %v713
    %v928 = vadd.f32 %v926, %v927
    %v929 = vpack.c.bf16 %v820, %v820
    %v930 = vld [vmem:[#allocation2 + $0x4] sm:$0x3]
    %932 = vrot.lane.b32.xlu0 %v929, 64
    %v933 = vpop.permute.xlu0 %932
    %v935 = vsel %vm304, %v933, 0
    %937 = vmatprep.subr.bf16.mxu0 0
    %938 = vmatpush1.bf16.msra.mxu0 %v332
    %939 = vmatprep.subr.bf16.mxu0 0
    %940 = vmatpush1.bf16.msra.mxu0 %v333
    %941 = vmatprep.subr.bf16.mxu0 0
    %942 = vmatpush1.bf16.msra.mxu0 %v334
    %943 = vmatprep.subr.bf16.mxu0 0
    %944 = vmatpush1.bf16.msra.mxu0 %v335
    %945 = vmatprep.subr.bf16.mxu0 0
    %946 = vmatpush1.bf16.msra.mxu0 0
    %947 = vmatprep.subr.bf16.mxu0 0
    %948 = vmatpush1.bf16.msra.mxu0 0
    %949 = vmatprep.subr.bf16.mxu0 0
    %950 = vmatpush1.bf16.msra.mxu0 0
    %951 = vmatprep.subr.bf16.mxu0 0
    %952 = vmatpush1.bf16.msra.mxu0 0
    %953 = vmatprep.subr.bf16.mxu0 0
    %954 = vmatpush1.bf16.msra.mxu0 0
    %955 = vmatprep.subr.bf16.mxu0 0
    %956 = vmatpush1.bf16.msra.mxu0 0
    %957 = vmatprep.subr.bf16.mxu0 0
    %958 = vmatpush1.bf16.msra.mxu0 0
    %959 = vmatprep.subr.bf16.mxu0 0
    %960 = vmatpush1.bf16.msra.mxu0 0
    %961 = vmatprep.subr.bf16.mxu0 0
    %962 = vmatpush1.bf16.msra.mxu0 0
    %963 = vmatprep.subr.bf16.mxu0 0
    %964 = vmatpush1.bf16.msra.mxu0 0
    %965 = vmatprep.subr.bf16.mxu0 0
    %966 = vmatpush1.bf16.msra.mxu0 0
    %967 = vmatprep.subr.bf16.mxu0 0
    %968 = vmatpush1.bf16.msra.mxu0 0
    %969 = vmatprep.mubr.bf16.mxu0 0
    %970 = vmatmul.mubr.bf16.gmra.mrb[0].mxu0 %v935
    %v971 = vpop.f32.mrb[0].mxu0
    %v972 = vadd.f32 0.0, %v971
    %v973 = vpop.f32.mrb[0].mxu0
    %v974 = vpop.f32.mrb[0].mxu0
    %v975 = vpop.f32.mrb[0].mxu0
    %976 = vdwg.mxu0
    %v977 = vadd.f32 %v930, %v972
    %v978 = vxor.u32 %v977, 2147483648
    %v979 = vmul.f32 %v978, 1.442695
    %v980 = vpow.pop %v979
    %v981 = vadd.f32 %v980, 1.0
    %v982 = vrcp.pop %v981
    %v983 = vmul.f32 1.0, %v982
    %v984 = vld [vmem:[#allocation3 + $0x4] sm:$0x3]
    %985 = vmatprep.subr.bf16.mxu0 0
    %986 = vmatpush1.bf16.msra.mxu0 %v415
    %987 = vmatprep.subr.bf16.mxu0 0
    %988 = vmatpush1.bf16.msra.mxu0 %v416
    %989 = vmatprep.subr.bf16.mxu0 0
    %990 = vmatpush1.bf16.msra.mxu0 %v417
    %991 = vmatprep.subr.bf16.mxu0 0
    %992 = vmatpush1.bf16.msra.mxu0 %v418
    %993 = vmatprep.subr.bf16.mxu0 0
    %994 = vmatpush1.bf16.msra.mxu0 0
    %995 = vmatprep.subr.bf16.mxu0 0
    %996 = vmatpush1.bf16.msra.mxu0 0
    %997 = vmatprep.subr.bf16.mxu0 0
    %998 = vmatpush1.bf16.msra.mxu0 0
    %999 = vmatprep.subr.bf16.mxu0 0
    %1000 = vmatpush1.bf16.msra.mxu0 0
    %1001 = vmatprep.subr.bf16.mxu0 0
    %1002 = vmatpush1.bf16.msra.mxu0 0
    %1003 = vmatprep.subr.bf16.mxu0 0
    %1004 = vmatpush1.bf16.msra.mxu0 0
    %1005 = vmatprep.subr.bf16.mxu0 0
    %1006 = vmatpush1.bf16.msra.mxu0 0
    %1007 = vmatprep.subr.bf16.mxu0 0
    %1008 = vmatpush1.bf16.msra.mxu0 0
    %1009 = vmatprep.subr.bf16.mxu0 0
    %1010 = vmatpush1.bf16.msra.mxu0 0
    %1011 = vmatprep.subr.bf16.mxu0 0
    %1012 = vmatpush1.bf16.msra.mxu0 0
    %1013 = vmatprep.subr.bf16.mxu0 0
    %1014 = vmatpush1.bf16.msra.mxu0 0
    %1015 = vmatprep.subr.bf16.mxu0 0
    %1016 = vmatpush1.bf16.msra.mxu0 0
    %1017 = vmatprep.mubr.bf16.mxu0 0
    %1018 = vmatmul.mubr.bf16.gmra.mrb[0].mxu0 %v935
    %v1019 = vpop.f32.mrb[0].mxu0
    %v1020 = vadd.f32 %v425, %v1019
    %v1021 = vpop.f32.mrb[0].mxu0
    %v1022 = vpop.f32.mrb[0].mxu0
    %v1023 = vpop.f32.mrb[0].mxu0
    %1024 = vdwg.mxu0
    %v1025 = vmul.f32 %v983, %v1020
    %v1026 = vadd.f32 %v984, %v1025
    %v1027 = vtanh.pop %v1026
    %v1028 = vsub.f32 1.0, %v983
    %1030 = vrot.lane.b32.xlu0 %v1027, 64
    %v1031 = vpop.permute.xlu0 %1030
    %v1033 = vmul.f32 %v1028, %v1031
    %v1034 = vmul.f32 %v983, %v820
    %v1035 = vadd.f32 %v1033, %v1034
    %1037 = vrot.lane.b32.xlu0 %v1035, 64
    %v1038 = vpop.permute.xlu0 %1037
    %v1040 = vsel %vm304, %v1038, %v928
    %v1041 = vpack.c.bf16 %v1040, %v1040
    %1042 = vmatprep.subr.bf16.mxu0 0
    %1043 = vmatpush1.bf16.msra.mxu0 %v532
    %1044 = vmatprep.subr.bf16.mxu0 0
    %1045 = vmatpush1.bf16.msra.mxu0 %v533
    %1046 = vmatprep.subr.bf16.mxu0 0
    %1047 = vmatpush1.bf16.msra.mxu0 %v534
    %1048 = vmatprep.subr.bf16.mxu0 0
    %1049 = vmatpush1.bf16.msra.mxu0 %v535
    %1050 = vmatprep.subr.bf16.mxu0 0
    %1051 = vmatpush1.bf16.msra.mxu0 %v536
    %1052 = vmatprep.subr.bf16.mxu0 0
    %1053 = vmatpush1.bf16.msra.mxu0 %v537
    %1054 = vmatprep.subr.bf16.mxu0 0
    %1055 = vmatpush1.bf16.msra.mxu0 %v538
    %1056 = vmatprep.subr.bf16.mxu0 0
    %1057 = vmatpush1.bf16.msra.mxu0 %v539
    %1058 = vmatprep.subr.bf16.mxu0 0
    %1059 = vmatpush1.bf16.msra.mxu0 0
    %1060 = vmatprep.subr.bf16.mxu0 0
    %1061 = vmatpush1.bf16.msra.mxu0 0
    %1062 = vmatprep.subr.bf16.mxu0 0
    %1063 = vmatpush1.bf16.msra.mxu0 0
    %1064 = vmatprep.subr.bf16.mxu0 0
    %1065 = vmatpush1.bf16.msra.mxu0 0
    %1066 = vmatprep.subr.bf16.mxu0 0
    %1067 = vmatpush1.bf16.msra.mxu0 0
    %1068 = vmatprep.subr.bf16.mxu0 0
    %1069 = vmatpush1.bf16.msra.mxu0 0
    %1070 = vmatprep.subr.bf16.mxu0 0
    %1071 = vmatpush1.bf16.msra.mxu0 0
    %1072 = vmatprep.subr.bf16.mxu0 0
    %1073 = vmatpush1.bf16.msra.mxu0 0
    %1074 = vmatprep.mubr.bf16.mxu0 0
    %1075 = vmatmul.mubr.bf16.gmra.mrb[0].mxu0 %v1041
    %v1076 = vpop.f32.mrb[0].mxu0
    %v1077 = vadd.f32 %v108, %v1076
    %v1078 = vpop.f32.mrb[0].mxu0
    %v1079 = vpop.f32.mrb[0].mxu0
    %v1080 = vpop.f32.mrb[0].mxu0
    %1081 = vdwg.mxu0
    %v1082 = vxor.u32 %v1077, 2147483648
    %v1083 = vmul.f32 %v1082, 1.442695
    %v1084 = vpow.pop %v1083
    %v1085 = vadd.f32 %v1084, 1.0
    %v1086 = vrcp.pop %v1085
    %v1087 = vmul.f32 1.0, %v1086
    %1088 = vmatprep.subr.bf16.mxu0 0
    %1089 = vmatpush1.bf16.msra.mxu0 %v642
    %1090 = vmatprep.subr.bf16.mxu0 0
    %1091 = vmatpush1.bf16.msra.mxu0 %v643
    %1092 = vmatprep.subr.bf16.mxu0 0
    %1093 = vmatpush1.bf16.msra.mxu0 %v644
    %1094 = vmatprep.subr.bf16.mxu0 0
    %1095 = vmatpush1.bf16.msra.mxu0 %v645
    %1096 = vmatprep.subr.bf16.mxu0 0
    %1097 = vmatpush1.bf16.msra.mxu0 %v646
    %1098 = vmatprep.subr.bf16.mxu0 0
    %1099 = vmatpush1.bf16.msra.mxu0 %v647
    %1100 = vmatprep.subr.bf16.mxu0 0
    %1101 = vmatpush1.bf16.msra.mxu0 %v648
    %1102 = vmatprep.subr.bf16.mxu0 0
    %1103 = vmatpush1.bf16.msra.mxu0 %v649
    %1104 = vmatprep.subr.bf16.mxu0 0
    %1105 = vmatpush1.bf16.msra.mxu0 0
    %1106 = vmatprep.subr.bf16.mxu0 0
    %1107 = vmatpush1.bf16.msra.mxu0 0
    %1108 = vmatprep.subr.bf16.mxu0 0
    %1109 = vmatpush1.bf16.msra.mxu0 0
    %1110 = vmatprep.subr.bf16.mxu0 0
    %1111 = vmatpush1.bf16.msra.mxu0 0
    %1112 = vmatprep.subr.bf16.mxu0 0
    %1113 = vmatpush1.bf16.msra.mxu0 0
    %1114 = vmatprep.subr.bf16.mxu0 0
    %1115 = vmatpush1.bf16.msra.mxu0 0
    %1116 = vmatprep.subr.bf16.mxu0 0
    %1117 = vmatpush1.bf16.msra.mxu0 0
    %1118 = vmatprep.subr.bf16.mxu0 0
    %1119 = vmatpush1.bf16.msra.mxu0 0
    %1120 = vmatprep.mubr.bf16.mxu0 0
    %1121 = vmatmul.mubr.bf16.gmra.mrb[0].mxu0 %v1041
    %v1122 = vpop.f32.mrb[0].mxu0
    %v1123 = vadd.f32 0.0, %v1122
    %v1124 = vpop.f32.mrb[0].mxu0
    %v1125 = vpop.f32.mrb[0].mxu0
    %v1126 = vpop.f32.mrb[0].mxu0
    %1127 = vdwg.mxu0
    %v1128 = vadd.f32 %v1123, %v112
    %1130 = vrot.lane.b32.xlu0 %v1128, 64
    %v1131 = vpop.permute.xlu0 %1130
    %v1133 = vmul.f32 %v1087, %v1131
    %v1134 = vadd.f32 %v1128, %v1133
    %v1135 = vtanh.pop %v1134
    %v1136 = vsub.f32 1.0, %v1087
    %1138 = vrot.lane.b32.xlu0 %v1135, 64
    %v1139 = vpop.permute.xlu0 %1138
    %v1141 = vmul.f32 %v1136, %v1139
    %v1142 = vmul.f32 %v1087, %v928
    %v1143 = vadd.f32 %v1141, %v1142
    %v1144 = vpack.c.bf16 %v1035, %v1035
    %v1145 = vld [vmem:[#allocation2 + $0x6] sm:$0x3]
    %1147 = vrot.lane.b32.xlu0 %v1144, 64
    %v1148 = vpop.permute.xlu0 %1147
    %v1150 = vsel %vm304, %v1148, 0
    %1152 = vmatprep.subr.bf16.mxu0 0
    %1153 = vmatpush1.bf16.msra.mxu0 %v332
    %1154 = vmatprep.subr.bf16.mxu0 0
    %1155 = vmatpush1.bf16.msra.mxu0 %v333
    %1156 = vmatprep.subr.bf16.mxu0 0
    %1157 = vmatpush1.bf16.msra.mxu0 %v334
    %1158 = vmatprep.subr.bf16.mxu0 0
    %1159 = vmatpush1.bf16.msra.mxu0 %v335
    %1160 = vmatprep.subr.bf16.mxu0 0
    %1161 = vmatpush1.bf16.msra.mxu0 0
    %1162 = vmatprep.subr.bf16.mxu0 0
    %1163 = vmatpush1.bf16.msra.mxu0 0
    %1164 = vmatprep.subr.bf16.mxu0 0
    %1165 = vmatpush1.bf16.msra.mxu0 0
    %1166 = vmatprep.subr.bf16.mxu0 0
    %1167 = vmatpush1.bf16.msra.mxu0 0
    %1168 = vmatprep.subr.bf16.mxu0 0
    %1169 = vmatpush1.bf16.msra.mxu0 0
    %1170 = vmatprep.subr.bf16.mxu0 0
    %1171 = vmatpush1.bf16.msra.mxu0 0
    %1172 = vmatprep.subr.bf16.mxu0 0
    %1173 = vmatpush1.bf16.msra.mxu0 0
    %1174 = vmatprep.subr.bf16.mxu0 0
    %1175 = vmatpush1.bf16.msra.mxu0 0
    %1176 = vmatprep.subr.bf16.mxu0 0
    %1177 = vmatpush1.bf16.msra.mxu0 0
    %1178 = vmatprep.subr.bf16.mxu0 0
    %1179 = vmatpush1.bf16.msra.mxu0 0
    %1180 = vmatprep.subr.bf16.mxu0 0
    %1181 = vmatpush1.bf16.msra.mxu0 0
    %1182 = vmatprep.subr.bf16.mxu0 0
    %1183 = vmatpush1.bf16.msra.mxu0 0
    %1184 = vmatprep.mubr.bf16.mxu0 0
    %1185 = vmatmul.mubr.bf16.gmra.mrb[0].mxu0 %v1150
    %v1186 = vpop.f32.mrb[0].mxu0
    %v1187 = vadd.f32 0.0, %v1186
    %v1188 = vpop.f32.mrb[0].mxu0
    %v1189 = vpop.f32.mrb[0].mxu0
    %v1190 = vpop.f32.mrb[0].mxu0
    %1191 = vdwg.mxu0
    %v1192 = vadd.f32 %v1145, %v1187
    %v1193 = vxor.u32 %v1192, 2147483648
    %v1194 = vmul.f32 %v1193, 1.442695
    %v1195 = vpow.pop %v1194
    %v1196 = vadd.f32 %v1195, 1.0
    %v1197 = vrcp.pop %v1196
    %v1198 = vmul.f32 1.0, %v1197
    %v1199 = vld [vmem:[#allocation3 + $0x6] sm:$0x3]
    %1200 = vmatprep.subr.bf16.mxu0 0
    %1201 = vmatpush1.bf16.msra.mxu0 %v415
    %1202 = vmatprep.subr.bf16.mxu0 0
    %1203 = vmatpush1.bf16.msra.mxu0 %v416
    %1204 = vmatprep.subr.bf16.mxu0 0
    %1205 = vmatpush1.bf16.msra.mxu0 %v417
    %1206 = vmatprep.subr.bf16.mxu0 0
    %1207 = vmatpush1.bf16.msra.mxu0 %v418
    %1208 = vmatprep.subr.bf16.mxu0 0
    %1209 = vmatpush1.bf16.msra.mxu0 0
    %1210 = vmatprep.subr.bf16.mxu0 0
    %1211 = vmatpush1.bf16.msra.mxu0 0
    %1212 = vmatprep.subr.bf16.mxu0 0
    %1213 = vmatpush1.bf16.msra.mxu0 0
    %1214 = vmatprep.subr.bf16.mxu0 0
    %1215 = vmatpush1.bf16.msra.mxu0 0
    %1216 = vmatprep.subr.bf16.mxu0 0
    %1217 = vmatpush1.bf16.msra.mxu0 0
    %1218 = vmatprep.subr.bf16.mxu0 0
    %1219 = vmatpush1.bf16.msra.mxu0 0
    %1220 = vmatprep.subr.bf16.mxu0 0
    %1221 = vmatpush1.bf16.msra.mxu0 0
    %1222 = vmatprep.subr.bf16.mxu0 0
    %1223 = vmatpush1.bf16.msra.mxu0 0
    %1224 = vmatprep.subr.bf16.mxu0 0
    %1225 = vmatpush1.bf16.msra.mxu0 0
    %1226 = vmatprep.subr.bf16.mxu0 0
    %1227 = vmatpush1.bf16.msra.mxu0 0
    %1228 = vmatprep.subr.bf16.mxu0 0
    %1229 = vmatpush1.bf16.msra.mxu0 0
    %1230 = vmatprep.subr.bf16.mxu0 0
    %1231 = vmatpush1.bf16.msra.mxu0 0
    %1232 = vmatprep.mubr.bf16.mxu0 0
    %1233 = vmatmul.mubr.bf16.gmra.mrb[0].mxu0 %v1150
    %v1234 = vpop.f32.mrb[0].mxu0
    %v1235 = vadd.f32 %v425, %v1234
    %v1236 = vpop.f32.mrb[0].mxu0
    %v1237 = vpop.f32.mrb[0].mxu0
    %v1238 = vpop.f32.mrb[0].mxu0
    %1239 = vdwg.mxu0
    %v1240 = vmul.f32 %v1198, %v1235
    %v1241 = vadd.f32 %v1199, %v1240
    %v1242 = vtanh.pop %v1241
    %v1243 = vsub.f32 1.0, %v1198
    %1245 = vrot.lane.b32.xlu0 %v1242, 64
    %v1246 = vpop.permute.xlu0 %1245
    %v1248 = vmul.f32 %v1243, %v1246
    %v1249 = vmul.f32 %v1198, %v1035
    %v1250 = vadd.f32 %v1248, %v1249
    %1252 = vrot.lane.b32.xlu0 %v1250, 64
    %v1253 = vpop.permute.xlu0 %1252
    %v1255 = vsel %vm304, %v1253, %v1143
    %v1256 = vpack.c.bf16 %v1255, %v1255
    %1257 = vmatprep.subr.bf16.mxu0 0
    %1258 = vmatpush1.bf16.msra.mxu0 %v532
    %1259 = vmatprep.subr.bf16.mxu0 0
    %1260 = vmatpush1.bf16.msra.mxu0 %v533
    %1261 = vmatprep.subr.bf16.mxu0 0
    %1262 = vmatpush1.bf16.msra.mxu0 %v534
    %1263 = vmatprep.subr.bf16.mxu0 0
    %1264 = vmatpush1.bf16.msra.mxu0 %v535
    %1265 = vmatprep.subr.bf16.mxu0 0
    %1266 = vmatpush1.bf16.msra.mxu0 %v536
    %1267 = vmatprep.subr.bf16.mxu0 0
    %1268 = vmatpush1.bf16.msra.mxu0 %v537
    %1269 = vmatprep.subr.bf16.mxu0 0
    %1270 = vmatpush1.bf16.msra.mxu0 %v538
    %1271 = vmatprep.subr.bf16.mxu0 0
    %1272 = vmatpush1.bf16.msra.mxu0 %v539
    %1273 = vmatprep.subr.bf16.mxu0 0
    %1274 = vmatpush1.bf16.msra.mxu0 0
    %1275 = vmatprep.subr.bf16.mxu0 0
    %1276 = vmatpush1.bf16.msra.mxu0 0
    %1277 = vmatprep.subr.bf16.mxu0 0
    %1278 = vmatpush1.bf16.msra.mxu0 0
    %1279 = vmatprep.subr.bf16.mxu0 0
    %1280 = vmatpush1.bf16.msra.mxu0 0
    %1281 = vmatprep.subr.bf16.mxu0 0
    %1282 = vmatpush1.bf16.msra.mxu0 0
    %1283 = vmatprep.subr.bf16.mxu0 0
    %1284 = vmatpush1.bf16.msra.mxu0 0
    %1285 = vmatprep.subr.bf16.mxu0 0
    %1286 = vmatpush1.bf16.msra.mxu0 0
    %1287 = vmatprep.subr.bf16.mxu0 0
    %1288 = vmatpush1.bf16.msra.mxu0 0
    %1289 = vmatprep.mubr.bf16.mxu0 0
    %1290 = vmatmul.mubr.bf16.gmra.mrb[0].mxu0 %v1256
    %v1291 = vpop.f32.mrb[0].mxu0
    %v1292 = vadd.f32 %v108, %v1291
    %v1293 = vpop.f32.mrb[0].mxu0
    %v1294 = vpop.f32.mrb[0].mxu0
    %v1295 = vpop.f32.mrb[0].mxu0
    %1296 = vdwg.mxu0
    %v1297 = vxor.u32 %v1292, 2147483648
    %v1298 = vmul.f32 %v1297, 1.442695
    %v1299 = vpow.pop %v1298
    %v1300 = vadd.f32 %v1299, 1.0
    %v1301 = vrcp.pop %v1300
    %v1302 = vmul.f32 1.0, %v1301
    %1303 = vmatprep.subr.bf16.mxu0 0
    %1304 = vmatpush1.bf16.msra.mxu0 %v642
    %1305 = vmatprep.subr.bf16.mxu0 0
    %1306 = vmatpush1.bf16.msra.mxu0 %v643
    %1307 = vmatprep.subr.bf16.mxu0 0
    %1308 = vmatpush1.bf16.msra.mxu0 %v644
    %1309 = vmatprep.subr.bf16.mxu0 0
    %1310 = vmatpush1.bf16.msra.mxu0 %v645
    %1311 = vmatprep.subr.bf16.mxu0 0
    %1312 = vmatpush1.bf16.msra.mxu0 %v646
    %1313 = vmatprep.subr.bf16.mxu0 0
    %1314 = vmatpush1.bf16.msra.mxu0 %v647
    %1315 = vmatprep.subr.bf16.mxu0 0
    %1316 = vmatpush1.bf16.msra.mxu0 %v648
    %1317 = vmatprep.subr.bf16.mxu0 0
    %1318 = vmatpush1.bf16.msra.mxu0 %v649
    %1319 = vmatprep.subr.bf16.mxu0 0
    %1320 = vmatpush1.bf16.msra.mxu0 0
    %1321 = vmatprep.subr.bf16.mxu0 0
    %1322 = vmatpush1.bf16.msra.mxu0 0
    %1323 = vmatprep.subr.bf16.mxu0 0
    %1324 = vmatpush1.bf16.msra.mxu0 0
    %1325 = vmatprep.subr.bf16.mxu0 0
    %1326 = vmatpush1.bf16.msra.mxu0 0
    %1327 = vmatprep.subr.bf16.mxu0 0
    %1328 = vmatpush1.bf16.msra.mxu0 0
    %1329 = vmatprep.subr.bf16.mxu0 0
    %1330 = vmatpush1.bf16.msra.mxu0 0
    %1331 = vmatprep.subr.bf16.mxu0 0
    %1332 = vmatpush1.bf16.msra.mxu0 0
    %1333 = vmatprep.subr.bf16.mxu0 0
    %1334 = vmatpush1.bf16.msra.mxu0 0
    %1335 = vmatprep.mubr.bf16.mxu0 0
    %1336 = vmatmul.mubr.bf16.gmra.mrb[0].mxu0 %v1256
    %v1337 = vpop.f32.mrb[0].mxu0
    %v1338 = vadd.f32 0.0, %v1337
    %v1339 = vpop.f32.mrb[0].mxu0
    %v1340 = vpop.f32.mrb[0].mxu0
    %v1341 = vpop.f32.mrb[0].mxu0
    %1342 = vdwg.mxu0
    %v1343 = vadd.f32 %v1338, %v112
    %1345 = vrot.lane.b32.xlu0 %v1343, 64
    %v1346 = vpop.permute.xlu0 %1345
    %v1348 = vmul.f32 %v1302, %v1346
    %v1349 = vadd.f32 %v1343, %v1348
    %v1350 = vtanh.pop %v1349
    %v1351 = vsub.f32 1.0, %v1302
    %1353 = vrot.lane.b32.xlu0 %v1350, 64
    %v1354 = vpop.permute.xlu0 %1353
    %v1356 = vmul.f32 %v1351, %v1354
    %v1357 = vmul.f32 %v1302, %v1143
    %v1358 = vadd.f32 %v1356, %v1357
    %v1359 = vpack.c.bf16 %v1250, %v1250
    %v1360 = vld [vmem:[#allocation2 + $0x8] sm:$0x3]
    %1362 = vrot.lane.b32.xlu0 %v1359, 64
    %v1363 = vpop.permute.xlu0 %1362
    %v1365 = vsel %vm304, %v1363, 0
    %1367 = vmatprep.subr.bf16.mxu0 0
    %1368 = vmatpush1.bf16.msra.mxu0 %v332
    %1369 = vmatprep.subr.bf16.mxu0 0
    %1370 = vmatpush1.bf16.msra.mxu0 %v333
    %1371 = vmatprep.subr.bf16.mxu0 0
    %1372 = vmatpush1.bf16.msra.mxu0 %v334
    %1373 = vmatprep.subr.bf16.mxu0 0
    %1374 = vmatpush1.bf16.msra.mxu0 %v335
    %1375 = vmatprep.subr.bf16.mxu0 0
    %1376 = vmatpush1.bf16.msra.mxu0 0
    %1377 = vmatprep.subr.bf16.mxu0 0
    %1378 = vmatpush1.bf16.msra.mxu0 0
    %1379 = vmatprep.subr.bf16.mxu0 0
    %1380 = vmatpush1.bf16.msra.mxu0 0
    %1381 = vmatprep.subr.bf16.mxu0 0
    %1382 = vmatpush1.bf16.msra.mxu0 0
    %1383 = vmatprep.subr.bf16.mxu0 0
    %1384 = vmatpush1.bf16.msra.mxu0 0
    %1385 = vmatprep.subr.bf16.mxu0 0
    %1386 = vmatpush1.bf16.msra.mxu0 0
    %1387 = vmatprep.subr.bf16.mxu0 0
    %1388 = vmatpush1.bf16.msra.mxu0 0
    %1389 = vmatprep.subr.bf16.mxu0 0
    %1390 = vmatpush1.bf16.msra.mxu0 0
    %1391 = vmatprep.subr.bf16.mxu0 0
    %1392 = vmatpush1.bf16.msra.mxu0 0
    %1393 = vmatprep.subr.bf16.mxu0 0
    %1394 = vmatpush1.bf16.msra.mxu0 0
    %1395 = vmatprep.subr.bf16.mxu0 0
    %1396 = vmatpush1.bf16.msra.mxu0 0
    %1397 = vmatprep.subr.bf16.mxu0 0
    %1398 = vmatpush1.bf16.msra.mxu0 0
    %1399 = vmatprep.mubr.bf16.mxu0 0
    %1400 = vmatmul.mubr.bf16.gmra.mrb[0].mxu0 %v1365
    %v1401 = vpop.f32.mrb[0].mxu0
    %v1402 = vadd.f32 0.0, %v1401
    %v1403 = vpop.f32.mrb[0].mxu0
    %v1404 = vpop.f32.mrb[0].mxu0
    %v1405 = vpop.f32.mrb[0].mxu0
    %1406 = vdwg.mxu0
    %v1407 = vadd.f32 %v1360, %v1402
    %v1408 = vxor.u32 %v1407, 2147483648
    %v1409 = vmul.f32 %v1408, 1.442695
    %v1410 = vpow.pop %v1409
    %v1411 = vadd.f32 %v1410, 1.0
    %v1412 = vrcp.pop %v1411
    %v1413 = vmul.f32 1.0, %v1412
    %v1414 = vld [vmem:[#allocation3 + $0x8] sm:$0x3]
    %1415 = vmatprep.subr.bf16.mxu0 0
    %1416 = vmatpush1.bf16.msra.mxu0 %v415
    %1417 = vmatprep.subr.bf16.mxu0 0
    %1418 = vmatpush1.bf16.msra.mxu0 %v416
    %1419 = vmatprep.subr.bf16.mxu0 0
    %1420 = vmatpush1.bf16.msra.mxu0 %v417
    %1421 = vmatprep.subr.bf16.mxu0 0
    %1422 = vmatpush1.bf16.msra.mxu0 %v418
    %1423 = vmatprep.subr.bf16.mxu0 0
    %1424 = vmatpush1.bf16.msra.mxu0 0
    %1425 = vmatprep.subr.bf16.mxu0 0
    %1426 = vmatpush1.bf16.msra.mxu0 0
    %1427 = vmatprep.subr.bf16.mxu0 0
    %1428 = vmatpush1.bf16.msra.mxu0 0
    %1429 = vmatprep.subr.bf16.mxu0 0
    %1430 = vmatpush1.bf16.msra.mxu0 0
    %1431 = vmatprep.subr.bf16.mxu0 0
    %1432 = vmatpush1.bf16.msra.mxu0 0
    %1433 = vmatprep.subr.bf16.mxu0 0
    %1434 = vmatpush1.bf16.msra.mxu0 0
    %1435 = vmatprep.subr.bf16.mxu0 0
    %1436 = vmatpush1.bf16.msra.mxu0 0
    %1437 = vmatprep.subr.bf16.mxu0 0
    %1438 = vmatpush1.bf16.msra.mxu0 0
    %1439 = vmatprep.subr.bf16.mxu0 0
    %1440 = vmatpush1.bf16.msra.mxu0 0
    %1441 = vmatprep.subr.bf16.mxu0 0
    %1442 = vmatpush1.bf16.msra.mxu0 0
    %1443 = vmatprep.subr.bf16.mxu0 0
    %1444 = vmatpush1.bf16.msra.mxu0 0
    %1445 = vmatprep.subr.bf16.mxu0 0
    %1446 = vmatpush1.bf16.msra.mxu0 0
    %1447 = vmatprep.mubr.bf16.mxu0 0
    %1448 = vmatmul.mubr.bf16.gmra.mrb[0].mxu0 %v1365
    %v1449 = vpop.f32.mrb[0].mxu0
    %v1450 = vadd.f32 %v425, %v1449
    %v1451 = vpop.f32.mrb[0].mxu0
    %v1452 = vpop.f32.mrb[0].mxu0
    %v1453 = vpop.f32.mrb[0].mxu0
    %1454 = vdwg.mxu0
    %v1455 = vmul.f32 %v1413, %v1450
    %v1456 = vadd.f32 %v1414, %v1455
    %v1457 = vtanh.pop %v1456
    %v1458 = vsub.f32 1.0, %v1413
    %1460 = vrot.lane.b32.xlu0 %v1457, 64
    %v1461 = vpop.permute.xlu0 %1460
    %v1463 = vmul.f32 %v1458, %v1461
    %v1464 = vmul.f32 %v1413, %v1250
    %v1465 = vadd.f32 %v1463, %v1464
    %1467 = vrot.lane.b32.xlu0 %v1465, 64
    %v1468 = vpop.permute.xlu0 %1467
    %v1470 = vsel %vm304, %v1468, %v1358
    %v1471 = vpack.c.bf16 %v1470, %v1470
    %1472 = vmatprep.subr.bf16.mxu0 0
    %1473 = vmatpush1.bf16.msra.mxu0 %v532
    %1474 = vmatprep.subr.bf16.mxu0 0
    %1475 = vmatpush1.bf16.msra.mxu0 %v533
    %1476 = vmatprep.subr.bf16.mxu0 0
    %1477 = vmatpush1.bf16.msra.mxu0 %v534
    %1478 = vmatprep.subr.bf16.mxu0 0
    %1479 = vmatpush1.bf16.msra.mxu0 %v535
    %1480 = vmatprep.subr.bf16.mxu0 0
    %1481 = vmatpush1.bf16.msra.mxu0 %v536
    %1482 = vmatprep.subr.bf16.mxu0 0
    %1483 = vmatpush1.bf16.msra.mxu0 %v537
    %1484 = vmatprep.subr.bf16.mxu0 0
    %1485 = vmatpush1.bf16.msra.mxu0 %v538
    %1486 = vmatprep.subr.bf16.mxu0 0
    %1487 = vmatpush1.bf16.msra.mxu0 %v539
    %1488 = vmatprep.subr.bf16.mxu0 0
    %1489 = vmatpush1.bf16.msra.mxu0 0
    %1490 = vmatprep.subr.bf16.mxu0 0
    %1491 = vmatpush1.bf16.msra.mxu0 0
    %1492 = vmatprep.subr.bf16.mxu0 0
    %1493 = vmatpush1.bf16.msra.mxu0 0
    %1494 = vmatprep.subr.bf16.mxu0 0
    %1495 = vmatpush1.bf16.msra.mxu0 0
    %1496 = vmatprep.subr.bf16.mxu0 0
    %1497 = vmatpush1.bf16.msra.mxu0 0
    %1498 = vmatprep.subr.bf16.mxu0 0
    %1499 = vmatpush1.bf16.msra.mxu0 0
    %1500 = vmatprep.subr.bf16.mxu0 0
    %1501 = vmatpush1.bf16.msra.mxu0 0
    %1502 = vmatprep.subr.bf16.mxu0 0
    %1503 = vmatpush1.bf16.msra.mxu0 0
    %1504 = vmatprep.mubr.bf16.mxu0 0
    %1505 = vmatmul.mubr.bf16.gmra.mrb[0].mxu0 %v1471
    %v1506 = vpop.f32.mrb[0].mxu0
    %v1507 = vadd.f32 %v108, %v1506
    %v1508 = vpop.f32.mrb[0].mxu0
    %v1509 = vpop.f32.mrb[0].mxu0
    %v1510 = vpop.f32.mrb[0].mxu0
    %1511 = vdwg.mxu0
    %v1512 = vxor.u32 %v1507, 2147483648
    %v1513 = vmul.f32 %v1512, 1.442695
    %v1514 = vpow.pop %v1513
    %v1515 = vadd.f32 %v1514, 1.0
    %v1516 = vrcp.pop %v1515
    %v1517 = vmul.f32 1.0, %v1516
    %1518 = vmatprep.subr.bf16.mxu0 0
    %1519 = vmatpush1.bf16.msra.mxu0 %v642
    %1520 = vmatprep.subr.bf16.mxu0 0
    %1521 = vmatpush1.bf16.msra.mxu0 %v643
    %1522 = vmatprep.subr.bf16.mxu0 0
    %1523 = vmatpush1.bf16.msra.mxu0 %v644
    %1524 = vmatprep.subr.bf16.mxu0 0
    %1525 = vmatpush1.bf16.msra.mxu0 %v645
    %1526 = vmatprep.subr.bf16.mxu0 0
    %1527 = vmatpush1.bf16.msra.mxu0 %v646
    %1528 = vmatprep.subr.bf16.mxu0 0
    %1529 = vmatpush1.bf16.msra.mxu0 %v647
    %1530 = vmatprep.subr.bf16.mxu0 0
    %1531 = vmatpush1.bf16.msra.mxu0 %v648
    %1532 = vmatprep.subr.bf16.mxu0 0
    %1533 = vmatpush1.bf16.msra.mxu0 %v649
    %1534 = vmatprep.subr.bf16.mxu0 0
    %1535 = vmatpush1.bf16.msra.mxu0 0
    %1536 = vmatprep.subr.bf16.mxu0 0
    %1537 = vmatpush1.bf16.msra.mxu0 0
    %1538 = vmatprep.subr.bf16.mxu0 0
    %1539 = vmatpush1.bf16.msra.mxu0 0
    %1540 = vmatprep.subr.bf16.mxu0 0
    %1541 = vmatpush1.bf16.msra.mxu0 0
    %1542 = vmatprep.subr.bf16.mxu0 0
    %1543 = vmatpush1.bf16.msra.mxu0 0
    %1544 = vmatprep.subr.bf16.mxu0 0
    %1545 = vmatpush1.bf16.msra.mxu0 0
    %1546 = vmatprep.subr.bf16.mxu0 0
    %1547 = vmatpush1.bf16.msra.mxu0 0
    %1548 = vmatprep.subr.bf16.mxu0 0
    %1549 = vmatpush1.bf16.msra.mxu0 0
    %1550 = vmatprep.mubr.bf16.mxu0 0
    %1551 = vmatmul.mubr.bf16.gmra.mrb[0].mxu0 %v1471
    %v1552 = vpop.f32.mrb[0].mxu0
    %v1553 = vadd.f32 0.0, %v1552
    %v1554 = vpop.f32.mrb[0].mxu0
    %v1555 = vpop.f32.mrb[0].mxu0
    %v1556 = vpop.f32.mrb[0].mxu0
    %1557 = vdwg.mxu0
    %v1558 = vadd.f32 %v1553, %v112
    %1560 = vrot.lane.b32.xlu0 %v1558, 64
    %v1561 = vpop.permute.xlu0 %1560
    %v1563 = vmul.f32 %v1517, %v1561
    %v1564 = vadd.f32 %v1558, %v1563
    %v1565 = vtanh.pop %v1564
    %v1566 = vsub.f32 1.0, %v1517
    %1568 = vrot.lane.b32.xlu0 %v1565, 64
    %v1569 = vpop.permute.xlu0 %1568
    %v1571 = vmul.f32 %v1566, %v1569
    %v1572 = vmul.f32 %v1517, %v1358
    %v1573 = vadd.f32 %v1571, %v1572
    %v1574 = vpack.c.bf16 %v1465, %v1465
    %v1575 = vld [vmem:[#allocation2 + $0xa] sm:$0x3]
    %1577 = vrot.lane.b32.xlu0 %v1574, 64
    %v1578 = vpop.permute.xlu0 %1577
    %v1580 = vsel %vm304, %v1578, 0
    %1582 = vmatprep.subr.bf16.mxu0 0
    %1583 = vmatpush1.bf16.msra.mxu0 %v332
    %1584 = vmatprep.subr.bf16.mxu0 0
    %1585 = vmatpush1.bf16.msra.mxu0 %v333
    %1586 = vmatprep.subr.bf16.mxu0 0
    %1587 = vmatpush1.bf16.msra.mxu0 %v334
    %1588 = vmatprep.subr.bf16.mxu0 0
    %1589 = vmatpush1.bf16.msra.mxu0 %v335
    %1590 = vmatprep.subr.bf16.mxu0 0
    %1591 = vmatpush1.bf16.msra.mxu0 0
    %1592 = vmatprep.subr.bf16.mxu0 0
    %1593 = vmatpush1.bf16.msra.mxu0 0
    %1594 = vmatprep.subr.bf16.mxu0 0
    %1595 = vmatpush1.bf16.msra.mxu0 0
    %1596 = vmatprep.subr.bf16.mxu0 0
    %1597 = vmatpush1.bf16.msra.mxu0 0
    %1598 = vmatprep.subr.bf16.mxu0 0
    %1599 = vmatpush1.bf16.msra.mxu0 0
    %1600 = vmatprep.subr.bf16.mxu0 0
    %1601 = vmatpush1.bf16.msra.mxu0 0
    %1602 = vmatprep.subr.bf16.mxu0 0
    %1603 = vmatpush1.bf16.msra.mxu0 0
    %1604 = vmatprep.subr.bf16.mxu0 0
    %1605 = vmatpush1.bf16.msra.mxu0 0
    %1606 = vmatprep.subr.bf16.mxu0 0
    %1607 = vmatpush1.bf16.msra.mxu0 0
    %1608 = vmatprep.subr.bf16.mxu0 0
    %1609 = vmatpush1.bf16.msra.mxu0 0
    %1610 = vmatprep.subr.bf16.mxu0 0
    %1611 = vmatpush1.bf16.msra.mxu0 0
    %1612 = vmatprep.subr.bf16.mxu0 0
    %1613 = vmatpush1.bf16.msra.mxu0 0
    %1614 = vmatprep.mubr.bf16.mxu0 0
    %1615 = vmatmul.mubr.bf16.gmra.mrb[0].mxu0 %v1580
    %v1616 = vpop.f32.mrb[0].mxu0
    %v1617 = vadd.f32 0.0, %v1616
    %v1618 = vpop.f32.mrb[0].mxu0
    %v1619 = vpop.f32.mrb[0].mxu0
    %v1620 = vpop.f32.mrb[0].mxu0
    %1621 = vdwg.mxu0
    %v1622 = vadd.f32 %v1575, %v1617
    %v1623 = vxor.u32 %v1622, 2147483648
    %v1624 = vmul.f32 %v1623, 1.442695
    %v1625 = vpow.pop %v1624
    %v1626 = vadd.f32 %v1625, 1.0
    %v1627 = vrcp.pop %v1626
    %v1628 = vmul.f32 1.0, %v1627
    %v1629 = vld [vmem:[#allocation3 + $0xa] sm:$0x3]
    %1630 = vmatprep.subr.bf16.mxu0 0
    %1631 = vmatpush1.bf16.msra.mxu0 %v415
    %1632 = vmatprep.subr.bf16.mxu0 0
    %1633 = vmatpush1.bf16.msra.mxu0 %v416
    %1634 = vmatprep.subr.bf16.mxu0 0
    %1635 = vmatpush1.bf16.msra.mxu0 %v417
    %1636 = vmatprep.subr.bf16.mxu0 0
    %1637 = vmatpush1.bf16.msra.mxu0 %v418
    %1638 = vmatprep.subr.bf16.mxu0 0
    %1639 = vmatpush1.bf16.msra.mxu0 0
    %1640 = vmatprep.subr.bf16.mxu0 0
    %1641 = vmatpush1.bf16.msra.mxu0 0
    %1642 = vmatprep.subr.bf16.mxu0 0
    %1643 = vmatpush1.bf16.msra.mxu0 0
    %1644 = vmatprep.subr.bf16.mxu0 0
    %1645 = vmatpush1.bf16.msra.mxu0 0
    %1646 = vmatprep.subr.bf16.mxu0 0
    %1647 = vmatpush1.bf16.msra.mxu0 0
    %1648 = vmatprep.subr.bf16.mxu0 0
    %1649 = vmatpush1.bf16.msra.mxu0 0
    %1650 = vmatprep.subr.bf16.mxu0 0
    %1651 = vmatpush1.bf16.msra.mxu0 0
    %1652 = vmatprep.subr.bf16.mxu0 0
    %1653 = vmatpush1.bf16.msra.mxu0 0
    %1654 = vmatprep.subr.bf16.mxu0 0
    %1655 = vmatpush1.bf16.msra.mxu0 0
    %1656 = vmatprep.subr.bf16.mxu0 0
    %1657 = vmatpush1.bf16.msra.mxu0 0
    %1658 = vmatprep.subr.bf16.mxu0 0
    %1659 = vmatpush1.bf16.msra.mxu0 0
    %1660 = vmatprep.subr.bf16.mxu0 0
    %1661 = vmatpush1.bf16.msra.mxu0 0
    %1662 = vmatprep.mubr.bf16.mxu0 0
    %1663 = vmatmul.mubr.bf16.gmra.mrb[0].mxu0 %v1580
    %v1664 = vpop.f32.mrb[0].mxu0
    %v1665 = vadd.f32 %v425, %v1664
    %v1666 = vpop.f32.mrb[0].mxu0
    %v1667 = vpop.f32.mrb[0].mxu0
    %v1668 = vpop.f32.mrb[0].mxu0
    %1669 = vdwg.mxu0
    %v1670 = vmul.f32 %v1628, %v1665
    %v1671 = vadd.f32 %v1629, %v1670
    %v1672 = vtanh.pop %v1671
    %v1673 = vsub.f32 1.0, %v1628
    %1675 = vrot.lane.b32.xlu0 %v1672, 64
    %v1676 = vpop.permute.xlu0 %1675
    %v1678 = vmul.f32 %v1673, %v1676
    %v1679 = vmul.f32 %v1628, %v1465
    %v1680 = vadd.f32 %v1678, %v1679
    %1682 = vrot.lane.b32.xlu0 %v1680, 64
    %v1683 = vpop.permute.xlu0 %1682
    %v1685 = vsel %vm304, %v1683, %v1573
    %v1686 = vpack.c.bf16 %v1685, %v1685
    %1687 = vmatprep.subr.bf16.mxu0 0
    %1688 = vmatpush1.bf16.msra.mxu0 %v532
    %1689 = vmatprep.subr.bf16.mxu0 0
    %1690 = vmatpush1.bf16.msra.mxu0 %v533
    %1691 = vmatprep.subr.bf16.mxu0 0
    %1692 = vmatpush1.bf16.msra.mxu0 %v534
    %1693 = vmatprep.subr.bf16.mxu0 0
    %1694 = vmatpush1.bf16.msra.mxu0 %v535
    %1695 = vmatprep.subr.bf16.mxu0 0
    %1696 = vmatpush1.bf16.msra.mxu0 %v536
    %1697 = vmatprep.subr.bf16.mxu0 0
    %1698 = vmatpush1.bf16.msra.mxu0 %v537
    %1699 = vmatprep.subr.bf16.mxu0 0
    %1700 = vmatpush1.bf16.msra.mxu0 %v538
    %1701 = vmatprep.subr.bf16.mxu0 0
    %1702 = vmatpush1.bf16.msra.mxu0 %v539
    %1703 = vmatprep.subr.bf16.mxu0 0
    %1704 = vmatpush1.bf16.msra.mxu0 0
    %1705 = vmatprep.subr.bf16.mxu0 0
    %1706 = vmatpush1.bf16.msra.mxu0 0
    %1707 = vmatprep.subr.bf16.mxu0 0
    %1708 = vmatpush1.bf16.msra.mxu0 0
    %1709 = vmatprep.subr.bf16.mxu0 0
    %1710 = vmatpush1.bf16.msra.mxu0 0
    %1711 = vmatprep.subr.bf16.mxu0 0
    %1712 = vmatpush1.bf16.msra.mxu0 0
    %1713 = vmatprep.subr.bf16.mxu0 0
    %1714 = vmatpush1.bf16.msra.mxu0 0
    %1715 = vmatprep.subr.bf16.mxu0 0
    %1716 = vmatpush1.bf16.msra.mxu0 0
    %1717 = vmatprep.subr.bf16.mxu0 0
    %1718 = vmatpush1.bf16.msra.mxu0 0
    %1719 = vmatprep.mubr.bf16.mxu0 0
    %1720 = vmatmul.mubr.bf16.gmra.mrb[0].mxu0 %v1686
    %v1721 = vpop.f32.mrb[0].mxu0
    %v1722 = vadd.f32 %v108, %v1721
    %v1723 = vpop.f32.mrb[0].mxu0
    %v1724 = vpop.f32.mrb[0].mxu0
    %v1725 = vpop.f32.mrb[0].mxu0
    %1726 = vdwg.mxu0
    %v1727 = vxor.u32 %v1722, 2147483648
    %v1728 = vmul.f32 %v1727, 1.442695
    %v1729 = vpow.pop %v1728
    %v1730 = vadd.f32 %v1729, 1.0
    %v1731 = vrcp.pop %v1730
    %v1732 = vmul.f32 1.0, %v1731
    %1733 = vmatprep.subr.bf16.mxu0 0
    %1734 = vmatpush1.bf16.msra.mxu0 %v642
    %1735 = vmatprep.subr.bf16.mxu0 0
    %1736 = vmatpush1.bf16.msra.mxu0 %v643
    %1737 = vmatprep.subr.bf16.mxu0 0
    %1738 = vmatpush1.bf16.msra.mxu0 %v644
    %1739 = vmatprep.subr.bf16.mxu0 0
    %1740 = vmatpush1.bf16.msra.mxu0 %v645
    %1741 = vmatprep.subr.bf16.mxu0 0
    %1742 = vmatpush1.bf16.msra.mxu0 %v646
    %1743 = vmatprep.subr.bf16.mxu0 0
    %1744 = vmatpush1.bf16.msra.mxu0 %v647
    %1745 = vmatprep.subr.bf16.mxu0 0
    %1746 = vmatpush1.bf16.msra.mxu0 %v648
    %1747 = vmatprep.subr.bf16.mxu0 0
    %1748 = vmatpush1.bf16.msra.mxu0 %v649
    %1749 = vmatprep.subr.bf16.mxu0 0
    %1750 = vmatpush1.bf16.msra.mxu0 0
    %1751 = vmatprep.subr.bf16.mxu0 0
    %1752 = vmatpush1.bf16.msra.mxu0 0
    %1753 = vmatprep.subr.bf16.mxu0 0
    %1754 = vmatpush1.bf16.msra.mxu0 0
    %1755 = vmatprep.subr.bf16.mxu0 0
    %1756 = vmatpush1.bf16.msra.mxu0 0
    %1757 = vmatprep.subr.bf16.mxu0 0
    %1758 = vmatpush1.bf16.msra.mxu0 0
    %1759 = vmatprep.subr.bf16.mxu0 0
    %1760 = vmatpush1.bf16.msra.mxu0 0
    %1761 = vmatprep.subr.bf16.mxu0 0
    %1762 = vmatpush1.bf16.msra.mxu0 0
    %1763 = vmatprep.subr.bf16.mxu0 0
    %1764 = vmatpush1.bf16.msra.mxu0 0
    %1765 = vmatprep.mubr.bf16.mxu0 0
    %1766 = vmatmul.mubr.bf16.gmra.mrb[0].mxu0 %v1686
    %v1767 = vpop.f32.mrb[0].mxu0
    %v1768 = vadd.f32 0.0, %v1767
    %v1769 = vpop.f32.mrb[0].mxu0
    %v1770 = vpop.f32.mrb[0].mxu0
    %v1771 = vpop.f32.mrb[0].mxu0
    %1772 = vdwg.mxu0
    %v1773 = vadd.f32 %v1768, %v112
    %1775 = vrot.lane.b32.xlu0 %v1773, 64
    %v1776 = vpop.permute.xlu0 %1775
    %v1778 = vmul.f32 %v1732, %v1776
    %v1779 = vadd.f32 %v1773, %v1778
    %v1780 = vtanh.pop %v1779
    %v1781 = vsub.f32 1.0, %v1732
    %1783 = vrot.lane.b32.xlu0 %v1780, 64
    %v1784 = vpop.permute.xlu0 %1783
    %v1786 = vmul.f32 %v1781, %v1784
    %v1787 = vmul.f32 %v1732, %v1573
    %v1788 = vadd.f32 %v1786, %v1787
    %v1789 = vpack.c.bf16 %v1680, %v1680
    %v1790 = vld [vmem:[#allocation2 + $0xc] sm:$0x3]
    %1792 = vrot.lane.b32.xlu0 %v1789, 64
    %v1793 = vpop.permute.xlu0 %1792
    %v1795 = vsel %vm304, %v1793, 0
    %1797 = vmatprep.subr.bf16.mxu0 0
    %1798 = vmatpush1.bf16.msra.mxu0 %v332
    %1799 = vmatprep.subr.bf16.mxu0 0
    %1800 = vmatpush1.bf16.msra.mxu0 %v333
    %1801 = vmatprep.subr.bf16.mxu0 0
    %1802 = vmatpush1.bf16.msra.mxu0 %v334
    %1803 = vmatprep.subr.bf16.mxu0 0
    %1804 = vmatpush1.bf16.msra.mxu0 %v335
    %1805 = vmatprep.subr.bf16.mxu0 0
    %1806 = vmatpush1.bf16.msra.mxu0 0
    %1807 = vmatprep.subr.bf16.mxu0 0
    %1808 = vmatpush1.bf16.msra.mxu0 0
    %1809 = vmatprep.subr.bf16.mxu0 0
    %1810 = vmatpush1.bf16.msra.mxu0 0
    %1811 = vmatprep.subr.bf16.mxu0 0
    %1812 = vmatpush1.bf16.msra.mxu0 0
    %1813 = vmatprep.subr.bf16.mxu0 0
    %1814 = vmatpush1.bf16.msra.mxu0 0
    %1815 = vmatprep.subr.bf16.mxu0 0
    %1816 = vmatpush1.bf16.msra.mxu0 0
    %1817 = vmatprep.subr.bf16.mxu0 0
    %1818 = vmatpush1.bf16.msra.mxu0 0
    %1819 = vmatprep.subr.bf16.mxu0 0
    %1820 = vmatpush1.bf16.msra.mxu0 0
    %1821 = vmatprep.subr.bf16.mxu0 0
    %1822 = vmatpush1.bf16.msra.mxu0 0
    %1823 = vmatprep.subr.bf16.mxu0 0
    %1824 = vmatpush1.bf16.msra.mxu0 0
    %1825 = vmatprep.subr.bf16.mxu0 0
    %1826 = vmatpush1.bf16.msra.mxu0 0
    %1827 = vmatprep.subr.bf16.mxu0 0
    %1828 = vmatpush1.bf16.msra.mxu0 0
    %1829 = vmatprep.mubr.bf16.mxu0 0
    %1830 = vmatmul.mubr.bf16.gmra.mrb[0].mxu0 %v1795
    %v1831 = vpop.f32.mrb[0].mxu0
    %v1832 = vadd.f32 0.0, %v1831
    %v1833 = vpop.f32.mrb[0].mxu0
    %v1834 = vpop.f32.mrb[0].mxu0
    %v1835 = vpop.f32.mrb[0].mxu0
    %1836 = vdwg.mxu0
    %v1837 = vadd.f32 %v1790, %v1832
    %v1838 = vxor.u32 %v1837, 2147483648
    %v1839 = vmul.f32 %v1838, 1.442695
    %v1840 = vpow.pop %v1839
    %v1841 = vadd.f32 %v1840, 1.0
    %v1842 = vrcp.pop %v1841
    %v1843 = vmul.f32 1.0, %v1842
    %v1844 = vld [vmem:[#allocation3 + $0xc] sm:$0x3]
    %1845 = vmatprep.subr.bf16.mxu0 0
    %1846 = vmatpush1.bf16.msra.mxu0 %v415
    %1847 = vmatprep.subr.bf16.mxu0 0
    %1848 = vmatpush1.bf16.msra.mxu0 %v416
    %1849 = vmatprep.subr.bf16.mxu0 0
    %1850 = vmatpush1.bf16.msra.mxu0 %v417
    %1851 = vmatprep.subr.bf16.mxu0 0
    %1852 = vmatpush1.bf16.msra.mxu0 %v418
    %1853 = vmatprep.subr.bf16.mxu0 0
    %1854 = vmatpush1.bf16.msra.mxu0 0
    %1855 = vmatprep.subr.bf16.mxu0 0
    %1856 = vmatpush1.bf16.msra.mxu0 0
    %1857 = vmatprep.subr.bf16.mxu0 0
    %1858 = vmatpush1.bf16.msra.mxu0 0
    %1859 = vmatprep.subr.bf16.mxu0 0
    %1860 = vmatpush1.bf16.msra.mxu0 0
    %1861 = vmatprep.subr.bf16.mxu0 0
    %1862 = vmatpush1.bf16.msra.mxu0 0
    %1863 = vmatprep.subr.bf16.mxu0 0
    %1864 = vmatpush1.bf16.msra.mxu0 0
    %1865 = vmatprep.subr.bf16.mxu0 0
    %1866 = vmatpush1.bf16.msra.mxu0 0
    %1867 = vmatprep.subr.bf16.mxu0 0
    %1868 = vmatpush1.bf16.msra.mxu0 0
    %1869 = vmatprep.subr.bf16.mxu0 0
    %1870 = vmatpush1.bf16.msra.mxu0 0
    %1871 = vmatprep.subr.bf16.mxu0 0
    %1872 = vmatpush1.bf16.msra.mxu0 0
    %1873 = vmatprep.subr.bf16.mxu0 0
    %1874 = vmatpush1.bf16.msra.mxu0 0
    %1875 = vmatprep.subr.bf16.mxu0 0
    %1876 = vmatpush1.bf16.msra.mxu0 0
    %1877 = vmatprep.mubr.bf16.mxu0 0
    %1878 = vmatmul.mubr.bf16.gmra.mrb[0].mxu0 %v1795
    %v1879 = vpop.f32.mrb[0].mxu0
    %v1880 = vadd.f32 %v425, %v1879
    %v1881 = vpop.f32.mrb[0].mxu0
    %v1882 = vpop.f32.mrb[0].mxu0
    %v1883 = vpop.f32.mrb[0].mxu0
    %1884 = vdwg.mxu0
    %v1885 = vmul.f32 %v1843, %v1880
    %v1886 = vadd.f32 %v1844, %v1885
    %v1887 = vtanh.pop %v1886
    %v1888 = vsub.f32 1.0, %v1843
    %1890 = vrot.lane.b32.xlu0 %v1887, 64
    %v1891 = vpop.permute.xlu0 %1890
    %v1893 = vmul.f32 %v1888, %v1891
    %v1894 = vmul.f32 %v1843, %v1680
    %v1895 = vadd.f32 %v1893, %v1894
    %1897 = vrot.lane.b32.xlu0 %v1895, 64
    %v1898 = vpop.permute.xlu0 %1897
    %v1900 = vsel %vm304, %v1898, %v1788
    %v1901 = vpack.c.bf16 %v1900, %v1900
    %1902 = vmatprep.subr.bf16.mxu0 0
    %1903 = vmatpush1.bf16.msra.mxu0 %v532
    %1904 = vmatprep.subr.bf16.mxu0 0
    %1905 = vmatpush1.bf16.msra.mxu0 %v533
    %1906 = vmatprep.subr.bf16.mxu0 0
    %1907 = vmatpush1.bf16.msra.mxu0 %v534
    %1908 = vmatprep.subr.bf16.mxu0 0
    %1909 = vmatpush1.bf16.msra.mxu0 %v535
    %1910 = vmatprep.subr.bf16.mxu0 0
    %1911 = vmatpush1.bf16.msra.mxu0 %v536
    %1912 = vmatprep.subr.bf16.mxu0 0
    %1913 = vmatpush1.bf16.msra.mxu0 %v537
    %1914 = vmatprep.subr.bf16.mxu0 0
    %1915 = vmatpush1.bf16.msra.mxu0 %v538
    %1916 = vmatprep.subr.bf16.mxu0 0
    %1917 = vmatpush1.bf16.msra.mxu0 %v539
    %1918 = vmatprep.subr.bf16.mxu0 0
    %1919 = vmatpush1.bf16.msra.mxu0 0
    %1920 = vmatprep.subr.bf16.mxu0 0
    %1921 = vmatpush1.bf16.msra.mxu0 0
    %1922 = vmatprep.subr.bf16.mxu0 0
    %1923 = vmatpush1.bf16.msra.mxu0 0
    %1924 = vmatprep.subr.bf16.mxu0 0
    %1925 = vmatpush1.bf16.msra.mxu0 0
    %1926 = vmatprep.subr.bf16.mxu0 0
    %1927 = vmatpush1.bf16.msra.mxu0 0
    %1928 = vmatprep.subr.bf16.mxu0 0
    %1929 = vmatpush1.bf16.msra.mxu0 0
    %1930 = vmatprep.subr.bf16.mxu0 0
    %1931 = vmatpush1.bf16.msra.mxu0 0
    %1932 = vmatprep.subr.bf16.mxu0 0
    %1933 = vmatpush1.bf16.msra.mxu0 0
    %1934 = vmatprep.mubr.bf16.mxu0 0
    %1935 = vmatmul.mubr.bf16.gmra.mrb[0].mxu0 %v1901
    %v1936 = vpop.f32.mrb[0].mxu0
    %v1937 = vadd.f32 %v108, %v1936
    %v1938 = vpop.f32.mrb[0].mxu0
    %v1939 = vpop.f32.mrb[0].mxu0
    %v1940 = vpop.f32.mrb[0].mxu0
    %1941 = vdwg.mxu0
    %v1942 = vxor.u32 %v1937, 2147483648
    %v1943 = vmul.f32 %v1942, 1.442695
    %v1944 = vpow.pop %v1943
    %v1945 = vadd.f32 %v1944, 1.0
    %v1946 = vrcp.pop %v1945
    %v1947 = vmul.f32 1.0, %v1946
    %1948 = vmatprep.subr.bf16.mxu0 0
    %1949 = vmatpush1.bf16.msra.mxu0 %v642
    %1950 = vmatprep.subr.bf16.mxu0 0
    %1951 = vmatpush1.bf16.msra.mxu0 %v643
    %1952 = vmatprep.subr.bf16.mxu0 0
    %1953 = vmatpush1.bf16.msra.mxu0 %v644
    %1954 = vmatprep.subr.bf16.mxu0 0
    %1955 = vmatpush1.bf16.msra.mxu0 %v645
    %1956 = vmatprep.subr.bf16.mxu0 0
    %1957 = vmatpush1.bf16.msra.mxu0 %v646
    %1958 = vmatprep.subr.bf16.mxu0 0
    %1959 = vmatpush1.bf16.msra.mxu0 %v647
    %1960 = vmatprep.subr.bf16.mxu0 0
    %1961 = vmatpush1.bf16.msra.mxu0 %v648
    %1962 = vmatprep.subr.bf16.mxu0 0
    %1963 = vmatpush1.bf16.msra.mxu0 %v649
    %1964 = vmatprep.subr.bf16.mxu0 0
    %1965 = vmatpush1.bf16.msra.mxu0 0
    %1966 = vmatprep.subr.bf16.mxu0 0
    %1967 = vmatpush1.bf16.msra.mxu0 0
    %1968 = vmatprep.subr.bf16.mxu0 0
    %1969 = vmatpush1.bf16.msra.mxu0 0
    %1970 = vmatprep.subr.bf16.mxu0 0
    %1971 = vmatpush1.bf16.msra.mxu0 0
    %1972 = vmatprep.subr.bf16.mxu0 0
    %1973 = vmatpush1.bf16.msra.mxu0 0
    %1974 = vmatprep.subr.bf16.mxu0 0
    %1975 = vmatpush1.bf16.msra.mxu0 0
    %1976 = vmatprep.subr.bf16.mxu0 0
    %1977 = vmatpush1.bf16.msra.mxu0 0
    %1978 = vmatprep.subr.bf16.mxu0 0
    %1979 = vmatpush1.bf16.msra.mxu0 0
    %1980 = vmatprep.mubr.bf16.mxu0 0
    %1981 = vmatmul.mubr.bf16.gmra.mrb[0].mxu0 %v1901
    %v1982 = vpop.f32.mrb[0].mxu0
    %v1983 = vadd.f32 0.0, %v1982
    %v1984 = vpop.f32.mrb[0].mxu0
    %v1985 = vpop.f32.mrb[0].mxu0
    %v1986 = vpop.f32.mrb[0].mxu0
    %1987 = vdwg.mxu0
    %v1988 = vadd.f32 %v1983, %v112
    %1990 = vrot.lane.b32.xlu0 %v1988, 64
    %v1991 = vpop.permute.xlu0 %1990
    %v1993 = vmul.f32 %v1947, %v1991
    %v1994 = vadd.f32 %v1988, %v1993
    %v1995 = vtanh.pop %v1994
    %v1996 = vsub.f32 1.0, %v1947
    %1998 = vrot.lane.b32.xlu0 %v1995, 64
    %v1999 = vpop.permute.xlu0 %1998
    %v2001 = vmul.f32 %v1996, %v1999
    %v2002 = vmul.f32 %v1947, %v1788
    %v2003 = vadd.f32 %v2001, %v2002
    %v2004 = vpack.c.bf16 %v1895, %v1895
    %v2005 = vld [vmem:[#allocation2 + $0xe] sm:$0x3]
    %2007 = vrot.lane.b32.xlu0 %v2004, 64
    %v2008 = vpop.permute.xlu0 %2007
    %v2010 = vsel %vm304, %v2008, 0
    %2012 = vmatprep.subr.bf16.mxu0 0
    %2013 = vmatpush1.bf16.msra.mxu0 %v332
    %2014 = vmatprep.subr.bf16.mxu0 0
    %2015 = vmatpush1.bf16.msra.mxu0 %v333
    %2016 = vmatprep.subr.bf16.mxu0 0
    %2017 = vmatpush1.bf16.msra.mxu0 %v334
    %2018 = vmatprep.subr.bf16.mxu0 0
    %2019 = vmatpush1.bf16.msra.mxu0 %v335
    %2020 = vmatprep.subr.bf16.mxu0 0
    %2021 = vmatpush1.bf16.msra.mxu0 0
    %2022 = vmatprep.subr.bf16.mxu0 0
    %2023 = vmatpush1.bf16.msra.mxu0 0
    %2024 = vmatprep.subr.bf16.mxu0 0
    %2025 = vmatpush1.bf16.msra.mxu0 0
    %2026 = vmatprep.subr.bf16.mxu0 0
    %2027 = vmatpush1.bf16.msra.mxu0 0
    %2028 = vmatprep.subr.bf16.mxu0 0
    %2029 = vmatpush1.bf16.msra.mxu0 0
    %2030 = vmatprep.subr.bf16.mxu0 0
    %2031 = vmatpush1.bf16.msra.mxu0 0
    %2032 = vmatprep.subr.bf16.mxu0 0
    %2033 = vmatpush1.bf16.msra.mxu0 0
    %2034 = vmatprep.subr.bf16.mxu0 0
    %2035 = vmatpush1.bf16.msra.mxu0 0
    %2036 = vmatprep.subr.bf16.mxu0 0
    %2037 = vmatpush1.bf16.msra.mxu0 0
    %2038 = vmatprep.subr.bf16.mxu0 0
    %2039 = vmatpush1.bf16.msra.mxu0 0
    %2040 = vmatprep.subr.bf16.mxu0 0
    %2041 = vmatpush1.bf16.msra.mxu0 0
    %2042 = vmatprep.subr.bf16.mxu0 0
    %2043 = vmatpush1.bf16.msra.mxu0 0
    %2044 = vmatprep.mubr.bf16.mxu0 0
    %2045 = vmatmul.mubr.bf16.gmra.mrb[0].mxu0 %v2010
    %v2046 = vpop.f32.mrb[0].mxu0
    %v2047 = vadd.f32 0.0, %v2046
    %v2048 = vpop.f32.mrb[0].mxu0
    %v2049 = vpop.f32.mrb[0].mxu0
    %v2050 = vpop.f32.mrb[0].mxu0
    %2051 = vdwg.mxu0
    %v2052 = vadd.f32 %v2005, %v2047
    %v2053 = vxor.u32 %v2052, 2147483648
    %v2054 = vmul.f32 %v2053, 1.442695
    %v2055 = vpow.pop %v2054
    %v2056 = vadd.f32 %v2055, 1.0
    %v2057 = vrcp.pop %v2056
    %v2058 = vmul.f32 1.0, %v2057
    %v2059 = vld [vmem:[#allocation3 + $0xe] sm:$0x3]
    %2060 = vmatprep.subr.bf16.mxu0 0
    %2061 = vmatpush1.bf16.msra.mxu0 %v415
    %2062 = vmatprep.subr.bf16.mxu0 0
    %2063 = vmatpush1.bf16.msra.mxu0 %v416
    %2064 = vmatprep.subr.bf16.mxu0 0
    %2065 = vmatpush1.bf16.msra.mxu0 %v417
    %2066 = vmatprep.subr.bf16.mxu0 0
    %2067 = vmatpush1.bf16.msra.mxu0 %v418
    %2068 = vmatprep.subr.bf16.mxu0 0
    %2069 = vmatpush1.bf16.msra.mxu0 0
    %2070 = vmatprep.subr.bf16.mxu0 0
    %2071 = vmatpush1.bf16.msra.mxu0 0
    %2072 = vmatprep.subr.bf16.mxu0 0
    %2073 = vmatpush1.bf16.msra.mxu0 0
    %2074 = vmatprep.subr.bf16.mxu0 0
    %2075 = vmatpush1.bf16.msra.mxu0 0
    %2076 = vmatprep.subr.bf16.mxu0 0
    %2077 = vmatpush1.bf16.msra.mxu0 0
    %2078 = vmatprep.subr.bf16.mxu0 0
    %2079 = vmatpush1.bf16.msra.mxu0 0
    %2080 = vmatprep.subr.bf16.mxu0 0
    %2081 = vmatpush1.bf16.msra.mxu0 0
    %2082 = vmatprep.subr.bf16.mxu0 0
    %2083 = vmatpush1.bf16.msra.mxu0 0
    %2084 = vmatprep.subr.bf16.mxu0 0
    %2085 = vmatpush1.bf16.msra.mxu0 0
    %2086 = vmatprep.subr.bf16.mxu0 0
    %2087 = vmatpush1.bf16.msra.mxu0 0
    %2088 = vmatprep.subr.bf16.mxu0 0
    %2089 = vmatpush1.bf16.msra.mxu0 0
    %2090 = vmatprep.subr.bf16.mxu0 0
    %2091 = vmatpush1.bf16.msra.mxu0 0
    %2092 = vmatprep.mubr.bf16.mxu0 0
    %2093 = vmatmul.mubr.bf16.gmra.mrb[0].mxu0 %v2010
    %v2094 = vpop.f32.mrb[0].mxu0
    %v2095 = vadd.f32 %v425, %v2094
    %v2096 = vpop.f32.mrb[0].mxu0
    %v2097 = vpop.f32.mrb[0].mxu0
    %v2098 = vpop.f32.mrb[0].mxu0
    %2099 = vdwg.mxu0
    %v2100 = vmul.f32 %v2058, %v2095
    %v2101 = vadd.f32 %v2059, %v2100
    %v2102 = vtanh.pop %v2101
    %v2103 = vsub.f32 1.0, %v2058
    %2105 = vrot.lane.b32.xlu0 %v2102, 64
    %v2106 = vpop.permute.xlu0 %2105
    %v2108 = vmul.f32 %v2103, %v2106
    %v2109 = vmul.f32 %v2058, %v1895
    %v2110 = vadd.f32 %v2108, %v2109
    %2112 = vrot.lane.b32.xlu0 %v2110, 64
    %v2113 = vpop.permute.xlu0 %2112
    %v2115 = vsel %vm304, %v2113, %v2003
    %v2116 = vpack.c.bf16 %v2115, %v2115
    %2117 = vmatprep.subr.bf16.mxu0 0
    %2118 = vmatpush1.bf16.msra.mxu0 %v532
    %2119 = vmatprep.subr.bf16.mxu0 0
    %2120 = vmatpush1.bf16.msra.mxu0 %v533
    %2121 = vmatprep.subr.bf16.mxu0 0
    %2122 = vmatpush1.bf16.msra.mxu0 %v534
    %2123 = vmatprep.subr.bf16.mxu0 0
    %2124 = vmatpush1.bf16.msra.mxu0 %v535
    %2125 = vmatprep.subr.bf16.mxu0 0
    %2126 = vmatpush1.bf16.msra.mxu0 %v536
    %2127 = vmatprep.subr.bf16.mxu0 0
    %2128 = vmatpush1.bf16.msra.mxu0 %v537
    %2129 = vmatprep.subr.bf16.mxu0 0
    %2130 = vmatpush1.bf16.msra.mxu0 %v538
    %2131 = vmatprep.subr.bf16.mxu0 0
    %2132 = vmatpush1.bf16.msra.mxu0 %v539
    %2133 = vmatprep.subr.bf16.mxu0 0
    %2134 = vmatpush1.bf16.msra.mxu0 0
    %2135 = vmatprep.subr.bf16.mxu0 0
    %2136 = vmatpush1.bf16.msra.mxu0 0
    %2137 = vmatprep.subr.bf16.mxu0 0
    %2138 = vmatpush1.bf16.msra.mxu0 0
    %2139 = vmatprep.subr.bf16.mxu0 0
    %2140 = vmatpush1.bf16.msra.mxu0 0
    %2141 = vmatprep.subr.bf16.mxu0 0
    %2142 = vmatpush1.bf16.msra.mxu0 0
    %2143 = vmatprep.subr.bf16.mxu0 0
    %2144 = vmatpush1.bf16.msra.mxu0 0
    %2145 = vmatprep.subr.bf16.mxu0 0
    %2146 = vmatpush1.bf16.msra.mxu0 0
    %2147 = vmatprep.subr.bf16.mxu0 0
    %2148 = vmatpush1.bf16.msra.mxu0 0
    %2149 = vmatprep.mubr.bf16.mxu0 0
    %2150 = vmatmul.mubr.bf16.gmra.mrb[0].mxu0 %v2116
    %v2151 = vpop.f32.mrb[0].mxu0
    %v2152 = vadd.f32 %v108, %v2151
    %v2153 = vpop.f32.mrb[0].mxu0
    %v2154 = vpop.f32.mrb[0].mxu0
    %v2155 = vpop.f32.mrb[0].mxu0
    %2156 = vdwg.mxu0
    %v2157 = vxor.u32 %v2152, 2147483648
    %v2158 = vmul.f32 %v2157, 1.442695
    %v2159 = vpow.pop %v2158
    %v2160 = vadd.f32 %v2159, 1.0
    %v2161 = vrcp.pop %v2160
    %v2162 = vmul.f32 1.0, %v2161
    %2163 = vmatprep.subr.bf16.mxu0 0
    %2164 = vmatpush1.bf16.msra.mxu0 %v642
    %2165 = vmatprep.subr.bf16.mxu0 0
    %2166 = vmatpush1.bf16.msra.mxu0 %v643
    %2167 = vmatprep.subr.bf16.mxu0 0
    %2168 = vmatpush1.bf16.msra.mxu0 %v644
    %2169 = vmatprep.subr.bf16.mxu0 0
    %2170 = vmatpush1.bf16.msra.mxu0 %v645
    %2171 = vmatprep.subr.bf16.mxu0 0
    %2172 = vmatpush1.bf16.msra.mxu0 %v646
    %2173 = vmatprep.subr.bf16.mxu0 0
    %2174 = vmatpush1.bf16.msra.mxu0 %v647
    %2175 = vmatprep.subr.bf16.mxu0 0
    %2176 = vmatpush1.bf16.msra.mxu0 %v648
    %2177 = vmatprep.subr.bf16.mxu0 0
    %2178 = vmatpush1.bf16.msra.mxu0 %v649
    %2179 = vmatprep.subr.bf16.mxu0 0
    %2180 = vmatpush1.bf16.msra.mxu0 0
    %2181 = vmatprep.subr.bf16.mxu0 0
    %2182 = vmatpush1.bf16.msra.mxu0 0
    %2183 = vmatprep.subr.bf16.mxu0 0
    %2184 = vmatpush1.bf16.msra.mxu0 0
    %2185 = vmatprep.subr.bf16.mxu0 0
    %2186 = vmatpush1.bf16.msra.mxu0 0
    %2187 = vmatprep.subr.bf16.mxu0 0
    %2188 = vmatpush1.bf16.msra.mxu0 0
    %2189 = vmatprep.subr.bf16.mxu0 0
    %2190 = vmatpush1.bf16.msra.mxu0 0
    %2191 = vmatprep.subr.bf16.mxu0 0
    %2192 = vmatpush1.bf16.msra.mxu0 0
    %2193 = vmatprep.subr.bf16.mxu0 0
    %2194 = vmatpush1.bf16.msra.mxu0 0
    %2195 = vmatprep.mubr.bf16.mxu0 0
    %2196 = vmatmul.mubr.bf16.gmra.mrb[0].mxu0 %v2116
    %v2197 = vpop.f32.mrb[0].mxu0
    %v2198 = vadd.f32 0.0, %v2197
    %v2199 = vpop.f32.mrb[0].mxu0
    %v2200 = vpop.f32.mrb[0].mxu0
    %v2201 = vpop.f32.mrb[0].mxu0
    %2202 = vdwg.mxu0
    %v2203 = vadd.f32 %v2198, %v112
    %2205 = vrot.lane.b32.xlu0 %v2203, 64
    %v2206 = vpop.permute.xlu0 %2205
    %v2208 = vmul.f32 %v2162, %v2206
    %v2209 = vadd.f32 %v2203, %v2208
    %v2210 = vtanh.pop %v2209
    %v2211 = vsub.f32 1.0, %v2162
    %2213 = vrot.lane.b32.xlu0 %v2210, 64
    %v2214 = vpop.permute.xlu0 %2213
    %v2216 = vmul.f32 %v2211, %v2214
    %v2217 = vmul.f32 %v2162, %v2003
    %v2218 = vadd.f32 %v2216, %v2217
    %vm2219 = vcmask 517120
    %2220 = vst.msk [vmem:[#allocation13] sm:$0x3] %vm2219, %v2113
    %2222 = vrot.lane.b32.xlu0 %v2218, 64
    %v2223 = vpop.permute.xlu0 %2222
    %s2225 = scalar_lea.vmem [#allocation13], 2
    %2226 = vst.msk [vmem:[%s2225] sm:$0x3] %vm2219, %v2223
    // Predicated region
    $region58: #{encoder_forward.1} parent=1 // pred_check
      _
    $region59: #{encoder_forward.1} parent=1 // pred_check_branch
      %2228 = sbr.rel (0) target = $region61
    $region60: #{encoder_forward.1} parent=1 // pred_region
      %s2230 = ssub.s32 64, 64
      %2231 = vsyncadd [#allocation6], %s2230
      %s2232 = sshll.u32 [#allocation13], 4
      %s2233 = int_to_ptr.vmem [resolvable:$true] %s2232
      %2238 = dma.vmem_to_hbm [thread:$0]  %s2233, 64, %s9, [#allocation6], 32, 32, 2
    $region61: #{encoder_forward.1} parent=1 // pred_fallthru
      _
    // Predicated region
    $region62: #{encoder_forward.1} parent=1 // pred_check
      _
    $region63: #{encoder_forward.1} parent=1 // pred_check_branch
      %2240 = sbr.rel (0) target = $region65
    $region64: #{encoder_forward.1} parent=1 // pred_region
      %2241 = dma.done [#allocation6], 64
    $region65: #{encoder_forward.1} parent=1 // pred_fallthru
      _
    %2242 = vsyncpa [#allocation5], 1
    %2243 = vsyncpa [#allocation8], 1
    %2244 = vsyncpa [#allocation11], 1
    %2245 = vsyncpa [#allocation6], 1

</llo_original>
